<compile_context>
chip_gen: v7x
topology: tpu7x:2x2x1
jax: 0.10.0
libtpu: 0.0.40
codegen_flags: <defaults>
</compile_context>

<pallas_src>
import math

import jax
import jax.numpy as jnp
from jax.experimental import pallas as pl
from jax.experimental.pallas import tpu as pltpu


def _round_up(x, m):
    return ((x + m - 1) // m) * m


# ---------------------------------------------------------------------------
# Kernel
# ---------------------------------------------------------------------------
def _mlp_kernel(x_ref, wf_ref, bf_ref, w2_ref, b2_ref, w3_ref, b3_ref,
                w4_ref, b4_ref, wp_ref, bp_ref, o_ref, acc_ref):
    """Grid = (batch tiles, K tiles over the streamed in_features axis)."""
    k = pl.program_id(1)

    @pl.when(k == 0)
    def _():
        acc_ref[...] = jnp.zeros_like(acc_ref)

    # Fused (stem @ layer1) contraction: one bf16 MXU matmul per K chunk,
    # accumulated in float32 VMEM scratch.
    acc_ref[...] += jnp.dot(x_ref[...], wf_ref[...],
                            preferred_element_type=jnp.float32)

    @pl.when(k == pl.num_programs(1) - 1)
    def _():
        # Fused bias + ReLU for layer 1 (Dropout in eval mode is identity).
        h = jnp.maximum(acc_ref[...] + bf_ref[...], 0.0)

        # Mid layers 1024->512->256->128, each Linear + ReLU.
        for w_ref, b_ref in ((w2_ref, b2_ref), (w3_ref, b3_ref), (w4_ref, b4_ref)):
            h = jnp.dot(h.astype(jnp.bfloat16), w_ref[...],
                        preferred_element_type=jnp.float32)
            h = jnp.maximum(h + b_ref[...], 0.0)

        # Packed tail: 128->64->32->16->8->num_classes, zero-padded to 128 lanes.
        n_tail = wp_ref.shape[0]
        for i in range(n_tail):
            h = jnp.dot(h.astype(jnp.bfloat16), wp_ref[i],
                        preferred_element_type=jnp.float32)
            h = h + bp_ref[i]
            if i < n_tail - 1:          # no ReLU after the final logits layer
                h = jnp.maximum(h, 0.0)

        o_ref[...] = h.astype(o_ref.dtype)


# ---------------------------------------------------------------------------
# Wrapper
# ---------------------------------------------------------------------------
def emotion_classifier_forward(x_nchw, params, num_classes, *, tile_k_cap=1024):
    """x_nchw: (B, C, H, W) float32.  params: tuple built by build_params."""
    (wf, bf, w2, b2, w3, b3, w4, b4, wp, bp) = params

    B = x_nchw.shape[0]
    K = wf.shape[0]                    # in_features (streamed axis)
    N1 = wf.shape[1]                   # 1024
    OUT_PAD = wp.shape[2]              # 128 lane-dense output width

    x = x_nchw.reshape(B, -1).astype(jnp.bfloat16)
    assert x.shape[1] == K, (x.shape, K)

    # --- K (in_features) streaming ---------------------------------------
    # Cap a single streamed W_fused block at (tile_k_cap, 1024) bf16 (~2 MiB):
    # near the HBM-roofline DMA sweet spot and safe inside v7x's 64 MiB VMEM,
    # while never holding the full in_features axis resident.
    if K <= tile_k_cap:
        tile_k = _round_up(K, 128)     # lane multiple
    else:
        tile_k = tile_k_cap
    K_pad = _round_up(K, tile_k)
    nk = K_pad // tile_k

    # --- batch tiling ------------------------------------------------------
    # 256 rows fill the v6e/v7x 256x256 MXU and keep the "parallel" axis wide
    # enough for megacore; 128 is ideal on v5e's 4x128x128 MXU; small batches
    # pad to a sublane multiple.
    if B >= 256:
        tile_b = 256
    elif B >= 128:
        tile_b = 128
    else:
        tile_b = max(8, _round_up(B, 8))
    B_pad = _round_up(B, tile_b)
    nb = B_pad // tile_b

    # Zero padding keeps the math exact (padded K rows contribute nothing).
    x = jnp.pad(x, ((0, B_pad - B), (0, K_pad - K)))
    wf = jnp.pad(wf, ((0, K_pad - K), (0, 0)))

    # Streamed specs: deepen buffering only when there are enough K steps for
    # it to matter (keeps VMEM lean and the small-shape path simple).
    if nk >= 3:
        x_spec = pl.BlockSpec((tile_b, tile_k), lambda b, k: (b, k),
                              pipeline_mode=pl.Buffered(3))
        wf_spec = pl.BlockSpec((tile_k, N1), lambda b, k: (k, 0),
                               pipeline_mode=pl.Buffered(3))
    else:
        x_spec = pl.BlockSpec((tile_b, tile_k), lambda b, k: (b, k))
        wf_spec = pl.BlockSpec((tile_k, N1), lambda b, k: (k, 0))

    in_specs = [
        x_spec,                                                  # x      (streamed)
        wf_spec,                                                 # W_fused(streamed)
        pl.BlockSpec(bf.shape, lambda b, k: (0, 0)),             # fused bias
        pl.BlockSpec(w2.shape, lambda b, k: (0, 0)),             # 1024->512
        pl.BlockSpec(b2.shape, lambda b, k: (0, 0)),
        pl.BlockSpec(w3.shape, lambda b, k: (0, 0)),             # 512->256
        pl.BlockSpec(b3.shape, lambda b, k: (0, 0)),
        pl.BlockSpec(w4.shape, lambda b, k: (0, 0)),             # 256->128
        pl.BlockSpec(b4.shape, lambda b, k: (0, 0)),
        pl.BlockSpec(wp.shape, lambda b, k: (0, 0, 0)),          # packed tail W
        pl.BlockSpec(bp.shape, lambda b, k: (0, 0, 0)),          # packed tail b
    ]
    out_specs = pl.BlockSpec((tile_b, OUT_PAD), lambda b, k: (b, 0))

    out = pl.pallas_call(
        _mlp_kernel,
        out_shape=jax.ShapeDtypeStruct((B_pad, OUT_PAD), jnp.float32),
        grid_spec=pltpu.PrefetchScalarGridSpec(
            num_scalar_prefetch=0,
            grid=(nb, nk),
            in_specs=in_specs,
            out_specs=out_specs,
            scratch_shapes=[pltpu.VMEM((tile_b, N1), jnp.float32)],
        ),
        compiler_params=pltpu.CompilerParams(
            dimension_semantics=("parallel", "arbitrary"),
            # Explicit limit: well below v7x's 64 MiB physical VMEM, above the
            # v5e 16 MiB scoped default, and far above this kernel's working
            # set even with 3-deep buffering at tile_k_cap.
            vmem_limit_bytes=48 << 20,
        ),
    )(x, wf, bf, w2, b2, w3, b3, w4, b4, wp, bp)

    return out[:B, :num_classes]


# ---------------------------------------------------------------------------
# Pure-JAX reference (same fused bf16 weights) for a correctness sanity check
# ---------------------------------------------------------------------------
def reference_forward(x_nchw, params, num_classes):
    (wf, bf, w2, b2, w3, b3, w4, b4, wp, bp) = params
    h = x_nchw.reshape(x_nchw.shape[0], -1).astype(jnp.bfloat16)
    h = jnp.maximum(
        jnp.dot(h, wf, preferred_element_type=jnp.float32) + bf, 0.0)
    for w, b in ((w2, b2), (w3, b3), (w4, b4)):
        h = jnp.maximum(
            jnp.dot(h.astype(jnp.bfloat16), w, preferred_element_type=jnp.float32) + b,
            0.0)
    for i in range(wp.shape[0]):
        h = jnp.dot(h.astype(jnp.bfloat16), wp[i],
                    preferred_element_type=jnp.float32) + bp[i]
        if i < wp.shape[0] - 1:
            h = jnp.maximum(h, 0.0)
    return h[:, :num_classes]


# ---------------------------------------------------------------------------
# Deterministic parameter construction (mimics nn.Linear default init)
# ---------------------------------------------------------------------------
def _init_linear(key, fan_in, fan_out):
    kw, kb = jax.random.split(key)
    bound = 1.0 / math.sqrt(fan_in)
    w = jax.random.uniform(kw, (fan_in, fan_out), jnp.float32, -bound, bound)
    b = jax.random.uniform(kb, (1, fan_out), jnp.float32, -bound, bound)
    return w, b


def _pad2(a, rows, cols):
    return jnp.pad(a, ((0, rows - a.shape[0]), (0, cols - a.shape[1])))


def build_params(key, in_features, num_classes):
    assert num_classes <= 128
    # Surrogate stem (in_features -> 2560), then the exact classifier head.
    dims = [in_features, 2560, 1024, 512, 256, 128, 64, 32, 16, 8, num_classes]
    keys = jax.random.split(key, len(dims) - 1)
    ws, bs = [], []
    for i in range(len(dims) - 1):
        w, b = _init_linear(keys[i], dims[i], dims[i + 1])
        ws.append(w)
        bs.append(b)

    # Offline fusion of the (purely linear) surrogate stem into classifier
    # layer 1: x@Ws+bs then @W1+b1  ==  x@(Ws@W1) + (bs@W1 + b1).
    # Fuse in float32, then cast the streamed weight to bf16.
    w_stem, b_stem = ws[0], bs[0]
    w1, b1 = ws[1], bs[1]
    wf = (w_stem @ w1).astype(jnp.bfloat16)      # (in_features, 1024)
    bf = b_stem @ w1 + b1                        # (1, 1024) float32

    # Mid layers: bf16 weights, f32 biases.
    w2, w3, w4 = (w.astype(jnp.bfloat16) for w in ws[2:5])
    b2, b3, b4 = bs[2:5]

    # Tiny tail layers (128->64->32->16->8->num_classes): pack into one
    # zero-padded lane-dense block -> single DMA, unmasked 128-wide matmuls.
    wp = jnp.stack([_pad2(w.astype(jnp.bfloat16), 128, 128) for w in ws[5:]])
    bp = jnp.stack([_pad2(b, 1, 128) for b in bs[5:]])

    return (wf, bf, w2, b2, w3, b3, w4, b4, wp, bp)


# ---------------------------------------------------------------------------
# Main
# ---------------------------------------------------------------------------
if __name__ == "__main__":
    key = jax.random.PRNGKey(0)
    k_x, k_p = jax.random.split(key)

    B, C, H, W = 2, 3, 16, 16
    num_classes = 5

    x = jax.random.normal(k_x, (B, C, H, W), dtype=jnp.float32)
    params = build_params(k_p, C * H * W, num_classes)

    out = emotion_classifier_forward(x, params, num_classes)
    out = jax.block_until_ready(out)

    assert out.shape == (B, num_classes), out.shape
    assert bool(jnp.all(jnp.isfinite(out)))

    ref = reference_forward(x, params, num_classes)
    assert bool(jnp.allclose(out, ref, rtol=2e-2, atol=2e-2)), (
        float(jnp.max(jnp.abs(out - ref))))

    print("KERNEL_OK")
</pallas_src>

<mosaic_0001>
module attributes {stable_mosaic.version = 11 : i64} {
  func.func @_mlp_kernel(%arg0: i32, %arg1: i32, %arg2: memref<8x768xbf16, #tpu.memory_space<vmem>>, %arg3: memref<768x1024xbf16, #tpu.memory_space<vmem>>, %arg4: memref<1x1024xf32, #tpu.memory_space<vmem>>, %arg5: memref<1024x512xbf16, #tpu.memory_space<vmem>>, %arg6: memref<1x512xf32, #tpu.memory_space<vmem>>, %arg7: memref<512x256xbf16, #tpu.memory_space<vmem>>, %arg8: memref<1x256xf32, #tpu.memory_space<vmem>>, %arg9: memref<256x128xbf16, #tpu.memory_space<vmem>>, %arg10: memref<1x128xf32, #tpu.memory_space<vmem>>, %arg11: memref<5x128x128xbf16, #tpu.memory_space<vmem>>, %arg12: memref<5x1x128xf32, #tpu.memory_space<vmem>>, %arg13: memref<8x128xf32, #tpu.memory_space<vmem>>, %arg14: memref<8x1024xf32, #tpu.memory_space<vmem>>) attributes {dimension_semantics = [#tpu.dimension_semantics<parallel>, #tpu.dimension_semantics<arbitrary>], iteration_bounds = array<i64: 1, 1>, scalar_prefetch = 0 : i64, scratch_operands = 1 : i64, tpu.core_type = #tpu.core_type<tc>, window_params = [{transform_indices = @transform_0, window_bounds = array<i64: 8, 768>}, {transform_indices = @transform_1, window_bounds = array<i64: 768, 1024>}, {pipeline_mode = #tpu.pipeline_mode<synchronous>, transform_indices = @transform_2, window_bounds = array<i64: 1, 1024>}, {pipeline_mode = #tpu.pipeline_mode<synchronous>, transform_indices = @transform_3, window_bounds = array<i64: 1024, 512>}, {pipeline_mode = #tpu.pipeline_mode<synchronous>, transform_indices = @transform_4, window_bounds = array<i64: 1, 512>}, {pipeline_mode = #tpu.pipeline_mode<synchronous>, transform_indices = @transform_5, window_bounds = array<i64: 512, 256>}, {pipeline_mode = #tpu.pipeline_mode<synchronous>, transform_indices = @transform_6, window_bounds = array<i64: 1, 256>}, {pipeline_mode = #tpu.pipeline_mode<synchronous>, transform_indices = @transform_7, window_bounds = array<i64: 256, 128>}, {pipeline_mode = #tpu.pipeline_mode<synchronous>, transform_indices = @transform_8, window_bounds = array<i64: 1, 128>}, {pipeline_mode = #tpu.pipeline_mode<synchronous>, transform_indices = @transform_9, window_bounds = array<i64: 5, 128, 128>}, {pipeline_mode = #tpu.pipeline_mode<synchronous>, transform_indices = @transform_10, window_bounds = array<i64: 5, 1, 128>}, {transform_indices = @transform_11, window_bounds = array<i64: 8, 128>}]} {
    %c0_i32 = arith.constant 0 : i32
    %0 = arith.cmpi eq, %arg1, %c0_i32 : i32
    %1 = arith.extui %0 : i1 to i32
    %c0_i32_0 = arith.constant 0 : i32
    %2 = arith.cmpi ne, %1, %c0_i32_0 : i32
    scf.if %2 {
      %cst_10 = arith.constant 0.000000e+00 : f32
      %12 = vector.broadcast %cst_10 : f32 to vector<8x1024xf32>
      %c0_11 = arith.constant 0 : index
      %c0_12 = arith.constant 0 : index
      %13 = vector.load %arg14[%c0_11, %c0_12] : memref<8x1024xf32, #tpu.memory_space<vmem>>, vector<8x1024xf32>
      tpu.vector_store %arg14[%c0_11, %c0_12], %12 {strides = array<i32>} : memref<8x1024xf32, #tpu.memory_space<vmem>>, vector<8x1024xf32>,
    } else {
    }
    %c0 = arith.constant 0 : index
    %c0_1 = arith.constant 0 : index
    %3 = vector.load %arg14[%c0, %c0_1] : memref<8x1024xf32, #tpu.memory_space<vmem>>, vector<8x1024xf32>
    %c0_2 = arith.constant 0 : index
    %c0_3 = arith.constant 0 : index
    %4 = vector.load %arg2[%c0_2, %c0_3] : memref<8x768xbf16, #tpu.memory_space<vmem>>, vector<8x768xbf16>
    %c0_4 = arith.constant 0 : index
    %c0_5 = arith.constant 0 : index
    %5 = vector.load %arg3[%c0_4, %c0_5] : memref<768x1024xbf16, #tpu.memory_space<vmem>>, vector<768x1024xbf16>
    %cst = arith.constant dense<0.000000e+00> : vector<8x1024xf32>
    %6 = tpu.matmul %4, %5, %cst {dimension_numbers = #tpu.dot_dimension_numbers<[1], [0], [0], [1], [0, 0, 1, 1], [], []>} : vector<8x768xbf16>, vector<768x1024xbf16>, vector<8x1024xf32> -> vector<8x1024xf32>
    %7 = arith.addf %3, %6 : vector<8x1024xf32>
    %c0_6 = arith.constant 0 : index
    %c0_7 = arith.constant 0 : index
    %8 = vector.load %arg14[%c0_6, %c0_7] : memref<8x1024xf32, #tpu.memory_space<vmem>>, vector<8x1024xf32>
    tpu.vector_store %arg14[%c0_6, %c0_7], %7 {strides = array<i32>} : memref<8x1024xf32, #tpu.memory_space<vmem>>, vector<8x1024xf32>,
    %c0_i32_8 = arith.constant 0 : i32
    %9 = arith.cmpi eq, %arg1, %c0_i32_8 : i32
    %10 = arith.extui %9 : i1 to i32
    %c0_i32_9 = arith.constant 0 : i32
    %11 = arith.cmpi ne, %10, %c0_i32_9 : i32
    scf.if %11 {
      %c0_10 = arith.constant 0 : index
      %c0_11 = arith.constant 0 : index
      %12 = vector.load %arg14[%c0_10, %c0_11] : memref<8x1024xf32, #tpu.memory_space<vmem>>, vector<8x1024xf32>
      %c0_12 = arith.constant 0 : index
      %c0_13 = arith.constant 0 : index
      %13 = vector.load %arg4[%c0_12, %c0_13] : memref<1x1024xf32, #tpu.memory_space<vmem>>, vector<1x1024xf32>
      %14 = vector.broadcast %13 : vector<1x1024xf32> to vector<8x1024xf32>
      %15 = arith.addf %12, %14 : vector<8x1024xf32>
      %cst_14 = arith.constant 0.000000e+00 : f32
      %16 = vector.broadcast %cst_14 : f32 to vector<8x1024xf32>
      %17 = arith.maximumf %15, %16 : vector<8x1024xf32>
      %18 = arith.truncf %17 : vector<8x1024xf32> to vector<8x1024xbf16>
      %c0_15 = arith.constant 0 : index
      %c0_16 = arith.constant 0 : index
      %19 = vector.load %arg5[%c0_15, %c0_16] : memref<1024x512xbf16, #tpu.memory_space<vmem>>, vector<1024x512xbf16>
      %cst_17 = arith.constant dense<0.000000e+00> : vector<8x512xf32>
      %20 = tpu.matmul %18, %19, %cst_17 {dimension_numbers = #tpu.dot_dimension_numbers<[1], [0], [0], [1], [0, 0, 1, 1], [], []>} : vector<8x1024xbf16>, vector<1024x512xbf16>, vector<8x512xf32> -> vector<8x512xf32>
      %c0_18 = arith.constant 0 : index
      %c0_19 = arith.constant 0 : index
      %21 = vector.load %arg6[%c0_18, %c0_19] : memref<1x512xf32, #tpu.memory_space<vmem>>, vector<1x512xf32>
      %22 = vector.broadcast %21 : vector<1x512xf32> to vector<8x512xf32>
      %23 = arith.addf %20, %22 : vector<8x512xf32>
      %cst_20 = arith.constant 0.000000e+00 : f32
      %24 = vector.broadcast %cst_20 : f32 to vector<8x512xf32>
      %25 = arith.maximumf %23, %24 : vector<8x512xf32>
      %26 = arith.truncf %25 : vector<8x512xf32> to vector<8x512xbf16>
      %c0_21 = arith.constant 0 : index
      %c0_22 = arith.constant 0 : index
      %27 = vector.load %arg7[%c0_21, %c0_22] : memref<512x256xbf16, #tpu.memory_space<vmem>>, vector<512x256xbf16>
      %cst_23 = arith.constant dense<0.000000e+00> : vector<8x256xf32>
      %28 = tpu.matmul %26, %27, %cst_23 {dimension_numbers = #tpu.dot_dimension_numbers<[1], [0], [0], [1], [0, 0, 1, 1], [], []>} : vector<8x512xbf16>, vector<512x256xbf16>, vector<8x256xf32> -> vector<8x256xf32>
      %c0_24 = arith.constant 0 : index
      %c0_25 = arith.constant 0 : index
      %29 = vector.load %arg8[%c0_24, %c0_25] : memref<1x256xf32, #tpu.memory_space<vmem>>, vector<1x256xf32>
      %30 = vector.broadcast %29 : vector<1x256xf32> to vector<8x256xf32>
      %31 = arith.addf %28, %30 : vector<8x256xf32>
      %cst_26 = arith.constant 0.000000e+00 : f32
      %32 = vector.broadcast %cst_26 : f32 to vector<8x256xf32>
      %33 = arith.maximumf %31, %32 : vector<8x256xf32>
      %34 = arith.truncf %33 : vector<8x256xf32> to vector<8x256xbf16>
      %c0_27 = arith.constant 0 : index
      %c0_28 = arith.constant 0 : index
      %35 = vector.load %arg9[%c0_27, %c0_28] : memref<256x128xbf16, #tpu.memory_space<vmem>>, vector<256x128xbf16>
      %cst_29 = arith.constant dense<0.000000e+00> : vector<8x128xf32>
      %36 = tpu.matmul %34, %35, %cst_29 {dimension_numbers = #tpu.dot_dimension_numbers<[1], [0], [0], [1], [0, 0, 1, 1], [], []>} : vector<8x256xbf16>, vector<256x128xbf16>, vector<8x128xf32> -> vector<8x128xf32>
      %c0_30 = arith.constant 0 : index
      %c0_31 = arith.constant 0 : index
      %37 = vector.load %arg10[%c0_30, %c0_31] : memref<1x128xf32, #tpu.memory_space<vmem>>, vector<1x128xf32>
      %38 = vector.broadcast %37 : vector<1x128xf32> to vector<8x128xf32>
      %39 = arith.addf %36, %38 : vector<8x128xf32>
      %cst_32 = arith.constant 0.000000e+00 : f32
      %40 = vector.broadcast %cst_32 : f32 to vector<8x128xf32>
      %41 = arith.maximumf %39, %40 : vector<8x128xf32>
      %42 = arith.truncf %41 : vector<8x128xf32> to vector<8x128xbf16>
      %c0_33 = arith.constant 0 : index
      %c0_34 = arith.constant 0 : index
      %c0_35 = arith.constant 0 : index
      %43 = vector.load %arg11[%c0_33, %c0_34, %c0_35] : memref<5x128x128xbf16, #tpu.memory_space<vmem>>, vector<1x128x128xbf16>
      %44 = vector.shape_cast %43 : vector<1x128x128xbf16> to vector<128x128xbf16>
      %cst_36 = arith.constant dense<0.000000e+00> : vector<8x128xf32>
      %45 = tpu.matmul %42, %44, %cst_36 {dimension_numbers = #tpu.dot_dimension_numbers<[1], [0], [0], [1], [0, 0, 1, 1], [], []>} : vector<8x128xbf16>, vector<128x128xbf16>, vector<8x128xf32> -> vector<8x128xf32>
      %c0_37 = arith.constant 0 : index
      %c0_38 = arith.constant 0 : index
      %c0_39 = arith.constant 0 : index
      %46 = vector.load %arg12[%c0_37, %c0_38, %c0_39] : memref<5x1x128xf32, #tpu.memory_space<vmem>>, vector<1x1x128xf32>
      %47 = vector.shape_cast %46 : vector<1x1x128xf32> to vector<1x128xf32>
      %48 = vector.broadcast %47 : vector<1x128xf32> to vector<8x128xf32>
      %49 = arith.addf %45, %48 : vector<8x128xf32>
      %cst_40 = arith.constant 0.000000e+00 : f32
      %50 = vector.broadcast %cst_40 : f32 to vector<8x128xf32>
      %51 = arith.maximumf %49, %50 : vector<8x128xf32>
      %52 = arith.truncf %51 : vector<8x128xf32> to vector<8x128xbf16>
      %c1 = arith.constant 1 : index
      %c0_41 = arith.constant 0 : index
      %c0_42 = arith.constant 0 : index
      %53 = vector.load %arg11[%c1, %c0_41, %c0_42] : memref<5x128x128xbf16, #tpu.memory_space<vmem>>, vector<1x128x128xbf16>
      %54 = vector.shape_cast %53 : vector<1x128x128xbf16> to vector<128x128xbf16>
      %cst_43 = arith.constant dense<0.000000e+00> : vector<8x128xf32>
      %55 = tpu.matmul %52, %54, %cst_43 {dimension_numbers = #tpu.dot_dimension_numbers<[1], [0], [0], [1], [0, 0, 1, 1], [], []>} : vector<8x128xbf16>, vector<128x128xbf16>, vector<8x128xf32> -> vector<8x128xf32>
      %c1_44 = arith.constant 1 : index
      %c0_45 = arith.constant 0 : index
      %c0_46 = arith.constant 0 : index
      %56 = vector.load %arg12[%c1_44, %c0_45, %c0_46] : memref<5x1x128xf32, #tpu.memory_space<vmem>>, vector<1x1x128xf32>
      %57 = vector.shape_cast %56 : vector<1x1x128xf32> to vector<1x128xf32>
      %58 = vector.broadcast %57 : vector<1x128xf32> to vector<8x128xf32>
      %59 = arith.addf %55, %58 : vector<8x128xf32>
      %cst_47 = arith.constant 0.000000e+00 : f32
      %60 = vector.broadcast %cst_47 : f32 to vector<8x128xf32>
      %61 = arith.maximumf %59, %60 : vector<8x128xf32>
      %62 = arith.truncf %61 : vector<8x128xf32> to vector<8x128xbf16>
      %c2 = arith.constant 2 : index
      %c0_48 = arith.constant 0 : index
      %c0_49 = arith.constant 0 : index
      %63 = vector.load %arg11[%c2, %c0_48, %c0_49] : memref<5x128x128xbf16, #tpu.memory_space<vmem>>, vector<1x128x128xbf16>
      %64 = vector.shape_cast %63 : vector<1x128x128xbf16> to vector<128x128xbf16>
      %cst_50 = arith.constant dense<0.000000e+00> : vector<8x128xf32>
      %65 = tpu.matmul %62, %64, %cst_50 {dimension_numbers = #tpu.dot_dimension_numbers<[1], [0], [0], [1], [0, 0, 1, 1], [], []>} : vector<8x128xbf16>, vector<128x128xbf16>, vector<8x128xf32> -> vector<8x128xf32>
      %c2_51 = arith.constant 2 : index
      %c0_52 = arith.constant 0 : index
      %c0_53 = arith.constant 0 : index
      %66 = vector.load %arg12[%c2_51, %c0_52, %c0_53] : memref<5x1x128xf32, #tpu.memory_space<vmem>>, vector<1x1x128xf32>
      %67 = vector.shape_cast %66 : vector<1x1x128xf32> to vector<1x128xf32>
      %68 = vector.broadcast %67 : vector<1x128xf32> to vector<8x128xf32>
      %69 = arith.addf %65, %68 : vector<8x128xf32>
      %cst_54 = arith.constant 0.000000e+00 : f32
      %70 = vector.broadcast %cst_54 : f32 to vector<8x128xf32>
      %71 = arith.maximumf %69, %70 : vector<8x128xf32>
      %72 = arith.truncf %71 : vector<8x128xf32> to vector<8x128xbf16>
      %c3 = arith.constant 3 : index
      %c0_55 = arith.constant 0 : index
      %c0_56 = arith.constant 0 : index
      %73 = vector.load %arg11[%c3, %c0_55, %c0_56] : memref<5x128x128xbf16, #tpu.memory_space<vmem>>, vector<1x128x128xbf16>
      %74 = vector.shape_cast %73 : vector<1x128x128xbf16> to vector<128x128xbf16>
      %cst_57 = arith.constant dense<0.000000e+00> : vector<8x128xf32>
      %75 = tpu.matmul %72, %74, %cst_57 {dimension_numbers = #tpu.dot_dimension_numbers<[1], [0], [0], [1], [0, 0, 1, 1], [], []>} : vector<8x128xbf16>, vector<128x128xbf16>, vector<8x128xf32> -> vector<8x128xf32>
      %c3_58 = arith.constant 3 : index
      %c0_59 = arith.constant 0 : index
      %c0_60 = arith.constant 0 : index
      %76 = vector.load %arg12[%c3_58, %c0_59, %c0_60] : memref<5x1x128xf32, #tpu.memory_space<vmem>>, vector<1x1x128xf32>
      %77 = vector.shape_cast %76 : vector<1x1x128xf32> to vector<1x128xf32>
      %78 = vector.broadcast %77 : vector<1x128xf32> to vector<8x128xf32>
      %79 = arith.addf %75, %78 : vector<8x128xf32>
      %cst_61 = arith.constant 0.000000e+00 : f32
      %80 = vector.broadcast %cst_61 : f32 to vector<8x128xf32>
      %81 = arith.maximumf %79, %80 : vector<8x128xf32>
      %82 = arith.truncf %81 : vector<8x128xf32> to vector<8x128xbf16>
      %c4 = arith.constant 4 : index
      %c0_62 = arith.constant 0 : index
      %c0_63 = arith.constant 0 : index
      %83 = vector.load %arg11[%c4, %c0_62, %c0_63] : memref<5x128x128xbf16, #tpu.memory_space<vmem>>, vector<1x128x128xbf16>
      %84 = vector.shape_cast %83 : vector<1x128x128xbf16> to vector<128x128xbf16>
      %cst_64 = arith.constant dense<0.000000e+00> : vector<8x128xf32>
      %85 = tpu.matmul %82, %84, %cst_64 {dimension_numbers = #tpu.dot_dimension_numbers<[1], [0], [0], [1], [0, 0, 1, 1], [], []>} : vector<8x128xbf16>, vector<128x128xbf16>, vector<8x128xf32> -> vector<8x128xf32>
      %c4_65 = arith.constant 4 : index
      %c0_66 = arith.constant 0 : index
      %c0_67 = arith.constant 0 : index
      %86 = vector.load %arg12[%c4_65, %c0_66, %c0_67] : memref<5x1x128xf32, #tpu.memory_space<vmem>>, vector<1x1x128xf32>
      %87 = vector.shape_cast %86 : vector<1x1x128xf32> to vector<1x128xf32>
      %88 = vector.broadcast %87 : vector<1x128xf32> to vector<8x128xf32>
      %89 = arith.addf %85, %88 : vector<8x128xf32>
      %c0_68 = arith.constant 0 : index
      %c0_69 = arith.constant 0 : index
      %90 = vector.load %arg13[%c0_68, %c0_69] : memref<8x128xf32, #tpu.memory_space<vmem>>, vector<8x128xf32>
      tpu.vector_store %arg13[%c0_68, %c0_69], %89 {strides = array<i32>} : memref<8x128xf32, #tpu.memory_space<vmem>>, vector<8x128xf32>,
    } else {
    }
    return
  }
  func.func @transform_0(%arg0: i32, %arg1: i32) -> (i32, i32) {
    %c0_i32 = arith.constant 0 : i32
    return %arg0, %arg1 : i32, i32
  }
  func.func @transform_1(%arg0: i32, %arg1: i32) -> (i32, i32) {
    %c0_i32 = arith.constant 0 : i32
    %c0_i32_0 = arith.constant 0 : i32
    return %arg1, %c0_i32 : i32, i32
  }
  func.func @transform_2(%arg0: i32, %arg1: i32) -> (i32, i32) {
    %c0_i32 = arith.constant 0 : i32
    %c0_i32_0 = arith.constant 0 : i32
    %c0_i32_1 = arith.constant 0 : i32
    return %c0_i32, %c0_i32_0 : i32, i32
  }
  func.func @transform_3(%arg0: i32, %arg1: i32) -> (i32, i32) {
    %c0_i32 = arith.constant 0 : i32
    %c0_i32_0 = arith.constant 0 : i32
    %c0_i32_1 = arith.constant 0 : i32
    return %c0_i32, %c0_i32_0 : i32, i32
  }
  func.func @transform_4(%arg0: i32, %arg1: i32) -> (i32, i32) {
    %c0_i32 = arith.constant 0 : i32
    %c0_i32_0 = arith.constant 0 : i32
    %c0_i32_1 = arith.constant 0 : i32
    return %c0_i32, %c0_i32_0 : i32, i32
  }
  func.func @transform_5(%arg0: i32, %arg1: i32) -> (i32, i32) {
    %c0_i32 = arith.constant 0 : i32
    %c0_i32_0 = arith.constant 0 : i32
    %c0_i32_1 = arith.constant 0 : i32
    return %c0_i32, %c0_i32_0 : i32, i32
  }
  func.func @transform_6(%arg0: i32, %arg1: i32) -> (i32, i32) {
    %c0_i32 = arith.constant 0 : i32
    %c0_i32_0 = arith.constant 0 : i32
    %c0_i32_1 = arith.constant 0 : i32
    return %c0_i32, %c0_i32_0 : i32, i32
  }
  func.func @transform_7(%arg0: i32, %arg1: i32) -> (i32, i32) {
    %c0_i32 = arith.constant 0 : i32
    %c0_i32_0 = arith.constant 0 : i32
    %c0_i32_1 = arith.constant 0 : i32
    return %c0_i32, %c0_i32_0 : i32, i32
  }
  func.func @transform_8(%arg0: i32, %arg1: i32) -> (i32, i32) {
    %c0_i32 = arith.constant 0 : i32
    %c0_i32_0 = arith.constant 0 : i32
    %c0_i32_1 = arith.constant 0 : i32
    return %c0_i32, %c0_i32_0 : i32, i32
  }
  func.func @transform_9(%arg0: i32, %arg1: i32) -> (i32, i32, i32) {
    %c0_i32 = arith.constant 0 : i32
    %c0_i32_0 = arith.constant 0 : i32
    %c0_i32_1 = arith.constant 0 : i32
    %c0_i32_2 = arith.constant 0 : i32
    return %c0_i32, %c0_i32_0, %c0_i32_1 : i32, i32, i32
  }
  func.func @transform_10(%arg0: i32, %arg1: i32) -> (i32, i32, i32) {
    %c0_i32 = arith.constant 0 : i32
    %c0_i32_0 = arith.constant 0 : i32
    %c0_i32_1 = arith.constant 0 : i32
    %c0_i32_2 = arith.constant 0 : i32
    return %c0_i32, %c0_i32_0, %c0_i32_1 : i32, i32, i32
  }
  func.func @transform_11(%arg0: i32, %arg1: i32) -> (i32, i32) {
    %c0_i32 = arith.constant 0 : i32
    %c0_i32_0 = arith.constant 0 : i32
    return %arg0, %c0_i32 : i32, i32
  }
}

</mosaic_0001>

<llo_original>
// kernel: tpu_custom_call.1
$region0: #{tpu_custom_call.1}
  #allocation0 [shape = 'u32[]', space=smem, size = 0x4, offset = 0x4, fixed_abs, tag = 'smem constant byte address 0x4 - core index']
  #allocation1 [shape = 'u32[144,128]{1,0:T(1,128)}', space=vmem, size = 0x12000, scoped, tag = 'internal scratch']
  #allocation2 [shape = 'f32[8,1024]{1,0:T(8,128)}', space=vmem, size = 0x8000, scoped, tag = 'scratch operand']
  %s0 = inlined_call_operand.hbm [shape: bf16[8,768], index: 0, kind: input, shape index: {}]
  %s1 = inlined_call_operand.hbm [shape: bf16[768,1024], index: 1, kind: input, shape index: {}]
  %s2 = inlined_call_operand.hbm [shape: f32[1,1024], index: 2, kind: input, shape index: {}]
  %s3 = inlined_call_operand.hbm [shape: bf16[1024,512], index: 3, kind: input, shape index: {}]
  %s4 = inlined_call_operand.hbm [shape: f32[1,512], index: 4, kind: input, shape index: {}]
  %s5 = inlined_call_operand.hbm [shape: bf16[512,256], index: 5, kind: input, shape index: {}]
  %s6 = inlined_call_operand.hbm [shape: f32[1,256], index: 6, kind: input, shape index: {}]
  %s7 = inlined_call_operand.hbm [shape: bf16[256,128], index: 7, kind: input, shape index: {}]
  %s8 = inlined_call_operand.hbm [shape: f32[1,128], index: 8, kind: input, shape index: {}]
  %s9 = inlined_call_operand.hbm [shape: bf16[5,128,128], index: 9, kind: input, shape index: {}]
  %s10 = inlined_call_operand.hbm [shape: f32[5,1,128], index: 10, kind: input, shape index: {}]
  %s11 = inlined_call_operand.hbm [shape: f32[8,128], index: 11, kind: output, shape index: {}]
  %s12 = sld [smem:[#allocation0]]
  $region106: #{tpu_custom_call.1} parent=0
    _
  %s14 = ssub.s32 1, %s12
  %s15 = scalar_select 0, %s14, %s12
  $region1: #{tpu_custom_call.1} parent=0
    #allocation3 [shape = 'u8[12288]{0}', space=vmem, size = 0x3000, scoped, tag = 'input window, operand 0, single buffered']
    #allocation4 [shape = 's32[1]{0}', space=sflag, size = 0x4, scoped, tag = 'scoped memory for tpu_custom_call.1']
    #allocation5 [shape = 's32[1]{0}', space=sflag, size = 0x4, scoped, tag = 'scoped memory for tpu_custom_call.1']
    #allocation6 [shape = 'u8[1572864]{0}', space=vmem, size = 0x180000, scoped, tag = 'input window, operand 1, single buffered']
    #allocation7 [shape = 's32[1]{0}', space=sflag, size = 0x4, scoped, tag = 'scoped memory for tpu_custom_call.1']
    #allocation8 [shape = 'u8[4096]{0}', space=vmem, size = 0x1000, scoped, tag = 'input window, operand 2, single buffered']
    #allocation9 [shape = 'u8[1048576]{0}', space=vmem, size = 0x100000, scoped, tag = 'input window, operand 3, single buffered']
    #allocation10 [shape = 's32[1]{0}', space=sflag, size = 0x4, scoped, tag = 'scoped memory for tpu_custom_call.1']
    #allocation11 [shape = 'u8[2048]{0}', space=vmem, size = 0x800, scoped, tag = 'input window, operand 4, single buffered']
    #allocation12 [shape = 'u8[262144]{0}', space=vmem, size = 0x40000, scoped, tag = 'input window, operand 5, single buffered']
    #allocation13 [shape = 's32[1]{0}', space=sflag, size = 0x4, scoped, tag = 'scoped memory for tpu_custom_call.1']
    #allocation14 [shape = 'u8[1024]{0}', space=vmem, size = 0x400, scoped, tag = 'input window, operand 6, single buffered']
    #allocation15 [shape = 'u8[65536]{0}', space=vmem, size = 0x10000, scoped, tag = 'input window, operand 7, single buffered']
    #allocation16 [shape = 's32[1]{0}', space=sflag, size = 0x4, scoped, tag = 'scoped memory for tpu_custom_call.1']
    #allocation17 [shape = 'u8[512]{0}', space=vmem, size = 0x400, scoped, tag = 'input window, operand 8, single buffered']
    #allocation18 [shape = 'u8[163840]{0}', space=vmem, size = 0x28000, scoped, tag = 'input window, operand 9, single buffered']
    #allocation19 [shape = 's32[1]{0}', space=sflag, size = 0x4, scoped, tag = 'scoped memory for tpu_custom_call.1']
    #allocation20 [shape = 'u8[2560]{0}', space=vmem, size = 0xc00, scoped, tag = 'input window, operand 10, single buffered']
    #allocation21 [shape = 'u8[4096]{0}', space=vmem, size = 0x1000, scoped, tag = 'output window, operand 0, single buffered']
    %16 = vsyncpa [#allocation4], 0
    %17 = vsyncpa [#allocation7], 0
    %18 = vsyncpa [#allocation10], 0
    %19 = vsyncpa [#allocation13], 0
    %20 = vsyncpa [#allocation16], 0
    %21 = vsyncpa [#allocation19], 0
    %22 = vsyncpa [#allocation5], 0
    // Predicated region
    $region2: #{tpu_custom_call.1} parent=1 // pred_check
      _
    $region3: #{tpu_custom_call.1} parent=1 // pred_check_branch
      %24 = sbr.rel (0) target = $region5
    $region4: #{tpu_custom_call.1} parent=1 // pred_region
      %s26 = ssub.s32 384, 384
      %27 = vsyncadd [#allocation4], %s26
      %s29 = sshll.u32 [#allocation3], 4
      %s30 = int_to_ptr.vmem [resolvable:$true] %s29
      %32 = dma.hbm_to_vmem [thread:$0]  %s0, 384, %s30, [#allocation4]
    $region5: #{tpu_custom_call.1} parent=1 // pred_fallthru
      _
    // Predicated region
    $region6: #{tpu_custom_call.1} parent=1 // pred_check
      _
    $region7: #{tpu_custom_call.1} parent=1 // pred_check_branch
      %34 = sbr.rel (0) target = $region9
    $region8: #{tpu_custom_call.1} parent=1 // pred_region
      %s36 = ssub.s32 49152, 49152
      %37 = vsyncadd [#allocation7], %s36
      %s38 = sshll.u32 [#allocation6], 4
      %s39 = int_to_ptr.vmem [resolvable:$true] %s38
      %44 = dma.hbm_to_vmem [thread:$0]  %s1, 49152, %s39, [#allocation7], 512, 512, 32
    $region9: #{tpu_custom_call.1} parent=1 // pred_fallthru
      _
    // Predicated region
    $region10: #{tpu_custom_call.1} parent=1 // pred_check
      _
    $region11: #{tpu_custom_call.1} parent=1 // pred_check_branch
      %46 = sbr.rel (0) target = $region13
    $region12: #{tpu_custom_call.1} parent=1 // pred_region
      %s48 = ssub.s32 128, 128
      %49 = vsyncadd [#allocation7], %s48
      %s51 = sshll.u32 [#allocation8], 4
      %s52 = int_to_ptr.vmem [resolvable:$true] %s51
      %54 = dma.hbm_to_vmem [thread:$0]  %s2, 128, %s52, [#allocation7]
    $region13: #{tpu_custom_call.1} parent=1 // pred_fallthru
      _
    // Predicated region
    $region14: #{tpu_custom_call.1} parent=1 // pred_check
      _
    $region15: #{tpu_custom_call.1} parent=1 // pred_check_branch
      %56 = sbr.rel (0) target = $region17
    $region16: #{tpu_custom_call.1} parent=1 // pred_region
      %s58 = ssub.s32 32768, 32768
      %59 = vsyncadd [#allocation10], %s58
      %s60 = sshll.u32 [#allocation9], 4
      %s61 = int_to_ptr.vmem [resolvable:$true] %s60
      %66 = dma.hbm_to_vmem [thread:$0]  %s3, 32768, %s61, [#allocation10], 256, 256, 16
    $region17: #{tpu_custom_call.1} parent=1 // pred_fallthru
      _
    // Predicated region
    $region18: #{tpu_custom_call.1} parent=1 // pred_check
      _
    $region19: #{tpu_custom_call.1} parent=1 // pred_check_branch
      %68 = sbr.rel (0) target = $region21
    $region20: #{tpu_custom_call.1} parent=1 // pred_region
      %s70 = ssub.s32 64, 64
      %71 = vsyncadd [#allocation10], %s70
      %s73 = sshll.u32 [#allocation11], 4
      %s74 = int_to_ptr.vmem [resolvable:$true] %s73
      %76 = dma.hbm_to_vmem [thread:$0]  %s4, 64, %s74, [#allocation10]
    $region21: #{tpu_custom_call.1} parent=1 // pred_fallthru
      _
    // Predicated region
    $region22: #{tpu_custom_call.1} parent=1 // pred_check
      _
    $region23: #{tpu_custom_call.1} parent=1 // pred_check_branch
      %78 = sbr.rel (0) target = $region25
    $region24: #{tpu_custom_call.1} parent=1 // pred_region
      %s80 = ssub.s32 8192, 8192
      %81 = vsyncadd [#allocation13], %s80
      %s82 = sshll.u32 [#allocation12], 4
      %s83 = int_to_ptr.vmem [resolvable:$true] %s82
      %88 = dma.hbm_to_vmem [thread:$0]  %s5, 8192, %s83, [#allocation13], 128, 128, 8
    $region25: #{tpu_custom_call.1} parent=1 // pred_fallthru
      _
    // Predicated region
    $region26: #{tpu_custom_call.1} parent=1 // pred_check
      _
    $region27: #{tpu_custom_call.1} parent=1 // pred_check_branch
      %90 = sbr.rel (0) target = $region29
    $region28: #{tpu_custom_call.1} parent=1 // pred_region
      %s92 = ssub.s32 32, 32
      %93 = vsyncadd [#allocation13], %s92
      %s95 = sshll.u32 [#allocation14], 4
      %s96 = int_to_ptr.vmem [resolvable:$true] %s95
      %98 = dma.hbm_to_vmem [thread:$0]  %s6, 32, %s96, [#allocation13]
    $region29: #{tpu_custom_call.1} parent=1 // pred_fallthru
      _
    // Predicated region
    $region30: #{tpu_custom_call.1} parent=1 // pred_check
      _
    $region31: #{tpu_custom_call.1} parent=1 // pred_check_branch
      %100 = sbr.rel (0) target = $region33
    $region32: #{tpu_custom_call.1} parent=1 // pred_region
      %s102 = ssub.s32 2048, 2048
      %103 = vsyncadd [#allocation16], %s102
      %s104 = sshll.u32 [#allocation15], 4
      %s105 = int_to_ptr.vmem [resolvable:$true] %s104
      %110 = dma.hbm_to_vmem [thread:$0]  %s7, 2048, %s105, [#allocation16], 64, 64, 4
    $region33: #{tpu_custom_call.1} parent=1 // pred_fallthru
      _
    // Predicated region
    $region34: #{tpu_custom_call.1} parent=1 // pred_check
      _
    $region35: #{tpu_custom_call.1} parent=1 // pred_check_branch
      %112 = sbr.rel (0) target = $region37
    $region36: #{tpu_custom_call.1} parent=1 // pred_region
      %s114 = ssub.s32 16, 16
      %115 = vsyncadd [#allocation16], %s114
      %s117 = sshll.u32 [#allocation17], 4
      %s118 = int_to_ptr.vmem [resolvable:$true] %s117
      %120 = dma.hbm_to_vmem [thread:$0]  %s8, 16, %s118, [#allocation16]
    $region37: #{tpu_custom_call.1} parent=1 // pred_fallthru
      _
    // Predicated region
    $region38: #{tpu_custom_call.1} parent=1 // pred_check
      _
    $region39: #{tpu_custom_call.1} parent=1 // pred_check_branch
      %122 = sbr.rel (0) target = $region41
    $region40: #{tpu_custom_call.1} parent=1 // pred_region
      %s124 = ssub.s32 5120, 5120
      %125 = vsyncadd [#allocation19], %s124
      %s126 = sshll.u32 [#allocation18], 4
      %s127 = int_to_ptr.vmem [resolvable:$true] %s126
      %132 = dma.hbm_to_vmem [thread:$0]  %s9, 5120, %s127, [#allocation19], 64, 64, 4
    $region41: #{tpu_custom_call.1} parent=1 // pred_fallthru
      _
    // Predicated region
    $region42: #{tpu_custom_call.1} parent=1 // pred_check
      _
    $region43: #{tpu_custom_call.1} parent=1 // pred_check_branch
      %134 = sbr.rel (0) target = $region45
    $region44: #{tpu_custom_call.1} parent=1 // pred_region
      %s136 = ssub.s32 80, 80
      %137 = vsyncadd [#allocation19], %s136
      %s138 = sshll.u32 [#allocation20], 4
      %s139 = int_to_ptr.vmem [resolvable:$true] %s138
      %144 = dma.hbm_to_vmem [thread:$0]  %s10, 80, %s139, [#allocation19], 16, 16, 1
    $region45: #{tpu_custom_call.1} parent=1 // pred_fallthru
      _
    // Predicated region
    $region46: #{tpu_custom_call.1} parent=1 // pred_check
      _
    $region47: #{tpu_custom_call.1} parent=1 // pred_check_branch
      %146 = sbr.rel (0) target = $region49
    $region48: #{tpu_custom_call.1} parent=1 // pred_region
      %147 = dma.done [#allocation4], 384
    $region49: #{tpu_custom_call.1} parent=1 // pred_fallthru
      _
    // Predicated region
    $region50: #{tpu_custom_call.1} parent=1 // pred_check
      _
    $region51: #{tpu_custom_call.1} parent=1 // pred_check_branch
      %149 = sbr.rel (0) target = $region53
    $region52: #{tpu_custom_call.1} parent=1 // pred_region
      %150 = dma.done [#allocation7], 49152
    $region53: #{tpu_custom_call.1} parent=1 // pred_fallthru
      _
    // Predicated region
    $region54: #{tpu_custom_call.1} parent=1 // pred_check
      _
    $region55: #{tpu_custom_call.1} parent=1 // pred_check_branch
      %152 = sbr.rel (0) target = $region57
    $region56: #{tpu_custom_call.1} parent=1 // pred_region
      %153 = dma.done [#allocation7], 128
    $region57: #{tpu_custom_call.1} parent=1 // pred_fallthru
      _
    // Predicated region
    $region58: #{tpu_custom_call.1} parent=1 // pred_check
      _
    $region59: #{tpu_custom_call.1} parent=1 // pred_check_branch
      %155 = sbr.rel (0) target = $region61
    $region60: #{tpu_custom_call.1} parent=1 // pred_region
      %156 = dma.done [#allocation10], 32768
    $region61: #{tpu_custom_call.1} parent=1 // pred_fallthru
      _
    // Predicated region
    $region62: #{tpu_custom_call.1} parent=1 // pred_check
      _
    $region63: #{tpu_custom_call.1} parent=1 // pred_check_branch
      %158 = sbr.rel (0) target = $region65
    $region64: #{tpu_custom_call.1} parent=1 // pred_region
      %159 = dma.done [#allocation10], 64
    $region65: #{tpu_custom_call.1} parent=1 // pred_fallthru
      _
    // Predicated region
    $region66: #{tpu_custom_call.1} parent=1 // pred_check
      _
    $region67: #{tpu_custom_call.1} parent=1 // pred_check_branch
      %161 = sbr.rel (0) target = $region69
    $region68: #{tpu_custom_call.1} parent=1 // pred_region
      %162 = dma.done [#allocation13], 8192
    $region69: #{tpu_custom_call.1} parent=1 // pred_fallthru
      _
    // Predicated region
    $region70: #{tpu_custom_call.1} parent=1 // pred_check
      _
    $region71: #{tpu_custom_call.1} parent=1 // pred_check_branch
      %164 = sbr.rel (0) target = $region73
    $region72: #{tpu_custom_call.1} parent=1 // pred_region
      %165 = dma.done [#allocation13], 32
    $region73: #{tpu_custom_call.1} parent=1 // pred_fallthru
      _
    // Predicated region
    $region74: #{tpu_custom_call.1} parent=1 // pred_check
      _
    $region75: #{tpu_custom_call.1} parent=1 // pred_check_branch
      %167 = sbr.rel (0) target = $region77
    $region76: #{tpu_custom_call.1} parent=1 // pred_region
      %168 = dma.done [#allocation16], 2048
    $region77: #{tpu_custom_call.1} parent=1 // pred_fallthru
      _
    // Predicated region
    $region78: #{tpu_custom_call.1} parent=1 // pred_check
      _
    $region79: #{tpu_custom_call.1} parent=1 // pred_check_branch
      %170 = sbr.rel (0) target = $region81
    $region80: #{tpu_custom_call.1} parent=1 // pred_region
      %171 = dma.done [#allocation16], 16
    $region81: #{tpu_custom_call.1} parent=1 // pred_fallthru
      _
    // Predicated region
    $region82: #{tpu_custom_call.1} parent=1 // pred_check
      _
    $region83: #{tpu_custom_call.1} parent=1 // pred_check_branch
      %173 = sbr.rel (0) target = $region85
    $region84: #{tpu_custom_call.1} parent=1 // pred_region
      %174 = dma.done [#allocation19], 5120
    $region85: #{tpu_custom_call.1} parent=1 // pred_fallthru
      _
    // Predicated region
    $region86: #{tpu_custom_call.1} parent=1 // pred_check
      _
    $region87: #{tpu_custom_call.1} parent=1 // pred_check_branch
      %176 = sbr.rel (0) target = $region89
    $region88: #{tpu_custom_call.1} parent=1 // pred_region
      %177 = dma.done [#allocation19], 80
    $region89: #{tpu_custom_call.1} parent=1 // pred_fallthru
      _
    %p179 = scmp.eq.s32.totalorder 0, 0
    // Predicated region
    $region90: #{tpu_custom_call.1} parent=1 // pred_check
      %p180 = pneg %p179
    $region91: #{tpu_custom_call.1} parent=1 // pred_check_branch
      %182 = sbr.rel (%p180) target = $region93
    $region92: #{tpu_custom_call.1} parent=1 // pred_region
      %183 = vst [vmem:[#allocation2] sm:$0xff] 0.0
      %184 = vst [vmem:[#allocation2 + $0x8] sm:$0xff] 0.0
      %185 = vst [vmem:[#allocation2 + $0x10] sm:$0xff] 0.0
      %186 = vst [vmem:[#allocation2 + $0x18] sm:$0xff] 0.0
      %187 = vst [vmem:[#allocation2 + $0x20] sm:$0xff] 0.0
      %188 = vst [vmem:[#allocation2 + $0x28] sm:$0xff] 0.0
      %189 = vst [vmem:[#allocation2 + $0x30] sm:$0xff] 0.0
      %190 = vst [vmem:[#allocation2 + $0x38] sm:$0xff] 0.0
    $region93: #{tpu_custom_call.1} parent=1 // pred_fallthru
      _
    %v191 = vld [vmem:[#allocation2] sm:$0xff]
    %v192 = vld [vmem:[#allocation2 + $0x8] sm:$0xff]
    %v193 = vld [vmem:[#allocation2 + $0x10] sm:$0xff]
    %v194 = vld [vmem:[#allocation2 + $0x18] sm:$0xff]
    %v195 = vld [vmem:[#allocation2 + $0x20] sm:$0xff]
    %v196 = vld [vmem:[#allocation2 + $0x28] sm:$0xff]
    %v197 = vld [vmem:[#allocation2 + $0x30] sm:$0xff]
    %v198 = vld [vmem:[#allocation2 + $0x38] sm:$0xff]
    %v199 = vld [vmem:[#allocation3] sm:$0xff]
    %v200 = vld [vmem:[#allocation3 + $0x8] sm:$0xff]
    %v201 = vld [vmem:[#allocation3 + $0x10] sm:$0xff]
    %v202 = vld [vmem:[#allocation6] sm:$0xff]
    %v203 = vld [vmem:[#allocation6 + $0x8] sm:$0xff]
    %v204 = vld [vmem:[#allocation6 + $0x10] sm:$0xff]
    %v205 = vld [vmem:[#allocation6 + $0x18] sm:$0xff]
    %v206 = vld [vmem:[#allocation6 + $0x20] sm:$0xff]
    %v207 = vld [vmem:[#allocation6 + $0x28] sm:$0xff]
    %v208 = vld [vmem:[#allocation6 + $0x30] sm:$0xff]
    %v209 = vld [vmem:[#allocation6 + $0x38] sm:$0xff]
    %v210 = vld [vmem:[#allocation6 + $0x40] sm:$0xff]
    %v211 = vld [vmem:[#allocation6 + $0x48] sm:$0xff]
    %v212 = vld [vmem:[#allocation6 + $0x50] sm:$0xff]
    %v213 = vld [vmem:[#allocation6 + $0x58] sm:$0xff]
    %v214 = vld [vmem:[#allocation6 + $0x60] sm:$0xff]
    %v215 = vld [vmem:[#allocation6 + $0x68] sm:$0xff]
    %v216 = vld [vmem:[#allocation6 + $0x70] sm:$0xff]
    %v217 = vld [vmem:[#allocation6 + $0x78] sm:$0xff]
    %v218 = vld [vmem:[#allocation6 + $0x80] sm:$0xff]
    %v219 = vld [vmem:[#allocation6 + $0x88] sm:$0xff]
    %v220 = vld [vmem:[#allocation6 + $0x90] sm:$0xff]
    %v221 = vld [vmem:[#allocation6 + $0x98] sm:$0xff]
    %v222 = vld [vmem:[#allocation6 + $0xa0] sm:$0xff]
    %v223 = vld [vmem:[#allocation6 + $0xa8] sm:$0xff]
    %v224 = vld [vmem:[#allocation6 + $0xb0] sm:$0xff]
    %v225 = vld [vmem:[#allocation6 + $0xb8] sm:$0xff]
    %v226 = vld [vmem:[#allocation6 + $0xc0] sm:$0xff]
    %v227 = vld [vmem:[#allocation6 + $0xc8] sm:$0xff]
    %v228 = vld [vmem:[#allocation6 + $0xd0] sm:$0xff]
    %v229 = vld [vmem:[#allocation6 + $0xd8] sm:$0xff]
    %v230 = vld [vmem:[#allocation6 + $0xe0] sm:$0xff]
    %v231 = vld [vmem:[#allocation6 + $0xe8] sm:$0xff]
    %v232 = vld [vmem:[#allocation6 + $0xf0] sm:$0xff]
    %v233 = vld [vmem:[#allocation6 + $0xf8] sm:$0xff]
    %v234 = vld [vmem:[#allocation6 + $0x100] sm:$0xff]
    %v235 = vld [vmem:[#allocation6 + $0x108] sm:$0xff]
    %v236 = vld [vmem:[#allocation6 + $0x110] sm:$0xff]
    %v237 = vld [vmem:[#allocation6 + $0x118] sm:$0xff]
    %v238 = vld [vmem:[#allocation6 + $0x120] sm:$0xff]
    %v239 = vld [vmem:[#allocation6 + $0x128] sm:$0xff]
    %v240 = vld [vmem:[#allocation6 + $0x130] sm:$0xff]
    %v241 = vld [vmem:[#allocation6 + $0x138] sm:$0xff]
    %v242 = vld [vmem:[#allocation6 + $0x140] sm:$0xff]
    %v243 = vld [vmem:[#allocation6 + $0x148] sm:$0xff]
    %v244 = vld [vmem:[#allocation6 + $0x150] sm:$0xff]
    %v245 = vld [vmem:[#allocation6 + $0x158] sm:$0xff]
    %v246 = vld [vmem:[#allocation6 + $0x160] sm:$0xff]
    %v247 = vld [vmem:[#allocation6 + $0x168] sm:$0xff]
    %v248 = vld [vmem:[#allocation6 + $0x170] sm:$0xff]
    %v249 = vld [vmem:[#allocation6 + $0x178] sm:$0xff]
    %v250 = vld [vmem:[#allocation6 + $0x180] sm:$0xff]
    %v251 = vld [vmem:[#allocation6 + $0x188] sm:$0xff]
    %v252 = vld [vmem:[#allocation6 + $0x190] sm:$0xff]
    %v253 = vld [vmem:[#allocation6 + $0x198] sm:$0xff]
    %v254 = vld [vmem:[#allocation6 + $0x1a0] sm:$0xff]
    %v255 = vld [vmem:[#allocation6 + $0x1a8] sm:$0xff]
    %v256 = vld [vmem:[#allocation6 + $0x1b0] sm:$0xff]
    %v257 = vld [vmem:[#allocation6 + $0x1b8] sm:$0xff]
    %v258 = vld [vmem:[#allocation6 + $0x1c0] sm:$0xff]
    %v259 = vld [vmem:[#allocation6 + $0x1c8] sm:$0xff]
    %v260 = vld [vmem:[#allocation6 + $0x1d0] sm:$0xff]
    %v261 = vld [vmem:[#allocation6 + $0x1d8] sm:$0xff]
    %v262 = vld [vmem:[#allocation6 + $0x1e0] sm:$0xff]
    %v263 = vld [vmem:[#allocation6 + $0x1e8] sm:$0xff]
    %v264 = vld [vmem:[#allocation6 + $0x1f0] sm:$0xff]
    %v265 = vld [vmem:[#allocation6 + $0x1f8] sm:$0xff]
    %v266 = vld [vmem:[#allocation6 + $0x200] sm:$0xff]
    %v267 = vld [vmem:[#allocation6 + $0x208] sm:$0xff]
    %v268 = vld [vmem:[#allocation6 + $0x210] sm:$0xff]
    %v269 = vld [vmem:[#allocation6 + $0x218] sm:$0xff]
    %v270 = vld [vmem:[#allocation6 + $0x220] sm:$0xff]
    %v271 = vld [vmem:[#allocation6 + $0x228] sm:$0xff]
    %v272 = vld [vmem:[#allocation6 + $0x230] sm:$0xff]
    %v273 = vld [vmem:[#allocation6 + $0x238] sm:$0xff]
    %v274 = vld [vmem:[#allocation6 + $0x240] sm:$0xff]
    %v275 = vld [vmem:[#allocation6 + $0x248] sm:$0xff]
    %v276 = vld [vmem:[#allocation6 + $0x250] sm:$0xff]
    %v277 = vld [vmem:[#allocation6 + $0x258] sm:$0xff]
    %v278 = vld [vmem:[#allocation6 + $0x260] sm:$0xff]
    %v279 = vld [vmem:[#allocation6 + $0x268] sm:$0xff]
    %v280 = vld [vmem:[#allocation6 + $0x270] sm:$0xff]
    %v281 = vld [vmem:[#allocation6 + $0x278] sm:$0xff]
    %v282 = vld [vmem:[#allocation6 + $0x280] sm:$0xff]
    %v283 = vld [vmem:[#allocation6 + $0x288] sm:$0xff]
    %v284 = vld [vmem:[#allocation6 + $0x290] sm:$0xff]
    %v285 = vld [vmem:[#allocation6 + $0x298] sm:$0xff]
    %v286 = vld [vmem:[#allocation6 + $0x2a0] sm:$0xff]
    %v287 = vld [vmem:[#allocation6 + $0x2a8] sm:$0xff]
    %v288 = vld [vmem:[#allocation6 + $0x2b0] sm:$0xff]
    %v289 = vld [vmem:[#allocation6 + $0x2b8] sm:$0xff]
    %v290 = vld [vmem:[#allocation6 + $0x2c0] sm:$0xff]
    %v291 = vld [vmem:[#allocation6 + $0x2c8] sm:$0xff]
    %v292 = vld [vmem:[#allocation6 + $0x2d0] sm:$0xff]
    %v293 = vld [vmem:[#allocation6 + $0x2d8] sm:$0xff]
    %v294 = vld [vmem:[#allocation6 + $0x2e0] sm:$0xff]
    %v295 = vld [vmem:[#allocation6 + $0x2e8] sm:$0xff]
    %v296 = vld [vmem:[#allocation6 + $0x2f0] sm:$0xff]
    %v297 = vld [vmem:[#allocation6 + $0x2f8] sm:$0xff]
    %v298 = vld [vmem:[#allocation6 + $0x300] sm:$0xff]
    %v299 = vld [vmem:[#allocation6 + $0x308] sm:$0xff]
    %v300 = vld [vmem:[#allocation6 + $0x310] sm:$0xff]
    %v301 = vld [vmem:[#allocation6 + $0x318] sm:$0xff]
    %v302 = vld [vmem:[#allocation6 + $0x320] sm:$0xff]
    %v303 = vld [vmem:[#allocation6 + $0x328] sm:$0xff]
    %v304 = vld [vmem:[#allocation6 + $0x330] sm:$0xff]
    %v305 = vld [vmem:[#allocation6 + $0x338] sm:$0xff]
    %v306 = vld [vmem:[#allocation6 + $0x340] sm:$0xff]
    %v307 = vld [vmem:[#allocation6 + $0x348] sm:$0xff]
    %v308 = vld [vmem:[#allocation6 + $0x350] sm:$0xff]
    %v309 = vld [vmem:[#allocation6 + $0x358] sm:$0xff]
    %v310 = vld [vmem:[#allocation6 + $0x360] sm:$0xff]
    %v311 = vld [vmem:[#allocation6 + $0x368] sm:$0xff]
    %v312 = vld [vmem:[#allocation6 + $0x370] sm:$0xff]
    %v313 = vld [vmem:[#allocation6 + $0x378] sm:$0xff]
    %v314 = vld [vmem:[#allocation6 + $0x380] sm:$0xff]
    %v315 = vld [vmem:[#allocation6 + $0x388] sm:$0xff]
    %v316 = vld [vmem:[#allocation6 + $0x390] sm:$0xff]
    %v317 = vld [vmem:[#allocation6 + $0x398] sm:$0xff]
    %v318 = vld [vmem:[#allocation6 + $0x3a0] sm:$0xff]
    %v319 = vld [vmem:[#allocation6 + $0x3a8] sm:$0xff]
    %v320 = vld [vmem:[#allocation6 + $0x3b0] sm:$0xff]
    %v321 = vld [vmem:[#allocation6 + $0x3b8] sm:$0xff]
    %v322 = vld [vmem:[#allocation6 + $0x3c0] sm:$0xff]
    %v323 = vld [vmem:[#allocation6 + $0x3c8] sm:$0xff]
    %v324 = vld [vmem:[#allocation6 + $0x3d0] sm:$0xff]
    %v325 = vld [vmem:[#allocation6 + $0x3d8] sm:$0xff]
    %v326 = vld [vmem:[#allocation6 + $0x3e0] sm:$0xff]
    %v327 = vld [vmem:[#allocation6 + $0x3e8] sm:$0xff]
    %v328 = vld [vmem:[#allocation6 + $0x3f0] sm:$0xff]
    %v329 = vld [vmem:[#allocation6 + $0x3f8] sm:$0xff]
    %v330 = vld [vmem:[#allocation6 + $0x400] sm:$0xff]
    %v331 = vld [vmem:[#allocation6 + $0x408] sm:$0xff]
    %v332 = vld [vmem:[#allocation6 + $0x410] sm:$0xff]
    %v333 = vld [vmem:[#allocation6 + $0x418] sm:$0xff]
    %v334 = vld [vmem:[#allocation6 + $0x420] sm:$0xff]
    %v335 = vld [vmem:[#allocation6 + $0x428] sm:$0xff]
    %v336 = vld [vmem:[#allocation6 + $0x430] sm:$0xff]
    %v337 = vld [vmem:[#allocation6 + $0x438] sm:$0xff]
    %v338 = vld [vmem:[#allocation6 + $0x440] sm:$0xff]
    %v339 = vld [vmem:[#allocation6 + $0x448] sm:$0xff]
    %v340 = vld [vmem:[#allocation6 + $0x450] sm:$0xff]
    %v341 = vld [vmem:[#allocation6 + $0x458] sm:$0xff]
    %v342 = vld [vmem:[#allocation6 + $0x460] sm:$0xff]
    %v343 = vld [vmem:[#allocation6 + $0x468] sm:$0xff]
    %v344 = vld [vmem:[#allocation6 + $0x470] sm:$0xff]
    %v345 = vld [vmem:[#allocation6 + $0x478] sm:$0xff]
    %v346 = vld [vmem:[#allocation6 + $0x480] sm:$0xff]
    %v347 = vld [vmem:[#allocation6 + $0x488] sm:$0xff]
    %v348 = vld [vmem:[#allocation6 + $0x490] sm:$0xff]
    %v349 = vld [vmem:[#allocation6 + $0x498] sm:$0xff]
    %v350 = vld [vmem:[#allocation6 + $0x4a0] sm:$0xff]
    %v351 = vld [vmem:[#allocation6 + $0x4a8] sm:$0xff]
    %v352 = vld [vmem:[#allocation6 + $0x4b0] sm:$0xff]
    %v353 = vld [vmem:[#allocation6 + $0x4b8] sm:$0xff]
    %v354 = vld [vmem:[#allocation6 + $0x4c0] sm:$0xff]
    %v355 = vld [vmem:[#allocation6 + $0x4c8] sm:$0xff]
    %v356 = vld [vmem:[#allocation6 + $0x4d0] sm:$0xff]
    %v357 = vld [vmem:[#allocation6 + $0x4d8] sm:$0xff]
    %v358 = vld [vmem:[#allocation6 + $0x4e0] sm:$0xff]
    %v359 = vld [vmem:[#allocation6 + $0x4e8] sm:$0xff]
    %v360 = vld [vmem:[#allocation6 + $0x4f0] sm:$0xff]
    %v361 = vld [vmem:[#allocation6 + $0x4f8] sm:$0xff]
    %v362 = vld [vmem:[#allocation6 + $0x500] sm:$0xff]
    %v363 = vld [vmem:[#allocation6 + $0x508] sm:$0xff]
    %v364 = vld [vmem:[#allocation6 + $0x510] sm:$0xff]
    %v365 = vld [vmem:[#allocation6 + $0x518] sm:$0xff]
    %v366 = vld [vmem:[#allocation6 + $0x520] sm:$0xff]
    %v367 = vld [vmem:[#allocation6 + $0x528] sm:$0xff]
    %v368 = vld [vmem:[#allocation6 + $0x530] sm:$0xff]
    %v369 = vld [vmem:[#allocation6 + $0x538] sm:$0xff]
    %v370 = vld [vmem:[#allocation6 + $0x540] sm:$0xff]
    %v371 = vld [vmem:[#allocation6 + $0x548] sm:$0xff]
    %v372 = vld [vmem:[#allocation6 + $0x550] sm:$0xff]
    %v373 = vld [vmem:[#allocation6 + $0x558] sm:$0xff]
    %v374 = vld [vmem:[#allocation6 + $0x560] sm:$0xff]
    %v375 = vld [vmem:[#allocation6 + $0x568] sm:$0xff]
    %v376 = vld [vmem:[#allocation6 + $0x570] sm:$0xff]
    %v377 = vld [vmem:[#allocation6 + $0x578] sm:$0xff]
    %v378 = vld [vmem:[#allocation6 + $0x580] sm:$0xff]
    %v379 = vld [vmem:[#allocation6 + $0x588] sm:$0xff]
    %v380 = vld [vmem:[#allocation6 + $0x590] sm:$0xff]
    %v381 = vld [vmem:[#allocation6 + $0x598] sm:$0xff]
    %v382 = vld [vmem:[#allocation6 + $0x5a0] sm:$0xff]
    %v383 = vld [vmem:[#allocation6 + $0x5a8] sm:$0xff]
    %v384 = vld [vmem:[#allocation6 + $0x5b0] sm:$0xff]
    %v385 = vld [vmem:[#allocation6 + $0x5b8] sm:$0xff]
    %v386 = vld [vmem:[#allocation6 + $0x5c0] sm:$0xff]
    %v387 = vld [vmem:[#allocation6 + $0x5c8] sm:$0xff]
    %v388 = vld [vmem:[#allocation6 + $0x5d0] sm:$0xff]
    %v389 = vld [vmem:[#allocation6 + $0x5d8] sm:$0xff]
    %v390 = vld [vmem:[#allocation6 + $0x5e0] sm:$0xff]
    %v391 = vld [vmem:[#allocation6 + $0x5e8] sm:$0xff]
    %v392 = vld [vmem:[#allocation6 + $0x5f0] sm:$0xff]
    %v393 = vld [vmem:[#allocation6 + $0x5f8] sm:$0xff]
    %v394 = vld [vmem:[#allocation6 + $0x600] sm:$0xff]
    %v395 = vld [vmem:[#allocation6 + $0x608] sm:$0xff]
    %v396 = vld [vmem:[#allocation6 + $0x610] sm:$0xff]
    %v397 = vld [vmem:[#allocation6 + $0x618] sm:$0xff]
    %v398 = vld [vmem:[#allocation6 + $0x620] sm:$0xff]
    %v399 = vld [vmem:[#allocation6 + $0x628] sm:$0xff]
    %v400 = vld [vmem:[#allocation6 + $0x630] sm:$0xff]
    %v401 = vld [vmem:[#allocation6 + $0x638] sm:$0xff]
    %v402 = vld [vmem:[#allocation6 + $0x640] sm:$0xff]
    %v403 = vld [vmem:[#allocation6 + $0x648] sm:$0xff]
    %v404 = vld [vmem:[#allocation6 + $0x650] sm:$0xff]
    %v405 = vld [vmem:[#allocation6 + $0x658] sm:$0xff]
    %v406 = vld [vmem:[#allocation6 + $0x660] sm:$0xff]
    %v407 = vld [vmem:[#allocation6 + $0x668] sm:$0xff]
    %v408 = vld [vmem:[#allocation6 + $0x670] sm:$0xff]
    %v409 = vld [vmem:[#allocation6 + $0x678] sm:$0xff]
    %v410 = vld [vmem:[#allocation6 + $0x680] sm:$0xff]
    %v411 = vld [vmem:[#allocation6 + $0x688] sm:$0xff]
    %v412 = vld [vmem:[#allocation6 + $0x690] sm:$0xff]
    %v413 = vld [vmem:[#allocation6 + $0x698] sm:$0xff]
    %v414 = vld [vmem:[#allocation6 + $0x6a0] sm:$0xff]
    %v415 = vld [vmem:[#allocation6 + $0x6a8] sm:$0xff]
    %v416 = vld [vmem:[#allocation6 + $0x6b0] sm:$0xff]
    %v417 = vld [vmem:[#allocation6 + $0x6b8] sm:$0xff]
    %v418 = vld [vmem:[#allocation6 + $0x6c0] sm:$0xff]
    %v419 = vld [vmem:[#allocation6 + $0x6c8] sm:$0xff]
    %v420 = vld [vmem:[#allocation6 + $0x6d0] sm:$0xff]
    %v421 = vld [vmem:[#allocation6 + $0x6d8] sm:$0xff]
    %v422 = vld [vmem:[#allocation6 + $0x6e0] sm:$0xff]
    %v423 = vld [vmem:[#allocation6 + $0x6e8] sm:$0xff]
    %v424 = vld [vmem:[#allocation6 + $0x6f0] sm:$0xff]
    %v425 = vld [vmem:[#allocation6 + $0x6f8] sm:$0xff]
    %v426 = vld [vmem:[#allocation6 + $0x700] sm:$0xff]
    %v427 = vld [vmem:[#allocation6 + $0x708] sm:$0xff]
    %v428 = vld [vmem:[#allocation6 + $0x710] sm:$0xff]
    %v429 = vld [vmem:[#allocation6 + $0x718] sm:$0xff]
    %v430 = vld [vmem:[#allocation6 + $0x720] sm:$0xff]
    %v431 = vld [vmem:[#allocation6 + $0x728] sm:$0xff]
    %v432 = vld [vmem:[#allocation6 + $0x730] sm:$0xff]
    %v433 = vld [vmem:[#allocation6 + $0x738] sm:$0xff]
    %v434 = vld [vmem:[#allocation6 + $0x740] sm:$0xff]
    %v435 = vld [vmem:[#allocation6 + $0x748] sm:$0xff]
    %v436 = vld [vmem:[#allocation6 + $0x750] sm:$0xff]
    %v437 = vld [vmem:[#allocation6 + $0x758] sm:$0xff]
    %v438 = vld [vmem:[#allocation6 + $0x760] sm:$0xff]
    %v439 = vld [vmem:[#allocation6 + $0x768] sm:$0xff]
    %v440 = vld [vmem:[#allocation6 + $0x770] sm:$0xff]
    %v441 = vld [vmem:[#allocation6 + $0x778] sm:$0xff]
    %v442 = vld [vmem:[#allocation6 + $0x780] sm:$0xff]
    %v443 = vld [vmem:[#allocation6 + $0x788] sm:$0xff]
    %v444 = vld [vmem:[#allocation6 + $0x790] sm:$0xff]
    %v445 = vld [vmem:[#allocation6 + $0x798] sm:$0xff]
    %v446 = vld [vmem:[#allocation6 + $0x7a0] sm:$0xff]
    %v447 = vld [vmem:[#allocation6 + $0x7a8] sm:$0xff]
    %v448 = vld [vmem:[#allocation6 + $0x7b0] sm:$0xff]
    %v449 = vld [vmem:[#allocation6 + $0x7b8] sm:$0xff]
    %v450 = vld [vmem:[#allocation6 + $0x7c0] sm:$0xff]
    %v451 = vld [vmem:[#allocation6 + $0x7c8] sm:$0xff]
    %v452 = vld [vmem:[#allocation6 + $0x7d0] sm:$0xff]
    %v453 = vld [vmem:[#allocation6 + $0x7d8] sm:$0xff]
    %v454 = vld [vmem:[#allocation6 + $0x7e0] sm:$0xff]
    %v455 = vld [vmem:[#allocation6 + $0x7e8] sm:$0xff]
    %v456 = vld [vmem:[#allocation6 + $0x7f0] sm:$0xff]
    %v457 = vld [vmem:[#allocation6 + $0x7f8] sm:$0xff]
    %v458 = vld [vmem:[#allocation6 + $0x800] sm:$0xff]
    %v459 = vld [vmem:[#allocation6 + $0x808] sm:$0xff]
    %v460 = vld [vmem:[#allocation6 + $0x810] sm:$0xff]
    %v461 = vld [vmem:[#allocation6 + $0x818] sm:$0xff]
    %v462 = vld [vmem:[#allocation6 + $0x820] sm:$0xff]
    %v463 = vld [vmem:[#allocation6 + $0x828] sm:$0xff]
    %v464 = vld [vmem:[#allocation6 + $0x830] sm:$0xff]
    %v465 = vld [vmem:[#allocation6 + $0x838] sm:$0xff]
    %v466 = vld [vmem:[#allocation6 + $0x840] sm:$0xff]
    %v467 = vld [vmem:[#allocation6 + $0x848] sm:$0xff]
    %v468 = vld [vmem:[#allocation6 + $0x850] sm:$0xff]
    %v469 = vld [vmem:[#allocation6 + $0x858] sm:$0xff]
    %v470 = vld [vmem:[#allocation6 + $0x860] sm:$0xff]
    %v471 = vld [vmem:[#allocation6 + $0x868] sm:$0xff]
    %v472 = vld [vmem:[#allocation6 + $0x870] sm:$0xff]
    %v473 = vld [vmem:[#allocation6 + $0x878] sm:$0xff]
    %v474 = vld [vmem:[#allocation6 + $0x880] sm:$0xff]
    %v475 = vld [vmem:[#allocation6 + $0x888] sm:$0xff]
    %v476 = vld [vmem:[#allocation6 + $0x890] sm:$0xff]
    %v477 = vld [vmem:[#allocation6 + $0x898] sm:$0xff]
    %v478 = vld [vmem:[#allocation6 + $0x8a0] sm:$0xff]
    %v479 = vld [vmem:[#allocation6 + $0x8a8] sm:$0xff]
    %v480 = vld [vmem:[#allocation6 + $0x8b0] sm:$0xff]
    %v481 = vld [vmem:[#allocation6 + $0x8b8] sm:$0xff]
    %v482 = vld [vmem:[#allocation6 + $0x8c0] sm:$0xff]
    %v483 = vld [vmem:[#allocation6 + $0x8c8] sm:$0xff]
    %v484 = vld [vmem:[#allocation6 + $0x8d0] sm:$0xff]
    %v485 = vld [vmem:[#allocation6 + $0x8d8] sm:$0xff]
    %v486 = vld [vmem:[#allocation6 + $0x8e0] sm:$0xff]
    %v487 = vld [vmem:[#allocation6 + $0x8e8] sm:$0xff]
    %v488 = vld [vmem:[#allocation6 + $0x8f0] sm:$0xff]
    %v489 = vld [vmem:[#allocation6 + $0x8f8] sm:$0xff]
    %v490 = vld [vmem:[#allocation6 + $0x900] sm:$0xff]
    %v491 = vld [vmem:[#allocation6 + $0x908] sm:$0xff]
    %v492 = vld [vmem:[#allocation6 + $0x910] sm:$0xff]
    %v493 = vld [vmem:[#allocation6 + $0x918] sm:$0xff]
    %v494 = vld [vmem:[#allocation6 + $0x920] sm:$0xff]
    %v495 = vld [vmem:[#allocation6 + $0x928] sm:$0xff]
    %v496 = vld [vmem:[#allocation6 + $0x930] sm:$0xff]
    %v497 = vld [vmem:[#allocation6 + $0x938] sm:$0xff]
    %v498 = vld [vmem:[#allocation6 + $0x940] sm:$0xff]
    %v499 = vld [vmem:[#allocation6 + $0x948] sm:$0xff]
    %v500 = vld [vmem:[#allocation6 + $0x950] sm:$0xff]
    %v501 = vld [vmem:[#allocation6 + $0x958] sm:$0xff]
    %v502 = vld [vmem:[#allocation6 + $0x960] sm:$0xff]
    %v503 = vld [vmem:[#allocation6 + $0x968] sm:$0xff]
    %v504 = vld [vmem:[#allocation6 + $0x970] sm:$0xff]
    %v505 = vld [vmem:[#allocation6 + $0x978] sm:$0xff]
    %v506 = vld [vmem:[#allocation6 + $0x980] sm:$0xff]
    %v507 = vld [vmem:[#allocation6 + $0x988] sm:$0xff]
    %v508 = vld [vmem:[#allocation6 + $0x990] sm:$0xff]
    %v509 = vld [vmem:[#allocation6 + $0x998] sm:$0xff]
    %v510 = vld [vmem:[#allocation6 + $0x9a0] sm:$0xff]
    %v511 = vld [vmem:[#allocation6 + $0x9a8] sm:$0xff]
    %v512 = vld [vmem:[#allocation6 + $0x9b0] sm:$0xff]
    %v513 = vld [vmem:[#allocation6 + $0x9b8] sm:$0xff]
    %v514 = vld [vmem:[#allocation6 + $0x9c0] sm:$0xff]
    %v515 = vld [vmem:[#allocation6 + $0x9c8] sm:$0xff]
    %v516 = vld [vmem:[#allocation6 + $0x9d0] sm:$0xff]
    %v517 = vld [vmem:[#allocation6 + $0x9d8] sm:$0xff]
    %v518 = vld [vmem:[#allocation6 + $0x9e0] sm:$0xff]
    %v519 = vld [vmem:[#allocation6 + $0x9e8] sm:$0xff]
    %v520 = vld [vmem:[#allocation6 + $0x9f0] sm:$0xff]
    %v521 = vld [vmem:[#allocation6 + $0x9f8] sm:$0xff]
    %v522 = vld [vmem:[#allocation6 + $0xa00] sm:$0xff]
    %v523 = vld [vmem:[#allocation6 + $0xa08] sm:$0xff]
    %v524 = vld [vmem:[#allocation6 + $0xa10] sm:$0xff]
    %v525 = vld [vmem:[#allocation6 + $0xa18] sm:$0xff]
    %v526 = vld [vmem:[#allocation6 + $0xa20] sm:$0xff]
    %v527 = vld [vmem:[#allocation6 + $0xa28] sm:$0xff]
    %v528 = vld [vmem:[#allocation6 + $0xa30] sm:$0xff]
    %v529 = vld [vmem:[#allocation6 + $0xa38] sm:$0xff]
    %v530 = vld [vmem:[#allocation6 + $0xa40] sm:$0xff]
    %v531 = vld [vmem:[#allocation6 + $0xa48] sm:$0xff]
    %v532 = vld [vmem:[#allocation6 + $0xa50] sm:$0xff]
    %v533 = vld [vmem:[#allocation6 + $0xa58] sm:$0xff]
    %v534 = vld [vmem:[#allocation6 + $0xa60] sm:$0xff]
    %v535 = vld [vmem:[#allocation6 + $0xa68] sm:$0xff]
    %v536 = vld [vmem:[#allocation6 + $0xa70] sm:$0xff]
    %v537 = vld [vmem:[#allocation6 + $0xa78] sm:$0xff]
    %v538 = vld [vmem:[#allocation6 + $0xa80] sm:$0xff]
    %v539 = vld [vmem:[#allocation6 + $0xa88] sm:$0xff]
    %v540 = vld [vmem:[#allocation6 + $0xa90] sm:$0xff]
    %v541 = vld [vmem:[#allocation6 + $0xa98] sm:$0xff]
    %v542 = vld [vmem:[#allocation6 + $0xaa0] sm:$0xff]
    %v543 = vld [vmem:[#allocation6 + $0xaa8] sm:$0xff]
    %v544 = vld [vmem:[#allocation6 + $0xab0] sm:$0xff]
    %v545 = vld [vmem:[#allocation6 + $0xab8] sm:$0xff]
    %v546 = vld [vmem:[#allocation6 + $0xac0] sm:$0xff]
    %v547 = vld [vmem:[#allocation6 + $0xac8] sm:$0xff]
    %v548 = vld [vmem:[#allocation6 + $0xad0] sm:$0xff]
    %v549 = vld [vmem:[#allocation6 + $0xad8] sm:$0xff]
    %v550 = vld [vmem:[#allocation6 + $0xae0] sm:$0xff]
    %v551 = vld [vmem:[#allocation6 + $0xae8] sm:$0xff]
    %v552 = vld [vmem:[#allocation6 + $0xaf0] sm:$0xff]
    %v553 = vld [vmem:[#allocation6 + $0xaf8] sm:$0xff]
    %v554 = vld [vmem:[#allocation6 + $0xb00] sm:$0xff]
    %v555 = vld [vmem:[#allocation6 + $0xb08] sm:$0xff]
    %v556 = vld [vmem:[#allocation6 + $0xb10] sm:$0xff]
    %v557 = vld [vmem:[#allocation6 + $0xb18] sm:$0xff]
    %v558 = vld [vmem:[#allocation6 + $0xb20] sm:$0xff]
    %v559 = vld [vmem:[#allocation6 + $0xb28] sm:$0xff]
    %v560 = vld [vmem:[#allocation6 + $0xb30] sm:$0xff]
    %v561 = vld [vmem:[#allocation6 + $0xb38] sm:$0xff]
    %v562 = vld [vmem:[#allocation6 + $0xb40] sm:$0xff]
    %v563 = vld [vmem:[#allocation6 + $0xb48] sm:$0xff]
    %v564 = vld [vmem:[#allocation6 + $0xb50] sm:$0xff]
    %v565 = vld [vmem:[#allocation6 + $0xb58] sm:$0xff]
    %v566 = vld [vmem:[#allocation6 + $0xb60] sm:$0xff]
    %v567 = vld [vmem:[#allocation6 + $0xb68] sm:$0xff]
    %v568 = vld [vmem:[#allocation6 + $0xb70] sm:$0xff]
    %v569 = vld [vmem:[#allocation6 + $0xb78] sm:$0xff]
    %v570 = vld [vmem:[#allocation6 + $0xb80] sm:$0xff]
    %v571 = vld [vmem:[#allocation6 + $0xb88] sm:$0xff]
    %v572 = vld [vmem:[#allocation6 + $0xb90] sm:$0xff]
    %v573 = vld [vmem:[#allocation6 + $0xb98] sm:$0xff]
    %v574 = vld [vmem:[#allocation6 + $0xba0] sm:$0xff]
    %v575 = vld [vmem:[#allocation6 + $0xba8] sm:$0xff]
    %v576 = vld [vmem:[#allocation6 + $0xbb0] sm:$0xff]
    %v577 = vld [vmem:[#allocation6 + $0xbb8] sm:$0xff]
    %v578 = vld [vmem:[#allocation6 + $0xbc0] sm:$0xff]
    %v579 = vld [vmem:[#allocation6 + $0xbc8] sm:$0xff]
    %v580 = vld [vmem:[#allocation6 + $0xbd0] sm:$0xff]
    %v581 = vld [vmem:[#allocation6 + $0xbd8] sm:$0xff]
    %v582 = vld [vmem:[#allocation6 + $0xbe0] sm:$0xff]
    %v583 = vld [vmem:[#allocation6 + $0xbe8] sm:$0xff]
    %v584 = vld [vmem:[#allocation6 + $0xbf0] sm:$0xff]
    %v585 = vld [vmem:[#allocation6 + $0xbf8] sm:$0xff]
    %v589 = vunpack.c.l.b16 %v199
    %v590 = vunpack.c.h.b16 %v199
    %v591 = vunpack.c.l.b16 %v200
    %v592 = vunpack.c.h.b16 %v200
    %v593 = vunpack.c.l.b16 %v201
    %v594 = vunpack.c.h.b16 %v201
    %v595 = vpack.c.b16 %v589, %v589
    %v596 = vpack.c.b16 %v590, %v590
    %v597 = vpack.c.b16 %v591, %v591
    %v598 = vpack.c.b16 %v592, %v592
    %v599 = vpack.c.b16 %v593, %v593
    %v600 = vpack.c.b16 %v594, %v594
    %v991 = vunpack.c.l.b16 %v202
    %v992 = vunpack.c.h.b16 %v202
    %v993 = vunpack.c.l.b16 %v203
    %v994 = vunpack.c.h.b16 %v203
    %v995 = vunpack.c.l.b16 %v204
    %v996 = vunpack.c.h.b16 %v204
    %v997 = vunpack.c.l.b16 %v205
    %v998 = vunpack.c.h.b16 %v205
    %v999 = vunpack.c.l.b16 %v206
    %v1000 = vunpack.c.h.b16 %v206
    %v1001 = vunpack.c.l.b16 %v207
    %v1002 = vunpack.c.h.b16 %v207
    %v1003 = vunpack.c.l.b16 %v208
    %v1004 = vunpack.c.h.b16 %v208
    %v1005 = vunpack.c.l.b16 %v209
    %v1006 = vunpack.c.h.b16 %v209
    %v1007 = vunpack.c.l.b16 %v210
    %v1008 = vunpack.c.h.b16 %v210
    %v1009 = vunpack.c.l.b16 %v211
    %v1010 = vunpack.c.h.b16 %v211
    %v1011 = vunpack.c.l.b16 %v212
    %v1012 = vunpack.c.h.b16 %v212
    %v1013 = vunpack.c.l.b16 %v213
    %v1014 = vunpack.c.h.b16 %v213
    %v1015 = vunpack.c.l.b16 %v214
    %v1016 = vunpack.c.h.b16 %v214
    %v1017 = vunpack.c.l.b16 %v215
    %v1018 = vunpack.c.h.b16 %v215
    %v1019 = vunpack.c.l.b16 %v216
    %v1020 = vunpack.c.h.b16 %v216
    %v1021 = vunpack.c.l.b16 %v217
    %v1022 = vunpack.c.h.b16 %v217
    %v1023 = vunpack.c.l.b16 %v218
    %v1024 = vunpack.c.h.b16 %v218
    %v1025 = vunpack.c.l.b16 %v219
    %v1026 = vunpack.c.h.b16 %v219
    %v1027 = vunpack.c.l.b16 %v220
    %v1028 = vunpack.c.h.b16 %v220
    %v1029 = vunpack.c.l.b16 %v221
    %v1030 = vunpack.c.h.b16 %v221
    %v1031 = vunpack.c.l.b16 %v222
    %v1032 = vunpack.c.h.b16 %v222
    %v1033 = vunpack.c.l.b16 %v223
    %v1034 = vunpack.c.h.b16 %v223
    %v1035 = vunpack.c.l.b16 %v224
    %v1036 = vunpack.c.h.b16 %v224
    %v1037 = vunpack.c.l.b16 %v225
    %v1038 = vunpack.c.h.b16 %v225
    %v1039 = vunpack.c.l.b16 %v226
    %v1040 = vunpack.c.h.b16 %v226
    %v1041 = vunpack.c.l.b16 %v227
    %v1042 = vunpack.c.h.b16 %v227
    %v1043 = vunpack.c.l.b16 %v228
    %v1044 = vunpack.c.h.b16 %v228
    %v1045 = vunpack.c.l.b16 %v229
    %v1046 = vunpack.c.h.b16 %v229
    %v1047 = vunpack.c.l.b16 %v230
    %v1048 = vunpack.c.h.b16 %v230
    %v1049 = vunpack.c.l.b16 %v231
    %v1050 = vunpack.c.h.b16 %v231
    %v1051 = vunpack.c.l.b16 %v232
    %v1052 = vunpack.c.h.b16 %v232
    %v1053 = vunpack.c.l.b16 %v233
    %v1054 = vunpack.c.h.b16 %v233
    %v1055 = vunpack.c.l.b16 %v234
    %v1056 = vunpack.c.h.b16 %v234
    %v1057 = vunpack.c.l.b16 %v235
    %v1058 = vunpack.c.h.b16 %v235
    %v1059 = vunpack.c.l.b16 %v236
    %v1060 = vunpack.c.h.b16 %v236
    %v1061 = vunpack.c.l.b16 %v237
    %v1062 = vunpack.c.h.b16 %v237
    %v1063 = vunpack.c.l.b16 %v238
    %v1064 = vunpack.c.h.b16 %v238
    %v1065 = vunpack.c.l.b16 %v239
    %v1066 = vunpack.c.h.b16 %v239
    %v1067 = vunpack.c.l.b16 %v240
    %v1068 = vunpack.c.h.b16 %v240
    %v1069 = vunpack.c.l.b16 %v241
    %v1070 = vunpack.c.h.b16 %v241
    %v1071 = vunpack.c.l.b16 %v242
    %v1072 = vunpack.c.h.b16 %v242
    %v1073 = vunpack.c.l.b16 %v243
    %v1074 = vunpack.c.h.b16 %v243
    %v1075 = vunpack.c.l.b16 %v244
    %v1076 = vunpack.c.h.b16 %v244
    %v1077 = vunpack.c.l.b16 %v245
    %v1078 = vunpack.c.h.b16 %v245
    %v1079 = vunpack.c.l.b16 %v246
    %v1080 = vunpack.c.h.b16 %v246
    %v1081 = vunpack.c.l.b16 %v247
    %v1082 = vunpack.c.h.b16 %v247
    %v1083 = vunpack.c.l.b16 %v248
    %v1084 = vunpack.c.h.b16 %v248
    %v1085 = vunpack.c.l.b16 %v249
    %v1086 = vunpack.c.h.b16 %v249
    %v1087 = vunpack.c.l.b16 %v250
    %v1088 = vunpack.c.h.b16 %v250
    %v1089 = vunpack.c.l.b16 %v251
    %v1090 = vunpack.c.h.b16 %v251
    %v1091 = vunpack.c.l.b16 %v252
    %v1092 = vunpack.c.h.b16 %v252
    %v1093 = vunpack.c.l.b16 %v253
    %v1094 = vunpack.c.h.b16 %v253
    %v1095 = vunpack.c.l.b16 %v254
    %v1096 = vunpack.c.h.b16 %v254
    %v1097 = vunpack.c.l.b16 %v255
    %v1098 = vunpack.c.h.b16 %v255
    %v1099 = vunpack.c.l.b16 %v256
    %v1100 = vunpack.c.h.b16 %v256
    %v1101 = vunpack.c.l.b16 %v257
    %v1102 = vunpack.c.h.b16 %v257
    %v1103 = vunpack.c.l.b16 %v258
    %v1104 = vunpack.c.h.b16 %v258
    %v1105 = vunpack.c.l.b16 %v259
    %v1106 = vunpack.c.h.b16 %v259
    %v1107 = vunpack.c.l.b16 %v260
    %v1108 = vunpack.c.h.b16 %v260
    %v1109 = vunpack.c.l.b16 %v261
    %v1110 = vunpack.c.h.b16 %v261
    %v1111 = vunpack.c.l.b16 %v262
    %v1112 = vunpack.c.h.b16 %v262
    %v1113 = vunpack.c.l.b16 %v263
    %v1114 = vunpack.c.h.b16 %v263
    %v1115 = vunpack.c.l.b16 %v264
    %v1116 = vunpack.c.h.b16 %v264
    %v1117 = vunpack.c.l.b16 %v265
    %v1118 = vunpack.c.h.b16 %v265
    %v1119 = vunpack.c.l.b16 %v266
    %v1120 = vunpack.c.h.b16 %v266
    %v1121 = vunpack.c.l.b16 %v267
    %v1122 = vunpack.c.h.b16 %v267
    %v1123 = vunpack.c.l.b16 %v268
    %v1124 = vunpack.c.h.b16 %v268
    %v1125 = vunpack.c.l.b16 %v269
    %v1126 = vunpack.c.h.b16 %v269
    %v1127 = vunpack.c.l.b16 %v270
    %v1128 = vunpack.c.h.b16 %v270
    %v1129 = vunpack.c.l.b16 %v271
    %v1130 = vunpack.c.h.b16 %v271
    %v1131 = vunpack.c.l.b16 %v272
    %v1132 = vunpack.c.h.b16 %v272
    %v1133 = vunpack.c.l.b16 %v273
    %v1134 = vunpack.c.h.b16 %v273
    %v1135 = vunpack.c.l.b16 %v274
    %v1136 = vunpack.c.h.b16 %v274
    %v1137 = vunpack.c.l.b16 %v275
    %v1138 = vunpack.c.h.b16 %v275
    %v1139 = vunpack.c.l.b16 %v276
    %v1140 = vunpack.c.h.b16 %v276
    %v1141 = vunpack.c.l.b16 %v277
    %v1142 = vunpack.c.h.b16 %v277
    %v1143 = vunpack.c.l.b16 %v278
    %v1144 = vunpack.c.h.b16 %v278
    %v1145 = vunpack.c.l.b16 %v279
    %v1146 = vunpack.c.h.b16 %v279
    %v1147 = vunpack.c.l.b16 %v280
    %v1148 = vunpack.c.h.b16 %v280
    %v1149 = vunpack.c.l.b16 %v281
    %v1150 = vunpack.c.h.b16 %v281
    %v1151 = vunpack.c.l.b16 %v282
    %v1152 = vunpack.c.h.b16 %v282
    %v1153 = vunpack.c.l.b16 %v283
    %v1154 = vunpack.c.h.b16 %v283
    %v1155 = vunpack.c.l.b16 %v284
    %v1156 = vunpack.c.h.b16 %v284
    %v1157 = vunpack.c.l.b16 %v285
    %v1158 = vunpack.c.h.b16 %v285
    %v1159 = vunpack.c.l.b16 %v286
    %v1160 = vunpack.c.h.b16 %v286
    %v1161 = vunpack.c.l.b16 %v287
    %v1162 = vunpack.c.h.b16 %v287
    %v1163 = vunpack.c.l.b16 %v288
    %v1164 = vunpack.c.h.b16 %v288
    %v1165 = vunpack.c.l.b16 %v289
    %v1166 = vunpack.c.h.b16 %v289
    %v1167 = vunpack.c.l.b16 %v290
    %v1168 = vunpack.c.h.b16 %v290
    %v1169 = vunpack.c.l.b16 %v291
    %v1170 = vunpack.c.h.b16 %v291
    %v1171 = vunpack.c.l.b16 %v292
    %v1172 = vunpack.c.h.b16 %v292
    %v1173 = vunpack.c.l.b16 %v293
    %v1174 = vunpack.c.h.b16 %v293
    %v1175 = vunpack.c.l.b16 %v294
    %v1176 = vunpack.c.h.b16 %v294
    %v1177 = vunpack.c.l.b16 %v295
    %v1178 = vunpack.c.h.b16 %v295
    %v1179 = vunpack.c.l.b16 %v296
    %v1180 = vunpack.c.h.b16 %v296
    %v1181 = vunpack.c.l.b16 %v297
    %v1182 = vunpack.c.h.b16 %v297
    %v1183 = vunpack.c.l.b16 %v298
    %v1184 = vunpack.c.h.b16 %v298
    %v1185 = vunpack.c.l.b16 %v299
    %v1186 = vunpack.c.h.b16 %v299
    %v1187 = vunpack.c.l.b16 %v300
    %v1188 = vunpack.c.h.b16 %v300
    %v1189 = vunpack.c.l.b16 %v301
    %v1190 = vunpack.c.h.b16 %v301
    %v1191 = vunpack.c.l.b16 %v302
    %v1192 = vunpack.c.h.b16 %v302
    %v1193 = vunpack.c.l.b16 %v303
    %v1194 = vunpack.c.h.b16 %v303
    %v1195 = vunpack.c.l.b16 %v304
    %v1196 = vunpack.c.h.b16 %v304
    %v1197 = vunpack.c.l.b16 %v305
    %v1198 = vunpack.c.h.b16 %v305
    %v1199 = vunpack.c.l.b16 %v306
    %v1200 = vunpack.c.h.b16 %v306
    %v1201 = vunpack.c.l.b16 %v307
    %v1202 = vunpack.c.h.b16 %v307
    %v1203 = vunpack.c.l.b16 %v308
    %v1204 = vunpack.c.h.b16 %v308
    %v1205 = vunpack.c.l.b16 %v309
    %v1206 = vunpack.c.h.b16 %v309
    %v1207 = vunpack.c.l.b16 %v310
    %v1208 = vunpack.c.h.b16 %v310
    %v1209 = vunpack.c.l.b16 %v311
    %v1210 = vunpack.c.h.b16 %v311
    %v1211 = vunpack.c.l.b16 %v312
    %v1212 = vunpack.c.h.b16 %v312
    %v1213 = vunpack.c.l.b16 %v313
    %v1214 = vunpack.c.h.b16 %v313
    %v1215 = vunpack.c.l.b16 %v314
    %v1216 = vunpack.c.h.b16 %v314
    %v1217 = vunpack.c.l.b16 %v315
    %v1218 = vunpack.c.h.b16 %v315
    %v1219 = vunpack.c.l.b16 %v316
    %v1220 = vunpack.c.h.b16 %v316
    %v1221 = vunpack.c.l.b16 %v317
    %v1222 = vunpack.c.h.b16 %v317
    %v1223 = vunpack.c.l.b16 %v318
    %v1224 = vunpack.c.h.b16 %v318
    %v1225 = vunpack.c.l.b16 %v319
    %v1226 = vunpack.c.h.b16 %v319
    %v1227 = vunpack.c.l.b16 %v320
    %v1228 = vunpack.c.h.b16 %v320
    %v1229 = vunpack.c.l.b16 %v321
    %v1230 = vunpack.c.h.b16 %v321
    %v1231 = vunpack.c.l.b16 %v322
    %v1232 = vunpack.c.h.b16 %v322
    %v1233 = vunpack.c.l.b16 %v323
    %v1234 = vunpack.c.h.b16 %v323
    %v1235 = vunpack.c.l.b16 %v324
    %v1236 = vunpack.c.h.b16 %v324
    %v1237 = vunpack.c.l.b16 %v325
    %v1238 = vunpack.c.h.b16 %v325
    %v1239 = vunpack.c.l.b16 %v326
    %v1240 = vunpack.c.h.b16 %v326
    %v1241 = vunpack.c.l.b16 %v327
    %v1242 = vunpack.c.h.b16 %v327
    %v1243 = vunpack.c.l.b16 %v328
    %v1244 = vunpack.c.h.b16 %v328
    %v1245 = vunpack.c.l.b16 %v329
    %v1246 = vunpack.c.h.b16 %v329
    %v1247 = vunpack.c.l.b16 %v330
    %v1248 = vunpack.c.h.b16 %v330
    %v1249 = vunpack.c.l.b16 %v331
    %v1250 = vunpack.c.h.b16 %v331
    %v1251 = vunpack.c.l.b16 %v332
    %v1252 = vunpack.c.h.b16 %v332
    %v1253 = vunpack.c.l.b16 %v333
    %v1254 = vunpack.c.h.b16 %v333
    %v1255 = vunpack.c.l.b16 %v334
    %v1256 = vunpack.c.h.b16 %v334
    %v1257 = vunpack.c.l.b16 %v335
    %v1258 = vunpack.c.h.b16 %v335
    %v1259 = vunpack.c.l.b16 %v336
    %v1260 = vunpack.c.h.b16 %v336
    %v1261 = vunpack.c.l.b16 %v337
    %v1262 = vunpack.c.h.b16 %v337
    %v1263 = vunpack.c.l.b16 %v338
    %v1264 = vunpack.c.h.b16 %v338
    %v1265 = vunpack.c.l.b16 %v339
    %v1266 = vunpack.c.h.b16 %v339
    %v1267 = vunpack.c.l.b16 %v340
    %v1268 = vunpack.c.h.b16 %v340
    %v1269 = vunpack.c.l.b16 %v341
    %v1270 = vunpack.c.h.b16 %v341
    %v1271 = vunpack.c.l.b16 %v342
    %v1272 = vunpack.c.h.b16 %v342
    %v1273 = vunpack.c.l.b16 %v343
    %v1274 = vunpack.c.h.b16 %v343
    %v1275 = vunpack.c.l.b16 %v344
    %v1276 = vunpack.c.h.b16 %v344
    %v1277 = vunpack.c.l.b16 %v345
    %v1278 = vunpack.c.h.b16 %v345
    %v1279 = vunpack.c.l.b16 %v346
    %v1280 = vunpack.c.h.b16 %v346
    %v1281 = vunpack.c.l.b16 %v347
    %v1282 = vunpack.c.h.b16 %v347
    %v1283 = vunpack.c.l.b16 %v348
    %v1284 = vunpack.c.h.b16 %v348
    %v1285 = vunpack.c.l.b16 %v349
    %v1286 = vunpack.c.h.b16 %v349
    %v1287 = vunpack.c.l.b16 %v350
    %v1288 = vunpack.c.h.b16 %v350
    %v1289 = vunpack.c.l.b16 %v351
    %v1290 = vunpack.c.h.b16 %v351
    %v1291 = vunpack.c.l.b16 %v352
    %v1292 = vunpack.c.h.b16 %v352
    %v1293 = vunpack.c.l.b16 %v353
    %v1294 = vunpack.c.h.b16 %v353
    %v1295 = vunpack.c.l.b16 %v354
    %v1296 = vunpack.c.h.b16 %v354
    %v1297 = vunpack.c.l.b16 %v355
    %v1298 = vunpack.c.h.b16 %v355
    %v1299 = vunpack.c.l.b16 %v356
    %v1300 = vunpack.c.h.b16 %v356
    %v1301 = vunpack.c.l.b16 %v357
    %v1302 = vunpack.c.h.b16 %v357
    %v1303 = vunpack.c.l.b16 %v358
    %v1304 = vunpack.c.h.b16 %v358
    %v1305 = vunpack.c.l.b16 %v359
    %v1306 = vunpack.c.h.b16 %v359
    %v1307 = vunpack.c.l.b16 %v360
    %v1308 = vunpack.c.h.b16 %v360
    %v1309 = vunpack.c.l.b16 %v361
    %v1310 = vunpack.c.h.b16 %v361
    %v1311 = vunpack.c.l.b16 %v362
    %v1312 = vunpack.c.h.b16 %v362
    %v1313 = vunpack.c.l.b16 %v363
    %v1314 = vunpack.c.h.b16 %v363
    %v1315 = vunpack.c.l.b16 %v364
    %v1316 = vunpack.c.h.b16 %v364
    %v1317 = vunpack.c.l.b16 %v365
    %v1318 = vunpack.c.h.b16 %v365
    %v1319 = vunpack.c.l.b16 %v366
    %v1320 = vunpack.c.h.b16 %v366
    %v1321 = vunpack.c.l.b16 %v367
    %v1322 = vunpack.c.h.b16 %v367
    %v1323 = vunpack.c.l.b16 %v368
    %v1324 = vunpack.c.h.b16 %v368
    %v1325 = vunpack.c.l.b16 %v369
    %v1326 = vunpack.c.h.b16 %v369
    %v1327 = vunpack.c.l.b16 %v370
    %v1328 = vunpack.c.h.b16 %v370
    %v1329 = vunpack.c.l.b16 %v371
    %v1330 = vunpack.c.h.b16 %v371
    %v1331 = vunpack.c.l.b16 %v372
    %v1332 = vunpack.c.h.b16 %v372
    %v1333 = vunpack.c.l.b16 %v373
    %v1334 = vunpack.c.h.b16 %v373
    %v1335 = vunpack.c.l.b16 %v374
    %v1336 = vunpack.c.h.b16 %v374
    %v1337 = vunpack.c.l.b16 %v375
    %v1338 = vunpack.c.h.b16 %v375
    %v1339 = vunpack.c.l.b16 %v376
    %v1340 = vunpack.c.h.b16 %v376
    %v1341 = vunpack.c.l.b16 %v377
    %v1342 = vunpack.c.h.b16 %v377
    %v1343 = vunpack.c.l.b16 %v378
    %v1344 = vunpack.c.h.b16 %v378
    %v1345 = vunpack.c.l.b16 %v379
    %v1346 = vunpack.c.h.b16 %v379
    %v1347 = vunpack.c.l.b16 %v380
    %v1348 = vunpack.c.h.b16 %v380
    %v1349 = vunpack.c.l.b16 %v381
    %v1350 = vunpack.c.h.b16 %v381
    %v1351 = vunpack.c.l.b16 %v382
    %v1352 = vunpack.c.h.b16 %v382
    %v1353 = vunpack.c.l.b16 %v383
    %v1354 = vunpack.c.h.b16 %v383
    %v1355 = vunpack.c.l.b16 %v384
    %v1356 = vunpack.c.h.b16 %v384
    %v1357 = vunpack.c.l.b16 %v385
    %v1358 = vunpack.c.h.b16 %v385
    %v1359 = vunpack.c.l.b16 %v386
    %v1360 = vunpack.c.h.b16 %v386
    %v1361 = vunpack.c.l.b16 %v387
    %v1362 = vunpack.c.h.b16 %v387
    %v1363 = vunpack.c.l.b16 %v388
    %v1364 = vunpack.c.h.b16 %v388
    %v1365 = vunpack.c.l.b16 %v389
    %v1366 = vunpack.c.h.b16 %v389
    %v1367 = vunpack.c.l.b16 %v390
    %v1368 = vunpack.c.h.b16 %v390
    %v1369 = vunpack.c.l.b16 %v391
    %v1370 = vunpack.c.h.b16 %v391
    %v1371 = vunpack.c.l.b16 %v392
    %v1372 = vunpack.c.h.b16 %v392
    %v1373 = vunpack.c.l.b16 %v393
    %v1374 = vunpack.c.h.b16 %v393
    %v1375 = vunpack.c.l.b16 %v394
    %v1376 = vunpack.c.h.b16 %v394
    %v1377 = vunpack.c.l.b16 %v395
    %v1378 = vunpack.c.h.b16 %v395
    %v1379 = vunpack.c.l.b16 %v396
    %v1380 = vunpack.c.h.b16 %v396
    %v1381 = vunpack.c.l.b16 %v397
    %v1382 = vunpack.c.h.b16 %v397
    %v1383 = vunpack.c.l.b16 %v398
    %v1384 = vunpack.c.h.b16 %v398
    %v1385 = vunpack.c.l.b16 %v399
    %v1386 = vunpack.c.h.b16 %v399
    %v1387 = vunpack.c.l.b16 %v400
    %v1388 = vunpack.c.h.b16 %v400
    %v1389 = vunpack.c.l.b16 %v401
    %v1390 = vunpack.c.h.b16 %v401
    %v1391 = vunpack.c.l.b16 %v402
    %v1392 = vunpack.c.h.b16 %v402
    %v1393 = vunpack.c.l.b16 %v403
    %v1394 = vunpack.c.h.b16 %v403
    %v1395 = vunpack.c.l.b16 %v404
    %v1396 = vunpack.c.h.b16 %v404
    %v1397 = vunpack.c.l.b16 %v405
    %v1398 = vunpack.c.h.b16 %v405
    %v1399 = vunpack.c.l.b16 %v406
    %v1400 = vunpack.c.h.b16 %v406
    %v1401 = vunpack.c.l.b16 %v407
    %v1402 = vunpack.c.h.b16 %v407
    %v1403 = vunpack.c.l.b16 %v408
    %v1404 = vunpack.c.h.b16 %v408
    %v1405 = vunpack.c.l.b16 %v409
    %v1406 = vunpack.c.h.b16 %v409
    %v1407 = vunpack.c.l.b16 %v410
    %v1408 = vunpack.c.h.b16 %v410
    %v1409 = vunpack.c.l.b16 %v411
    %v1410 = vunpack.c.h.b16 %v411
    %v1411 = vunpack.c.l.b16 %v412
    %v1412 = vunpack.c.h.b16 %v412
    %v1413 = vunpack.c.l.b16 %v413
    %v1414 = vunpack.c.h.b16 %v413
    %v1415 = vunpack.c.l.b16 %v414
    %v1416 = vunpack.c.h.b16 %v414
    %v1417 = vunpack.c.l.b16 %v415
    %v1418 = vunpack.c.h.b16 %v415
    %v1419 = vunpack.c.l.b16 %v416
    %v1420 = vunpack.c.h.b16 %v416
    %v1421 = vunpack.c.l.b16 %v417
    %v1422 = vunpack.c.h.b16 %v417
    %v1423 = vunpack.c.l.b16 %v418
    %v1424 = vunpack.c.h.b16 %v418
    %v1425 = vunpack.c.l.b16 %v419
    %v1426 = vunpack.c.h.b16 %v419
    %v1427 = vunpack.c.l.b16 %v420
    %v1428 = vunpack.c.h.b16 %v420
    %v1429 = vunpack.c.l.b16 %v421
    %v1430 = vunpack.c.h.b16 %v421
    %v1431 = vunpack.c.l.b16 %v422
    %v1432 = vunpack.c.h.b16 %v422
    %v1433 = vunpack.c.l.b16 %v423
    %v1434 = vunpack.c.h.b16 %v423
    %v1435 = vunpack.c.l.b16 %v424
    %v1436 = vunpack.c.h.b16 %v424
    %v1437 = vunpack.c.l.b16 %v425
    %v1438 = vunpack.c.h.b16 %v425
    %v1439 = vunpack.c.l.b16 %v426
    %v1440 = vunpack.c.h.b16 %v426
    %v1441 = vunpack.c.l.b16 %v427
    %v1442 = vunpack.c.h.b16 %v427
    %v1443 = vunpack.c.l.b16 %v428
    %v1444 = vunpack.c.h.b16 %v428
    %v1445 = vunpack.c.l.b16 %v429
    %v1446 = vunpack.c.h.b16 %v429
    %v1447 = vunpack.c.l.b16 %v430
    %v1448 = vunpack.c.h.b16 %v430
    %v1449 = vunpack.c.l.b16 %v431
    %v1450 = vunpack.c.h.b16 %v431
    %v1451 = vunpack.c.l.b16 %v432
    %v1452 = vunpack.c.h.b16 %v432
    %v1453 = vunpack.c.l.b16 %v433
    %v1454 = vunpack.c.h.b16 %v433
    %v1455 = vunpack.c.l.b16 %v434
    %v1456 = vunpack.c.h.b16 %v434
    %v1457 = vunpack.c.l.b16 %v435
    %v1458 = vunpack.c.h.b16 %v435
    %v1459 = vunpack.c.l.b16 %v436
    %v1460 = vunpack.c.h.b16 %v436
    %v1461 = vunpack.c.l.b16 %v437
    %v1462 = vunpack.c.h.b16 %v437
    %v1463 = vunpack.c.l.b16 %v438
    %v1464 = vunpack.c.h.b16 %v438
    %v1465 = vunpack.c.l.b16 %v439
    %v1466 = vunpack.c.h.b16 %v439
    %v1467 = vunpack.c.l.b16 %v440
    %v1468 = vunpack.c.h.b16 %v440
    %v1469 = vunpack.c.l.b16 %v441
    %v1470 = vunpack.c.h.b16 %v441
    %v1471 = vunpack.c.l.b16 %v442
    %v1472 = vunpack.c.h.b16 %v442
    %v1473 = vunpack.c.l.b16 %v443
    %v1474 = vunpack.c.h.b16 %v443
    %v1475 = vunpack.c.l.b16 %v444
    %v1476 = vunpack.c.h.b16 %v444
    %v1477 = vunpack.c.l.b16 %v445
    %v1478 = vunpack.c.h.b16 %v445
    %v1479 = vunpack.c.l.b16 %v446
    %v1480 = vunpack.c.h.b16 %v446
    %v1481 = vunpack.c.l.b16 %v447
    %v1482 = vunpack.c.h.b16 %v447
    %v1483 = vunpack.c.l.b16 %v448
    %v1484 = vunpack.c.h.b16 %v448
    %v1485 = vunpack.c.l.b16 %v449
    %v1486 = vunpack.c.h.b16 %v449
    %v1487 = vunpack.c.l.b16 %v450
    %v1488 = vunpack.c.h.b16 %v450
    %v1489 = vunpack.c.l.b16 %v451
    %v1490 = vunpack.c.h.b16 %v451
    %v1491 = vunpack.c.l.b16 %v452
    %v1492 = vunpack.c.h.b16 %v452
    %v1493 = vunpack.c.l.b16 %v453
    %v1494 = vunpack.c.h.b16 %v453
    %v1495 = vunpack.c.l.b16 %v454
    %v1496 = vunpack.c.h.b16 %v454
    %v1497 = vunpack.c.l.b16 %v455
    %v1498 = vunpack.c.h.b16 %v455
    %v1499 = vunpack.c.l.b16 %v456
    %v1500 = vunpack.c.h.b16 %v456
    %v1501 = vunpack.c.l.b16 %v457
    %v1502 = vunpack.c.h.b16 %v457
    %v1503 = vunpack.c.l.b16 %v458
    %v1504 = vunpack.c.h.b16 %v458
    %v1505 = vunpack.c.l.b16 %v459
    %v1506 = vunpack.c.h.b16 %v459
    %v1507 = vunpack.c.l.b16 %v460
    %v1508 = vunpack.c.h.b16 %v460
    %v1509 = vunpack.c.l.b16 %v461
    %v1510 = vunpack.c.h.b16 %v461
    %v1511 = vunpack.c.l.b16 %v462
    %v1512 = vunpack.c.h.b16 %v462
    %v1513 = vunpack.c.l.b16 %v463
    %v1514 = vunpack.c.h.b16 %v463
    %v1515 = vunpack.c.l.b16 %v464
    %v1516 = vunpack.c.h.b16 %v464
    %v1517 = vunpack.c.l.b16 %v465
    %v1518 = vunpack.c.h.b16 %v465
    %v1519 = vunpack.c.l.b16 %v466
    %v1520 = vunpack.c.h.b16 %v466
    %v1521 = vunpack.c.l.b16 %v467
    %v1522 = vunpack.c.h.b16 %v467
    %v1523 = vunpack.c.l.b16 %v468
    %v1524 = vunpack.c.h.b16 %v468
    %v1525 = vunpack.c.l.b16 %v469
    %v1526 = vunpack.c.h.b16 %v469
    %v1527 = vunpack.c.l.b16 %v470
    %v1528 = vunpack.c.h.b16 %v470
    %v1529 = vunpack.c.l.b16 %v471
    %v1530 = vunpack.c.h.b16 %v471
    %v1531 = vunpack.c.l.b16 %v472
    %v1532 = vunpack.c.h.b16 %v472
    %v1533 = vunpack.c.l.b16 %v473
    %v1534 = vunpack.c.h.b16 %v473
    %v1535 = vunpack.c.l.b16 %v474
    %v1536 = vunpack.c.h.b16 %v474
    %v1537 = vunpack.c.l.b16 %v475
    %v1538 = vunpack.c.h.b16 %v475
    %v1539 = vunpack.c.l.b16 %v476
    %v1540 = vunpack.c.h.b16 %v476
    %v1541 = vunpack.c.l.b16 %v477
    %v1542 = vunpack.c.h.b16 %v477
    %v1543 = vunpack.c.l.b16 %v478
    %v1544 = vunpack.c.h.b16 %v478
    %v1545 = vunpack.c.l.b16 %v479
    %v1546 = vunpack.c.h.b16 %v479
    %v1547 = vunpack.c.l.b16 %v480
    %v1548 = vunpack.c.h.b16 %v480
    %v1549 = vunpack.c.l.b16 %v481
    %v1550 = vunpack.c.h.b16 %v481
    %v1551 = vunpack.c.l.b16 %v482
    %v1552 = vunpack.c.h.b16 %v482
    %v1553 = vunpack.c.l.b16 %v483
    %v1554 = vunpack.c.h.b16 %v483
    %v1555 = vunpack.c.l.b16 %v484
    %v1556 = vunpack.c.h.b16 %v484
    %v1557 = vunpack.c.l.b16 %v485
    %v1558 = vunpack.c.h.b16 %v485
    %v1559 = vunpack.c.l.b16 %v486
    %v1560 = vunpack.c.h.b16 %v486
    %v1561 = vunpack.c.l.b16 %v487
    %v1562 = vunpack.c.h.b16 %v487
    %v1563 = vunpack.c.l.b16 %v488
    %v1564 = vunpack.c.h.b16 %v488
    %v1565 = vunpack.c.l.b16 %v489
    %v1566 = vunpack.c.h.b16 %v489
    %v1567 = vunpack.c.l.b16 %v490
    %v1568 = vunpack.c.h.b16 %v490
    %v1569 = vunpack.c.l.b16 %v491
    %v1570 = vunpack.c.h.b16 %v491
    %v1571 = vunpack.c.l.b16 %v492
    %v1572 = vunpack.c.h.b16 %v492
    %v1573 = vunpack.c.l.b16 %v493
    %v1574 = vunpack.c.h.b16 %v493
    %v1575 = vunpack.c.l.b16 %v494
    %v1576 = vunpack.c.h.b16 %v494
    %v1577 = vunpack.c.l.b16 %v495
    %v1578 = vunpack.c.h.b16 %v495
    %v1579 = vunpack.c.l.b16 %v496
    %v1580 = vunpack.c.h.b16 %v496
    %v1581 = vunpack.c.l.b16 %v497
    %v1582 = vunpack.c.h.b16 %v497
    %v1583 = vunpack.c.l.b16 %v498
    %v1584 = vunpack.c.h.b16 %v498
    %v1585 = vunpack.c.l.b16 %v499
    %v1586 = vunpack.c.h.b16 %v499
    %v1587 = vunpack.c.l.b16 %v500
    %v1588 = vunpack.c.h.b16 %v500
    %v1589 = vunpack.c.l.b16 %v501
    %v1590 = vunpack.c.h.b16 %v501
    %v1591 = vunpack.c.l.b16 %v502
    %v1592 = vunpack.c.h.b16 %v502
    %v1593 = vunpack.c.l.b16 %v503
    %v1594 = vunpack.c.h.b16 %v503
    %v1595 = vunpack.c.l.b16 %v504
    %v1596 = vunpack.c.h.b16 %v504
    %v1597 = vunpack.c.l.b16 %v505
    %v1598 = vunpack.c.h.b16 %v505
    %v1599 = vunpack.c.l.b16 %v506
    %v1600 = vunpack.c.h.b16 %v506
    %v1601 = vunpack.c.l.b16 %v507
    %v1602 = vunpack.c.h.b16 %v507
    %v1603 = vunpack.c.l.b16 %v508
    %v1604 = vunpack.c.h.b16 %v508
    %v1605 = vunpack.c.l.b16 %v509
    %v1606 = vunpack.c.h.b16 %v509
    %v1607 = vunpack.c.l.b16 %v510
    %v1608 = vunpack.c.h.b16 %v510
    %v1609 = vunpack.c.l.b16 %v511
    %v1610 = vunpack.c.h.b16 %v511
    %v1611 = vunpack.c.l.b16 %v512
    %v1612 = vunpack.c.h.b16 %v512
    %v1613 = vunpack.c.l.b16 %v513
    %v1614 = vunpack.c.h.b16 %v513
    %v1615 = vunpack.c.l.b16 %v514
    %v1616 = vunpack.c.h.b16 %v514
    %v1617 = vunpack.c.l.b16 %v515
    %v1618 = vunpack.c.h.b16 %v515
    %v1619 = vunpack.c.l.b16 %v516
    %v1620 = vunpack.c.h.b16 %v516
    %v1621 = vunpack.c.l.b16 %v517
    %v1622 = vunpack.c.h.b16 %v517
    %v1623 = vunpack.c.l.b16 %v518
    %v1624 = vunpack.c.h.b16 %v518
    %v1625 = vunpack.c.l.b16 %v519
    %v1626 = vunpack.c.h.b16 %v519
    %v1627 = vunpack.c.l.b16 %v520
    %v1628 = vunpack.c.h.b16 %v520
    %v1629 = vunpack.c.l.b16 %v521
    %v1630 = vunpack.c.h.b16 %v521
    %v1631 = vunpack.c.l.b16 %v522
    %v1632 = vunpack.c.h.b16 %v522
    %v1633 = vunpack.c.l.b16 %v523
    %v1634 = vunpack.c.h.b16 %v523
    %v1635 = vunpack.c.l.b16 %v524
    %v1636 = vunpack.c.h.b16 %v524
    %v1637 = vunpack.c.l.b16 %v525
    %v1638 = vunpack.c.h.b16 %v525
    %v1639 = vunpack.c.l.b16 %v526
    %v1640 = vunpack.c.h.b16 %v526
    %v1641 = vunpack.c.l.b16 %v527
    %v1642 = vunpack.c.h.b16 %v527
    %v1643 = vunpack.c.l.b16 %v528
    %v1644 = vunpack.c.h.b16 %v528
    %v1645 = vunpack.c.l.b16 %v529
    %v1646 = vunpack.c.h.b16 %v529
    %v1647 = vunpack.c.l.b16 %v530
    %v1648 = vunpack.c.h.b16 %v530
    %v1649 = vunpack.c.l.b16 %v531
    %v1650 = vunpack.c.h.b16 %v531
    %v1651 = vunpack.c.l.b16 %v532
    %v1652 = vunpack.c.h.b16 %v532
    %v1653 = vunpack.c.l.b16 %v533
    %v1654 = vunpack.c.h.b16 %v533
    %v1655 = vunpack.c.l.b16 %v534
    %v1656 = vunpack.c.h.b16 %v534
    %v1657 = vunpack.c.l.b16 %v535
    %v1658 = vunpack.c.h.b16 %v535
    %v1659 = vunpack.c.l.b16 %v536
    %v1660 = vunpack.c.h.b16 %v536
    %v1661 = vunpack.c.l.b16 %v537
    %v1662 = vunpack.c.h.b16 %v537
    %v1663 = vunpack.c.l.b16 %v538
    %v1664 = vunpack.c.h.b16 %v538
    %v1665 = vunpack.c.l.b16 %v539
    %v1666 = vunpack.c.h.b16 %v539
    %v1667 = vunpack.c.l.b16 %v540
    %v1668 = vunpack.c.h.b16 %v540
    %v1669 = vunpack.c.l.b16 %v541
    %v1670 = vunpack.c.h.b16 %v541
    %v1671 = vunpack.c.l.b16 %v542
    %v1672 = vunpack.c.h.b16 %v542
    %v1673 = vunpack.c.l.b16 %v543
    %v1674 = vunpack.c.h.b16 %v543
    %v1675 = vunpack.c.l.b16 %v544
    %v1676 = vunpack.c.h.b16 %v544
    %v1677 = vunpack.c.l.b16 %v545
    %v1678 = vunpack.c.h.b16 %v545
    %v1679 = vunpack.c.l.b16 %v546
    %v1680 = vunpack.c.h.b16 %v546
    %v1681 = vunpack.c.l.b16 %v547
    %v1682 = vunpack.c.h.b16 %v547
    %v1683 = vunpack.c.l.b16 %v548
    %v1684 = vunpack.c.h.b16 %v548
    %v1685 = vunpack.c.l.b16 %v549
    %v1686 = vunpack.c.h.b16 %v549
    %v1687 = vunpack.c.l.b16 %v550
    %v1688 = vunpack.c.h.b16 %v550
    %v1689 = vunpack.c.l.b16 %v551
    %v1690 = vunpack.c.h.b16 %v551
    %v1691 = vunpack.c.l.b16 %v552
    %v1692 = vunpack.c.h.b16 %v552
    %v1693 = vunpack.c.l.b16 %v553
    %v1694 = vunpack.c.h.b16 %v553
    %v1695 = vunpack.c.l.b16 %v554
    %v1696 = vunpack.c.h.b16 %v554
    %v1697 = vunpack.c.l.b16 %v555
    %v1698 = vunpack.c.h.b16 %v555
    %v1699 = vunpack.c.l.b16 %v556
    %v1700 = vunpack.c.h.b16 %v556
    %v1701 = vunpack.c.l.b16 %v557
    %v1702 = vunpack.c.h.b16 %v557
    %v1703 = vunpack.c.l.b16 %v558
    %v1704 = vunpack.c.h.b16 %v558
    %v1705 = vunpack.c.l.b16 %v559
    %v1706 = vunpack.c.h.b16 %v559
    %v1707 = vunpack.c.l.b16 %v560
    %v1708 = vunpack.c.h.b16 %v560
    %v1709 = vunpack.c.l.b16 %v561
    %v1710 = vunpack.c.h.b16 %v561
    %v1711 = vunpack.c.l.b16 %v562
    %v1712 = vunpack.c.h.b16 %v562
    %v1713 = vunpack.c.l.b16 %v563
    %v1714 = vunpack.c.h.b16 %v563
    %v1715 = vunpack.c.l.b16 %v564
    %v1716 = vunpack.c.h.b16 %v564
    %v1717 = vunpack.c.l.b16 %v565
    %v1718 = vunpack.c.h.b16 %v565
    %v1719 = vunpack.c.l.b16 %v566
    %v1720 = vunpack.c.h.b16 %v566
    %v1721 = vunpack.c.l.b16 %v567
    %v1722 = vunpack.c.h.b16 %v567
    %v1723 = vunpack.c.l.b16 %v568
    %v1724 = vunpack.c.h.b16 %v568
    %v1725 = vunpack.c.l.b16 %v569
    %v1726 = vunpack.c.h.b16 %v569
    %v1727 = vunpack.c.l.b16 %v570
    %v1728 = vunpack.c.h.b16 %v570
    %v1729 = vunpack.c.l.b16 %v571
    %v1730 = vunpack.c.h.b16 %v571
    %v1731 = vunpack.c.l.b16 %v572
    %v1732 = vunpack.c.h.b16 %v572
    %v1733 = vunpack.c.l.b16 %v573
    %v1734 = vunpack.c.h.b16 %v573
    %v1735 = vunpack.c.l.b16 %v574
    %v1736 = vunpack.c.h.b16 %v574
    %v1737 = vunpack.c.l.b16 %v575
    %v1738 = vunpack.c.h.b16 %v575
    %v1739 = vunpack.c.l.b16 %v576
    %v1740 = vunpack.c.h.b16 %v576
    %v1741 = vunpack.c.l.b16 %v577
    %v1742 = vunpack.c.h.b16 %v577
    %v1743 = vunpack.c.l.b16 %v578
    %v1744 = vunpack.c.h.b16 %v578
    %v1745 = vunpack.c.l.b16 %v579
    %v1746 = vunpack.c.h.b16 %v579
    %v1747 = vunpack.c.l.b16 %v580
    %v1748 = vunpack.c.h.b16 %v580
    %v1749 = vunpack.c.l.b16 %v581
    %v1750 = vunpack.c.h.b16 %v581
    %v1751 = vunpack.c.l.b16 %v582
    %v1752 = vunpack.c.h.b16 %v582
    %v1753 = vunpack.c.l.b16 %v583
    %v1754 = vunpack.c.h.b16 %v583
    %v1755 = vunpack.c.l.b16 %v584
    %v1756 = vunpack.c.h.b16 %v584
    %v1757 = vunpack.c.l.b16 %v585
    %v1758 = vunpack.c.h.b16 %v585
    %v1759 = vpack.c.b16 %v999, %v991
    %v1760 = vpack.c.b16 %v1000, %v992
    %v1761 = vpack.c.b16 %v1001, %v993
    %v1762 = vpack.c.b16 %v1002, %v994
    %v1763 = vpack.c.b16 %v1003, %v995
    %v1764 = vpack.c.b16 %v1004, %v996
    %v1765 = vpack.c.b16 %v1005, %v997
    %v1766 = vpack.c.b16 %v1006, %v998
    %v1767 = vpack.c.b16 %v1015, %v1007
    %v1768 = vpack.c.b16 %v1016, %v1008
    %v1769 = vpack.c.b16 %v1017, %v1009
    %v1770 = vpack.c.b16 %v1018, %v1010
    %v1771 = vpack.c.b16 %v1019, %v1011
    %v1772 = vpack.c.b16 %v1020, %v1012
    %v1773 = vpack.c.b16 %v1021, %v1013
    %v1774 = vpack.c.b16 %v1022, %v1014
    %v1775 = vpack.c.b16 %v1031, %v1023
    %v1776 = vpack.c.b16 %v1032, %v1024
    %v1777 = vpack.c.b16 %v1033, %v1025
    %v1778 = vpack.c.b16 %v1034, %v1026
    %v1779 = vpack.c.b16 %v1035, %v1027
    %v1780 = vpack.c.b16 %v1036, %v1028
    %v1781 = vpack.c.b16 %v1037, %v1029
    %v1782 = vpack.c.b16 %v1038, %v1030
    %v1783 = vpack.c.b16 %v1047, %v1039
    %v1784 = vpack.c.b16 %v1048, %v1040
    %v1785 = vpack.c.b16 %v1049, %v1041
    %v1786 = vpack.c.b16 %v1050, %v1042
    %v1787 = vpack.c.b16 %v1051, %v1043
    %v1788 = vpack.c.b16 %v1052, %v1044
    %v1789 = vpack.c.b16 %v1053, %v1045
    %v1790 = vpack.c.b16 %v1054, %v1046
    %v1791 = vpack.c.b16 %v1063, %v1055
    %v1792 = vpack.c.b16 %v1064, %v1056
    %v1793 = vpack.c.b16 %v1065, %v1057
    %v1794 = vpack.c.b16 %v1066, %v1058
    %v1795 = vpack.c.b16 %v1067, %v1059
    %v1796 = vpack.c.b16 %v1068, %v1060
    %v1797 = vpack.c.b16 %v1069, %v1061
    %v1798 = vpack.c.b16 %v1070, %v1062
    %v1799 = vpack.c.b16 %v1079, %v1071
    %v1800 = vpack.c.b16 %v1080, %v1072
    %v1801 = vpack.c.b16 %v1081, %v1073
    %v1802 = vpack.c.b16 %v1082, %v1074
    %v1803 = vpack.c.b16 %v1083, %v1075
    %v1804 = vpack.c.b16 %v1084, %v1076
    %v1805 = vpack.c.b16 %v1085, %v1077
    %v1806 = vpack.c.b16 %v1086, %v1078
    %v1807 = vpack.c.b16 %v1095, %v1087
    %v1808 = vpack.c.b16 %v1096, %v1088
    %v1809 = vpack.c.b16 %v1097, %v1089
    %v1810 = vpack.c.b16 %v1098, %v1090
    %v1811 = vpack.c.b16 %v1099, %v1091
    %v1812 = vpack.c.b16 %v1100, %v1092
    %v1813 = vpack.c.b16 %v1101, %v1093
    %v1814 = vpack.c.b16 %v1102, %v1094
    %v1815 = vpack.c.b16 %v1111, %v1103
    %v1816 = vpack.c.b16 %v1112, %v1104
    %v1817 = vpack.c.b16 %v1113, %v1105
    %v1818 = vpack.c.b16 %v1114, %v1106
    %v1819 = vpack.c.b16 %v1115, %v1107
    %v1820 = vpack.c.b16 %v1116, %v1108
    %v1821 = vpack.c.b16 %v1117, %v1109
    %v1822 = vpack.c.b16 %v1118, %v1110
    %v1823 = vpack.c.b16 %v1127, %v1119
    %v1824 = vpack.c.b16 %v1128, %v1120
    %v1825 = vpack.c.b16 %v1129, %v1121
    %v1826 = vpack.c.b16 %v1130, %v1122
    %v1827 = vpack.c.b16 %v1131, %v1123
    %v1828 = vpack.c.b16 %v1132, %v1124
    %v1829 = vpack.c.b16 %v1133, %v1125
    %v1830 = vpack.c.b16 %v1134, %v1126
    %v1831 = vpack.c.b16 %v1143, %v1135
    %v1832 = vpack.c.b16 %v1144, %v1136
    %v1833 = vpack.c.b16 %v1145, %v1137
    %v1834 = vpack.c.b16 %v1146, %v1138
    %v1835 = vpack.c.b16 %v1147, %v1139
    %v1836 = vpack.c.b16 %v1148, %v1140
    %v1837 = vpack.c.b16 %v1149, %v1141
    %v1838 = vpack.c.b16 %v1150, %v1142
    %v1839 = vpack.c.b16 %v1159, %v1151
    %v1840 = vpack.c.b16 %v1160, %v1152
    %v1841 = vpack.c.b16 %v1161, %v1153
    %v1842 = vpack.c.b16 %v1162, %v1154
    %v1843 = vpack.c.b16 %v1163, %v1155
    %v1844 = vpack.c.b16 %v1164, %v1156
    %v1845 = vpack.c.b16 %v1165, %v1157
    %v1846 = vpack.c.b16 %v1166, %v1158
    %v1847 = vpack.c.b16 %v1175, %v1167
    %v1848 = vpack.c.b16 %v1176, %v1168
    %v1849 = vpack.c.b16 %v1177, %v1169
    %v1850 = vpack.c.b16 %v1178, %v1170
    %v1851 = vpack.c.b16 %v1179, %v1171
    %v1852 = vpack.c.b16 %v1180, %v1172
    %v1853 = vpack.c.b16 %v1181, %v1173
    %v1854 = vpack.c.b16 %v1182, %v1174
    %v1855 = vpack.c.b16 %v1191, %v1183
    %v1856 = vpack.c.b16 %v1192, %v1184
    %v1857 = vpack.c.b16 %v1193, %v1185
    %v1858 = vpack.c.b16 %v1194, %v1186
    %v1859 = vpack.c.b16 %v1195, %v1187
    %v1860 = vpack.c.b16 %v1196, %v1188
    %v1861 = vpack.c.b16 %v1197, %v1189
    %v1862 = vpack.c.b16 %v1198, %v1190
    %v1863 = vpack.c.b16 %v1207, %v1199
    %v1864 = vpack.c.b16 %v1208, %v1200
    %v1865 = vpack.c.b16 %v1209, %v1201
    %v1866 = vpack.c.b16 %v1210, %v1202
    %v1867 = vpack.c.b16 %v1211, %v1203
    %v1868 = vpack.c.b16 %v1212, %v1204
    %v1869 = vpack.c.b16 %v1213, %v1205
    %v1870 = vpack.c.b16 %v1214, %v1206
    %v1871 = vpack.c.b16 %v1223, %v1215
    %v1872 = vpack.c.b16 %v1224, %v1216
    %v1873 = vpack.c.b16 %v1225, %v1217
    %v1874 = vpack.c.b16 %v1226, %v1218
    %v1875 = vpack.c.b16 %v1227, %v1219
    %v1876 = vpack.c.b16 %v1228, %v1220
    %v1877 = vpack.c.b16 %v1229, %v1221
    %v1878 = vpack.c.b16 %v1230, %v1222
    %v1879 = vpack.c.b16 %v1239, %v1231
    %v1880 = vpack.c.b16 %v1240, %v1232
    %v1881 = vpack.c.b16 %v1241, %v1233
    %v1882 = vpack.c.b16 %v1242, %v1234
    %v1883 = vpack.c.b16 %v1243, %v1235
    %v1884 = vpack.c.b16 %v1244, %v1236
    %v1885 = vpack.c.b16 %v1245, %v1237
    %v1886 = vpack.c.b16 %v1246, %v1238
    %v1887 = vpack.c.b16 %v1255, %v1247
    %v1888 = vpack.c.b16 %v1256, %v1248
    %v1889 = vpack.c.b16 %v1257, %v1249
    %v1890 = vpack.c.b16 %v1258, %v1250
    %v1891 = vpack.c.b16 %v1259, %v1251
    %v1892 = vpack.c.b16 %v1260, %v1252
    %v1893 = vpack.c.b16 %v1261, %v1253
    %v1894 = vpack.c.b16 %v1262, %v1254
    %v1895 = vpack.c.b16 %v1271, %v1263
    %v1896 = vpack.c.b16 %v1272, %v1264
    %v1897 = vpack.c.b16 %v1273, %v1265
    %v1898 = vpack.c.b16 %v1274, %v1266
    %v1899 = vpack.c.b16 %v1275, %v1267
    %v1900 = vpack.c.b16 %v1276, %v1268
    %v1901 = vpack.c.b16 %v1277, %v1269
    %v1902 = vpack.c.b16 %v1278, %v1270
    %v1903 = vpack.c.b16 %v1287, %v1279
    %v1904 = vpack.c.b16 %v1288, %v1280
    %v1905 = vpack.c.b16 %v1289, %v1281
    %v1906 = vpack.c.b16 %v1290, %v1282
    %v1907 = vpack.c.b16 %v1291, %v1283
    %v1908 = vpack.c.b16 %v1292, %v1284
    %v1909 = vpack.c.b16 %v1293, %v1285
    %v1910 = vpack.c.b16 %v1294, %v1286
    %v1911 = vpack.c.b16 %v1303, %v1295
    %v1912 = vpack.c.b16 %v1304, %v1296
    %v1913 = vpack.c.b16 %v1305, %v1297
    %v1914 = vpack.c.b16 %v1306, %v1298
    %v1915 = vpack.c.b16 %v1307, %v1299
    %v1916 = vpack.c.b16 %v1308, %v1300
    %v1917 = vpack.c.b16 %v1309, %v1301
    %v1918 = vpack.c.b16 %v1310, %v1302
    %v1919 = vpack.c.b16 %v1319, %v1311
    %v1920 = vpack.c.b16 %v1320, %v1312
    %v1921 = vpack.c.b16 %v1321, %v1313
    %v1922 = vpack.c.b16 %v1322, %v1314
    %v1923 = vpack.c.b16 %v1323, %v1315
    %v1924 = vpack.c.b16 %v1324, %v1316
    %v1925 = vpack.c.b16 %v1325, %v1317
    %v1926 = vpack.c.b16 %v1326, %v1318
    %v1927 = vpack.c.b16 %v1335, %v1327
    %v1928 = vpack.c.b16 %v1336, %v1328
    %v1929 = vpack.c.b16 %v1337, %v1329
    %v1930 = vpack.c.b16 %v1338, %v1330
    %v1931 = vpack.c.b16 %v1339, %v1331
    %v1932 = vpack.c.b16 %v1340, %v1332
    %v1933 = vpack.c.b16 %v1341, %v1333
    %v1934 = vpack.c.b16 %v1342, %v1334
    %v1935 = vpack.c.b16 %v1351, %v1343
    %v1936 = vpack.c.b16 %v1352, %v1344
    %v1937 = vpack.c.b16 %v1353, %v1345
    %v1938 = vpack.c.b16 %v1354, %v1346
    %v1939 = vpack.c.b16 %v1355, %v1347
    %v1940 = vpack.c.b16 %v1356, %v1348
    %v1941 = vpack.c.b16 %v1357, %v1349
    %v1942 = vpack.c.b16 %v1358, %v1350
    %v1943 = vpack.c.b16 %v1367, %v1359
    %v1944 = vpack.c.b16 %v1368, %v1360
    %v1945 = vpack.c.b16 %v1369, %v1361
    %v1946 = vpack.c.b16 %v1370, %v1362
    %v1947 = vpack.c.b16 %v1371, %v1363
    %v1948 = vpack.c.b16 %v1372, %v1364
    %v1949 = vpack.c.b16 %v1373, %v1365
    %v1950 = vpack.c.b16 %v1374, %v1366
    %v1951 = vpack.c.b16 %v1383, %v1375
    %v1952 = vpack.c.b16 %v1384, %v1376
    %v1953 = vpack.c.b16 %v1385, %v1377
    %v1954 = vpack.c.b16 %v1386, %v1378
    %v1955 = vpack.c.b16 %v1387, %v1379
    %v1956 = vpack.c.b16 %v1388, %v1380
    %v1957 = vpack.c.b16 %v1389, %v1381
    %v1958 = vpack.c.b16 %v1390, %v1382
    %v1959 = vpack.c.b16 %v1399, %v1391
    %v1960 = vpack.c.b16 %v1400, %v1392
    %v1961 = vpack.c.b16 %v1401, %v1393
    %v1962 = vpack.c.b16 %v1402, %v1394
    %v1963 = vpack.c.b16 %v1403, %v1395
    %v1964 = vpack.c.b16 %v1404, %v1396
    %v1965 = vpack.c.b16 %v1405, %v1397
    %v1966 = vpack.c.b16 %v1406, %v1398
    %v1967 = vpack.c.b16 %v1415, %v1407
    %v1968 = vpack.c.b16 %v1416, %v1408
    %v1969 = vpack.c.b16 %v1417, %v1409
    %v1970 = vpack.c.b16 %v1418, %v1410
    %v1971 = vpack.c.b16 %v1419, %v1411
    %v1972 = vpack.c.b16 %v1420, %v1412
    %v1973 = vpack.c.b16 %v1421, %v1413
    %v1974 = vpack.c.b16 %v1422, %v1414
    %v1975 = vpack.c.b16 %v1431, %v1423
    %v1976 = vpack.c.b16 %v1432, %v1424
    %v1977 = vpack.c.b16 %v1433, %v1425
    %v1978 = vpack.c.b16 %v1434, %v1426
    %v1979 = vpack.c.b16 %v1435, %v1427
    %v1980 = vpack.c.b16 %v1436, %v1428
    %v1981 = vpack.c.b16 %v1437, %v1429
    %v1982 = vpack.c.b16 %v1438, %v1430
    %v1983 = vpack.c.b16 %v1447, %v1439
    %v1984 = vpack.c.b16 %v1448, %v1440
    %v1985 = vpack.c.b16 %v1449, %v1441
    %v1986 = vpack.c.b16 %v1450, %v1442
    %v1987 = vpack.c.b16 %v1451, %v1443
    %v1988 = vpack.c.b16 %v1452, %v1444
    %v1989 = vpack.c.b16 %v1453, %v1445
    %v1990 = vpack.c.b16 %v1454, %v1446
    %v1991 = vpack.c.b16 %v1463, %v1455
    %v1992 = vpack.c.b16 %v1464, %v1456
    %v1993 = vpack.c.b16 %v1465, %v1457
    %v1994 = vpack.c.b16 %v1466, %v1458
    %v1995 = vpack.c.b16 %v1467, %v1459
    %v1996 = vpack.c.b16 %v1468, %v1460
    %v1997 = vpack.c.b16 %v1469, %v1461
    %v1998 = vpack.c.b16 %v1470, %v1462
    %v1999 = vpack.c.b16 %v1479, %v1471
    %v2000 = vpack.c.b16 %v1480, %v1472
    %v2001 = vpack.c.b16 %v1481, %v1473
    %v2002 = vpack.c.b16 %v1482, %v1474
    %v2003 = vpack.c.b16 %v1483, %v1475
    %v2004 = vpack.c.b16 %v1484, %v1476
    %v2005 = vpack.c.b16 %v1485, %v1477
    %v2006 = vpack.c.b16 %v1486, %v1478
    %v2007 = vpack.c.b16 %v1495, %v1487
    %v2008 = vpack.c.b16 %v1496, %v1488
    %v2009 = vpack.c.b16 %v1497, %v1489
    %v2010 = vpack.c.b16 %v1498, %v1490
    %v2011 = vpack.c.b16 %v1499, %v1491
    %v2012 = vpack.c.b16 %v1500, %v1492
    %v2013 = vpack.c.b16 %v1501, %v1493
    %v2014 = vpack.c.b16 %v1502, %v1494
    %v2015 = vpack.c.b16 %v1511, %v1503
    %v2016 = vpack.c.b16 %v1512, %v1504
    %v2017 = vpack.c.b16 %v1513, %v1505
    %v2018 = vpack.c.b16 %v1514, %v1506
    %v2019 = vpack.c.b16 %v1515, %v1507
    %v2020 = vpack.c.b16 %v1516, %v1508
    %v2021 = vpack.c.b16 %v1517, %v1509
    %v2022 = vpack.c.b16 %v1518, %v1510
    %v2023 = vpack.c.b16 %v1527, %v1519
    %v2024 = vpack.c.b16 %v1528, %v1520
    %v2025 = vpack.c.b16 %v1529, %v1521
    %v2026 = vpack.c.b16 %v1530, %v1522
    %v2027 = vpack.c.b16 %v1531, %v1523
    %v2028 = vpack.c.b16 %v1532, %v1524
    %v2029 = vpack.c.b16 %v1533, %v1525
    %v2030 = vpack.c.b16 %v1534, %v1526
    %v2031 = vpack.c.b16 %v1543, %v1535
    %v2032 = vpack.c.b16 %v1544, %v1536
    %v2033 = vpack.c.b16 %v1545, %v1537
    %v2034 = vpack.c.b16 %v1546, %v1538
    %v2035 = vpack.c.b16 %v1547, %v1539
    %v2036 = vpack.c.b16 %v1548, %v1540
    %v2037 = vpack.c.b16 %v1549, %v1541
    %v2038 = vpack.c.b16 %v1550, %v1542
    %v2039 = vpack.c.b16 %v1559, %v1551
    %v2040 = vpack.c.b16 %v1560, %v1552
    %v2041 = vpack.c.b16 %v1561, %v1553
    %v2042 = vpack.c.b16 %v1562, %v1554
    %v2043 = vpack.c.b16 %v1563, %v1555
    %v2044 = vpack.c.b16 %v1564, %v1556
    %v2045 = vpack.c.b16 %v1565, %v1557
    %v2046 = vpack.c.b16 %v1566, %v1558
    %v2047 = vpack.c.b16 %v1575, %v1567
    %v2048 = vpack.c.b16 %v1576, %v1568
    %v2049 = vpack.c.b16 %v1577, %v1569
    %v2050 = vpack.c.b16 %v1578, %v1570
    %v2051 = vpack.c.b16 %v1579, %v1571
    %v2052 = vpack.c.b16 %v1580, %v1572
    %v2053 = vpack.c.b16 %v1581, %v1573
    %v2054 = vpack.c.b16 %v1582, %v1574
    %v2055 = vpack.c.b16 %v1591, %v1583
    %v2056 = vpack.c.b16 %v1592, %v1584
    %v2057 = vpack.c.b16 %v1593, %v1585
    %v2058 = vpack.c.b16 %v1594, %v1586
    %v2059 = vpack.c.b16 %v1595, %v1587
    %v2060 = vpack.c.b16 %v1596, %v1588
    %v2061 = vpack.c.b16 %v1597, %v1589
    %v2062 = vpack.c.b16 %v1598, %v1590
    %v2063 = vpack.c.b16 %v1607, %v1599
    %v2064 = vpack.c.b16 %v1608, %v1600
    %v2065 = vpack.c.b16 %v1609, %v1601
    %v2066 = vpack.c.b16 %v1610, %v1602
    %v2067 = vpack.c.b16 %v1611, %v1603
    %v2068 = vpack.c.b16 %v1612, %v1604
    %v2069 = vpack.c.b16 %v1613, %v1605
    %v2070 = vpack.c.b16 %v1614, %v1606
    %v2071 = vpack.c.b16 %v1623, %v1615
    %v2072 = vpack.c.b16 %v1624, %v1616
    %v2073 = vpack.c.b16 %v1625, %v1617
    %v2074 = vpack.c.b16 %v1626, %v1618
    %v2075 = vpack.c.b16 %v1627, %v1619
    %v2076 = vpack.c.b16 %v1628, %v1620
    %v2077 = vpack.c.b16 %v1629, %v1621
    %v2078 = vpack.c.b16 %v1630, %v1622
    %v2079 = vpack.c.b16 %v1639, %v1631
    %v2080 = vpack.c.b16 %v1640, %v1632
    %v2081 = vpack.c.b16 %v1641, %v1633
    %v2082 = vpack.c.b16 %v1642, %v1634
    %v2083 = vpack.c.b16 %v1643, %v1635
    %v2084 = vpack.c.b16 %v1644, %v1636
    %v2085 = vpack.c.b16 %v1645, %v1637
    %v2086 = vpack.c.b16 %v1646, %v1638
    %v2087 = vpack.c.b16 %v1655, %v1647
    %v2088 = vpack.c.b16 %v1656, %v1648
    %v2089 = vpack.c.b16 %v1657, %v1649
    %v2090 = vpack.c.b16 %v1658, %v1650
    %v2091 = vpack.c.b16 %v1659, %v1651
    %v2092 = vpack.c.b16 %v1660, %v1652
    %v2093 = vpack.c.b16 %v1661, %v1653
    %v2094 = vpack.c.b16 %v1662, %v1654
    %v2095 = vpack.c.b16 %v1671, %v1663
    %v2096 = vpack.c.b16 %v1672, %v1664
    %v2097 = vpack.c.b16 %v1673, %v1665
    %v2098 = vpack.c.b16 %v1674, %v1666
    %v2099 = vpack.c.b16 %v1675, %v1667
    %v2100 = vpack.c.b16 %v1676, %v1668
    %v2101 = vpack.c.b16 %v1677, %v1669
    %v2102 = vpack.c.b16 %v1678, %v1670
    %v2103 = vpack.c.b16 %v1687, %v1679
    %v2104 = vpack.c.b16 %v1688, %v1680
    %v2105 = vpack.c.b16 %v1689, %v1681
    %v2106 = vpack.c.b16 %v1690, %v1682
    %v2107 = vpack.c.b16 %v1691, %v1683
    %v2108 = vpack.c.b16 %v1692, %v1684
    %v2109 = vpack.c.b16 %v1693, %v1685
    %v2110 = vpack.c.b16 %v1694, %v1686
    %v2111 = vpack.c.b16 %v1703, %v1695
    %v2112 = vpack.c.b16 %v1704, %v1696
    %v2113 = vpack.c.b16 %v1705, %v1697
    %v2114 = vpack.c.b16 %v1706, %v1698
    %v2115 = vpack.c.b16 %v1707, %v1699
    %v2116 = vpack.c.b16 %v1708, %v1700
    %v2117 = vpack.c.b16 %v1709, %v1701
    %v2118 = vpack.c.b16 %v1710, %v1702
    %v2119 = vpack.c.b16 %v1719, %v1711
    %v2120 = vpack.c.b16 %v1720, %v1712
    %v2121 = vpack.c.b16 %v1721, %v1713
    %v2122 = vpack.c.b16 %v1722, %v1714
    %v2123 = vpack.c.b16 %v1723, %v1715
    %v2124 = vpack.c.b16 %v1724, %v1716
    %v2125 = vpack.c.b16 %v1725, %v1717
    %v2126 = vpack.c.b16 %v1726, %v1718
    %v2127 = vpack.c.b16 %v1735, %v1727
    %v2128 = vpack.c.b16 %v1736, %v1728
    %v2129 = vpack.c.b16 %v1737, %v1729
    %v2130 = vpack.c.b16 %v1738, %v1730
    %v2131 = vpack.c.b16 %v1739, %v1731
    %v2132 = vpack.c.b16 %v1740, %v1732
    %v2133 = vpack.c.b16 %v1741, %v1733
    %v2134 = vpack.c.b16 %v1742, %v1734
    %v2135 = vpack.c.b16 %v1751, %v1743
    %v2136 = vpack.c.b16 %v1752, %v1744
    %v2137 = vpack.c.b16 %v1753, %v1745
    %v2138 = vpack.c.b16 %v1754, %v1746
    %v2139 = vpack.c.b16 %v1755, %v1747
    %v2140 = vpack.c.b16 %v1756, %v1748
    %v2141 = vpack.c.b16 %v1757, %v1749
    %v2142 = vpack.c.b16 %v1758, %v1750
    %2527 = vmatprep.subr.bf16.mxu0 %v1760
    %2528 = vmatpush1.bf16.msra.mxu0 %v1759
    %2529 = vmatprep.subr.bf16.mxu0 %v1768
    %2530 = vmatpush1.bf16.msra.mxu0 %v1767
    %2531 = vmatprep.subr.bf16.mxu0 %v1776
    %2532 = vmatpush1.bf16.msra.mxu0 %v1775
    %2533 = vmatprep.subr.bf16.mxu0 %v1784
    %2534 = vmatpush1.bf16.msra.mxu0 %v1783
    %2535 = vmatprep.subr.bf16.mxu0 %v1792
    %2536 = vmatpush1.bf16.msra.mxu0 %v1791
    %2537 = vmatprep.subr.bf16.mxu0 %v1800
    %2538 = vmatpush1.bf16.msra.mxu0 %v1799
    %2539 = vmatprep.subr.bf16.mxu0 %v1808
    %2540 = vmatpush1.bf16.msra.mxu0 %v1807
    %2541 = vmatprep.subr.bf16.mxu0 %v1816
    %2542 = vmatpush1.bf16.msra.mxu0 %v1815
    %2543 = vmatprep.subr.bf16.mxu0 %v1824
    %2544 = vmatpush1.bf16.msra.mxu0 %v1823
    %2545 = vmatprep.subr.bf16.mxu0 %v1832
    %2546 = vmatpush1.bf16.msra.mxu0 %v1831
    %2547 = vmatprep.subr.bf16.mxu0 %v1840
    %2548 = vmatpush1.bf16.msra.mxu0 %v1839
    %2549 = vmatprep.subr.bf16.mxu0 %v1848
    %2550 = vmatpush1.bf16.msra.mxu0 %v1847
    %2551 = vmatprep.subr.bf16.mxu0 %v1856
    %2552 = vmatpush1.bf16.msra.mxu0 %v1855
    %2553 = vmatprep.subr.bf16.mxu0 %v1864
    %2554 = vmatpush1.bf16.msra.mxu0 %v1863
    %2555 = vmatprep.subr.bf16.mxu0 %v1872
    %2556 = vmatpush1.bf16.msra.mxu0 %v1871
    %2557 = vmatprep.subr.bf16.mxu0 %v1880
    %2558 = vmatpush1.bf16.msra.mxu0 %v1879
    %2559 = vmatprep.mubr.bf16.mxu0 %v596
    %2560 = vmatmul.mubr.bf16.gmra.mrb[0].mxu0 %v595
    %v2561 = vpop.f32.mrb[0].mxu0
    %v2562 = vadd.f32 0.0, %v2561
    %v2563 = vpop.f32.mrb[0].mxu0
    %v2564 = vadd.f32 0.0, %v2563
    %v2565 = vpop.f32.mrb[0].mxu0
    %v2566 = vpop.f32.mrb[0].mxu0
    %2567 = vdwg.mxu0
    %2568 = vmatprep.subr.bf16.mxu0 %v1888
    %2569 = vmatpush1.bf16.msra.mxu0 %v1887
    %2570 = vmatprep.subr.bf16.mxu0 %v1896
    %2571 = vmatpush1.bf16.msra.mxu0 %v1895
    %2572 = vmatprep.subr.bf16.mxu0 %v1904
    %2573 = vmatpush1.bf16.msra.mxu0 %v1903
    %2574 = vmatprep.subr.bf16.mxu0 %v1912
    %2575 = vmatpush1.bf16.msra.mxu0 %v1911
    %2576 = vmatprep.subr.bf16.mxu0 %v1920
    %2577 = vmatpush1.bf16.msra.mxu0 %v1919
    %2578 = vmatprep.subr.bf16.mxu0 %v1928
    %2579 = vmatpush1.bf16.msra.mxu0 %v1927
    %2580 = vmatprep.subr.bf16.mxu0 %v1936
    %2581 = vmatpush1.bf16.msra.mxu0 %v1935
    %2582 = vmatprep.subr.bf16.mxu0 %v1944
    %2583 = vmatpush1.bf16.msra.mxu0 %v1943
    %2584 = vmatprep.subr.bf16.mxu0 %v1952
    %2585 = vmatpush1.bf16.msra.mxu0 %v1951
    %2586 = vmatprep.subr.bf16.mxu0 %v1960
    %2587 = vmatpush1.bf16.msra.mxu0 %v1959
    %2588 = vmatprep.subr.bf16.mxu0 %v1968
    %2589 = vmatpush1.bf16.msra.mxu0 %v1967
    %2590 = vmatprep.subr.bf16.mxu0 %v1976
    %2591 = vmatpush1.bf16.msra.mxu0 %v1975
    %2592 = vmatprep.subr.bf16.mxu0 %v1984
    %2593 = vmatpush1.bf16.msra.mxu0 %v1983
    %2594 = vmatprep.subr.bf16.mxu0 %v1992
    %2595 = vmatpush1.bf16.msra.mxu0 %v1991
    %2596 = vmatprep.subr.bf16.mxu0 %v2000
    %2597 = vmatpush1.bf16.msra.mxu0 %v1999
    %2598 = vmatprep.subr.bf16.mxu0 %v2008
    %2599 = vmatpush1.bf16.msra.mxu0 %v2007
    %2600 = vmatprep.mubr.bf16.mxu0 %v598
    %2601 = vmatmul.mubr.bf16.gmra.mrb[0].mxu0 %v597
    %v2602 = vpop.f32.mrb[0].mxu0
    %v2603 = vadd.f32 %v2562, %v2602
    %v2604 = vpop.f32.mrb[0].mxu0
    %v2605 = vadd.f32 %v2564, %v2604
    %v2606 = vpop.f32.mrb[0].mxu0
    %v2607 = vpop.f32.mrb[0].mxu0
    %2608 = vdwg.mxu0
    %2609 = vmatprep.subr.bf16.mxu0 %v2016
    %2610 = vmatpush1.bf16.msra.mxu0 %v2015
    %2611 = vmatprep.subr.bf16.mxu0 %v2024
    %2612 = vmatpush1.bf16.msra.mxu0 %v2023
    %2613 = vmatprep.subr.bf16.mxu0 %v2032
    %2614 = vmatpush1.bf16.msra.mxu0 %v2031
    %2615 = vmatprep.subr.bf16.mxu0 %v2040
    %2616 = vmatpush1.bf16.msra.mxu0 %v2039
    %2617 = vmatprep.subr.bf16.mxu0 %v2048
    %2618 = vmatpush1.bf16.msra.mxu0 %v2047
    %2619 = vmatprep.subr.bf16.mxu0 %v2056
    %2620 = vmatpush1.bf16.msra.mxu0 %v2055
    %2621 = vmatprep.subr.bf16.mxu0 %v2064
    %2622 = vmatpush1.bf16.msra.mxu0 %v2063
    %2623 = vmatprep.subr.bf16.mxu0 %v2072
    %2624 = vmatpush1.bf16.msra.mxu0 %v2071
    %2625 = vmatprep.subr.bf16.mxu0 %v2080
    %2626 = vmatpush1.bf16.msra.mxu0 %v2079
    %2627 = vmatprep.subr.bf16.mxu0 %v2088
    %2628 = vmatpush1.bf16.msra.mxu0 %v2087
    %2629 = vmatprep.subr.bf16.mxu0 %v2096
    %2630 = vmatpush1.bf16.msra.mxu0 %v2095
    %2631 = vmatprep.subr.bf16.mxu0 %v2104
    %2632 = vmatpush1.bf16.msra.mxu0 %v2103
    %2633 = vmatprep.subr.bf16.mxu0 %v2112
    %2634 = vmatpush1.bf16.msra.mxu0 %v2111
    %2635 = vmatprep.subr.bf16.mxu0 %v2120
    %2636 = vmatpush1.bf16.msra.mxu0 %v2119
    %2637 = vmatprep.subr.bf16.mxu0 %v2128
    %2638 = vmatpush1.bf16.msra.mxu0 %v2127
    %2639 = vmatprep.subr.bf16.mxu0 %v2136
    %2640 = vmatpush1.bf16.msra.mxu0 %v2135
    %2641 = vmatprep.mubr.bf16.mxu0 %v600
    %2642 = vmatmul.mubr.bf16.gmra.mrb[0].mxu0 %v599
    %v2643 = vpop.f32.mrb[0].mxu0
    %v2644 = vadd.f32 %v2603, %v2643
    %v2645 = vpop.f32.mrb[0].mxu0
    %v2646 = vadd.f32 %v2605, %v2645
    %v2647 = vpop.f32.mrb[0].mxu0
    %v2648 = vpop.f32.mrb[0].mxu0
    %2649 = vdwg.mxu0
    %2650 = vmatprep.subr.bf16.mxu0 %v1762
    %2651 = vmatpush1.bf16.msra.mxu0 %v1761
    %2652 = vmatprep.subr.bf16.mxu0 %v1770
    %2653 = vmatpush1.bf16.msra.mxu0 %v1769
    %2654 = vmatprep.subr.bf16.mxu0 %v1778
    %2655 = vmatpush1.bf16.msra.mxu0 %v1777
    %2656 = vmatprep.subr.bf16.mxu0 %v1786
    %2657 = vmatpush1.bf16.msra.mxu0 %v1785
    %2658 = vmatprep.subr.bf16.mxu0 %v1794
    %2659 = vmatpush1.bf16.msra.mxu0 %v1793
    %2660 = vmatprep.subr.bf16.mxu0 %v1802
    %2661 = vmatpush1.bf16.msra.mxu0 %v1801
    %2662 = vmatprep.subr.bf16.mxu0 %v1810
    %2663 = vmatpush1.bf16.msra.mxu0 %v1809
    %2664 = vmatprep.subr.bf16.mxu0 %v1818
    %2665 = vmatpush1.bf16.msra.mxu0 %v1817
    %2666 = vmatprep.subr.bf16.mxu0 %v1826
    %2667 = vmatpush1.bf16.msra.mxu0 %v1825
    %2668 = vmatprep.subr.bf16.mxu0 %v1834
    %2669 = vmatpush1.bf16.msra.mxu0 %v1833
    %2670 = vmatprep.subr.bf16.mxu0 %v1842
    %2671 = vmatpush1.bf16.msra.mxu0 %v1841
    %2672 = vmatprep.subr.bf16.mxu0 %v1850
    %2673 = vmatpush1.bf16.msra.mxu0 %v1849
    %2674 = vmatprep.subr.bf16.mxu0 %v1858
    %2675 = vmatpush1.bf16.msra.mxu0 %v1857
    %2676 = vmatprep.subr.bf16.mxu0 %v1866
    %2677 = vmatpush1.bf16.msra.mxu0 %v1865
    %2678 = vmatprep.subr.bf16.mxu0 %v1874
    %2679 = vmatpush1.bf16.msra.mxu0 %v1873
    %2680 = vmatprep.subr.bf16.mxu0 %v1882
    %2681 = vmatpush1.bf16.msra.mxu0 %v1881
    %2682 = vmatprep.mubr.bf16.mxu0 %v596
    %2683 = vmatmul.mubr.bf16.gmra.mrb[0].mxu0 %v595
    %v2684 = vpop.f32.mrb[0].mxu0
    %v2685 = vadd.f32 0.0, %v2684
    %v2686 = vpop.f32.mrb[0].mxu0
    %v2687 = vadd.f32 0.0, %v2686
    %v2688 = vpop.f32.mrb[0].mxu0
    %v2689 = vpop.f32.mrb[0].mxu0
    %2690 = vdwg.mxu0
    %2691 = vmatprep.subr.bf16.mxu0 %v1890
    %2692 = vmatpush1.bf16.msra.mxu0 %v1889
    %2693 = vmatprep.subr.bf16.mxu0 %v1898
    %2694 = vmatpush1.bf16.msra.mxu0 %v1897
    %2695 = vmatprep.subr.bf16.mxu0 %v1906
    %2696 = vmatpush1.bf16.msra.mxu0 %v1905
    %2697 = vmatprep.subr.bf16.mxu0 %v1914
    %2698 = vmatpush1.bf16.msra.mxu0 %v1913
    %2699 = vmatprep.subr.bf16.mxu0 %v1922
    %2700 = vmatpush1.bf16.msra.mxu0 %v1921
    %2701 = vmatprep.subr.bf16.mxu0 %v1930
    %2702 = vmatpush1.bf16.msra.mxu0 %v1929
    %2703 = vmatprep.subr.bf16.mxu0 %v1938
    %2704 = vmatpush1.bf16.msra.mxu0 %v1937
    %2705 = vmatprep.subr.bf16.mxu0 %v1946
    %2706 = vmatpush1.bf16.msra.mxu0 %v1945
    %2707 = vmatprep.subr.bf16.mxu0 %v1954
    %2708 = vmatpush1.bf16.msra.mxu0 %v1953
    %2709 = vmatprep.subr.bf16.mxu0 %v1962
    %2710 = vmatpush1.bf16.msra.mxu0 %v1961
    %2711 = vmatprep.subr.bf16.mxu0 %v1970
    %2712 = vmatpush1.bf16.msra.mxu0 %v1969
    %2713 = vmatprep.subr.bf16.mxu0 %v1978
    %2714 = vmatpush1.bf16.msra.mxu0 %v1977
    %2715 = vmatprep.subr.bf16.mxu0 %v1986
    %2716 = vmatpush1.bf16.msra.mxu0 %v1985
    %2717 = vmatprep.subr.bf16.mxu0 %v1994
    %2718 = vmatpush1.bf16.msra.mxu0 %v1993
    %2719 = vmatprep.subr.bf16.mxu0 %v2002
    %2720 = vmatpush1.bf16.msra.mxu0 %v2001
    %2721 = vmatprep.subr.bf16.mxu0 %v2010
    %2722 = vmatpush1.bf16.msra.mxu0 %v2009
    %2723 = vmatprep.mubr.bf16.mxu0 %v598
    %2724 = vmatmul.mubr.bf16.gmra.mrb[0].mxu0 %v597
    %v2725 = vpop.f32.mrb[0].mxu0
    %v2726 = vadd.f32 %v2685, %v2725
    %v2727 = vpop.f32.mrb[0].mxu0
    %v2728 = vadd.f32 %v2687, %v2727
    %v2729 = vpop.f32.mrb[0].mxu0
    %v2730 = vpop.f32.mrb[0].mxu0
    %2731 = vdwg.mxu0
    %2732 = vmatprep.subr.bf16.mxu0 %v2018
    %2733 = vmatpush1.bf16.msra.mxu0 %v2017
    %2734 = vmatprep.subr.bf16.mxu0 %v2026
    %2735 = vmatpush1.bf16.msra.mxu0 %v2025
    %2736 = vmatprep.subr.bf16.mxu0 %v2034
    %2737 = vmatpush1.bf16.msra.mxu0 %v2033
    %2738 = vmatprep.subr.bf16.mxu0 %v2042
    %2739 = vmatpush1.bf16.msra.mxu0 %v2041
    %2740 = vmatprep.subr.bf16.mxu0 %v2050
    %2741 = vmatpush1.bf16.msra.mxu0 %v2049
    %2742 = vmatprep.subr.bf16.mxu0 %v2058
    %2743 = vmatpush1.bf16.msra.mxu0 %v2057
    %2744 = vmatprep.subr.bf16.mxu0 %v2066
    %2745 = vmatpush1.bf16.msra.mxu0 %v2065
    %2746 = vmatprep.subr.bf16.mxu0 %v2074
    %2747 = vmatpush1.bf16.msra.mxu0 %v2073
    %2748 = vmatprep.subr.bf16.mxu0 %v2082
    %2749 = vmatpush1.bf16.msra.mxu0 %v2081
    %2750 = vmatprep.subr.bf16.mxu0 %v2090
    %2751 = vmatpush1.bf16.msra.mxu0 %v2089
    %2752 = vmatprep.subr.bf16.mxu0 %v2098
    %2753 = vmatpush1.bf16.msra.mxu0 %v2097
    %2754 = vmatprep.subr.bf16.mxu0 %v2106
    %2755 = vmatpush1.bf16.msra.mxu0 %v2105
    %2756 = vmatprep.subr.bf16.mxu0 %v2114
    %2757 = vmatpush1.bf16.msra.mxu0 %v2113
    %2758 = vmatprep.subr.bf16.mxu0 %v2122
    %2759 = vmatpush1.bf16.msra.mxu0 %v2121
    %2760 = vmatprep.subr.bf16.mxu0 %v2130
    %2761 = vmatpush1.bf16.msra.mxu0 %v2129
    %2762 = vmatprep.subr.bf16.mxu0 %v2138
    %2763 = vmatpush1.bf16.msra.mxu0 %v2137
    %2764 = vmatprep.mubr.bf16.mxu0 %v600
    %2765 = vmatmul.mubr.bf16.gmra.mrb[0].mxu0 %v599
    %v2766 = vpop.f32.mrb[0].mxu0
    %v2767 = vadd.f32 %v2726, %v2766
    %v2768 = vpop.f32.mrb[0].mxu0
    %v2769 = vadd.f32 %v2728, %v2768
    %v2770 = vpop.f32.mrb[0].mxu0
    %v2771 = vpop.f32.mrb[0].mxu0
    %2772 = vdwg.mxu0
    %2773 = vmatprep.subr.bf16.mxu0 %v1764
    %2774 = vmatpush1.bf16.msra.mxu0 %v1763
    %2775 = vmatprep.subr.bf16.mxu0 %v1772
    %2776 = vmatpush1.bf16.msra.mxu0 %v1771
    %2777 = vmatprep.subr.bf16.mxu0 %v1780
    %2778 = vmatpush1.bf16.msra.mxu0 %v1779
    %2779 = vmatprep.subr.bf16.mxu0 %v1788
    %2780 = vmatpush1.bf16.msra.mxu0 %v1787
    %2781 = vmatprep.subr.bf16.mxu0 %v1796
    %2782 = vmatpush1.bf16.msra.mxu0 %v1795
    %2783 = vmatprep.subr.bf16.mxu0 %v1804
    %2784 = vmatpush1.bf16.msra.mxu0 %v1803
    %2785 = vmatprep.subr.bf16.mxu0 %v1812
    %2786 = vmatpush1.bf16.msra.mxu0 %v1811
    %2787 = vmatprep.subr.bf16.mxu0 %v1820
    %2788 = vmatpush1.bf16.msra.mxu0 %v1819
    %2789 = vmatprep.subr.bf16.mxu0 %v1828
    %2790 = vmatpush1.bf16.msra.mxu0 %v1827
    %2791 = vmatprep.subr.bf16.mxu0 %v1836
    %2792 = vmatpush1.bf16.msra.mxu0 %v1835
    %2793 = vmatprep.subr.bf16.mxu0 %v1844
    %2794 = vmatpush1.bf16.msra.mxu0 %v1843
    %2795 = vmatprep.subr.bf16.mxu0 %v1852
    %2796 = vmatpush1.bf16.msra.mxu0 %v1851
    %2797 = vmatprep.subr.bf16.mxu0 %v1860
    %2798 = vmatpush1.bf16.msra.mxu0 %v1859
    %2799 = vmatprep.subr.bf16.mxu0 %v1868
    %2800 = vmatpush1.bf16.msra.mxu0 %v1867
    %2801 = vmatprep.subr.bf16.mxu0 %v1876
    %2802 = vmatpush1.bf16.msra.mxu0 %v1875
    %2803 = vmatprep.subr.bf16.mxu0 %v1884
    %2804 = vmatpush1.bf16.msra.mxu0 %v1883
    %2805 = vmatprep.mubr.bf16.mxu0 %v596
    %2806 = vmatmul.mubr.bf16.gmra.mrb[0].mxu0 %v595
    %v2807 = vpop.f32.mrb[0].mxu0
    %v2808 = vadd.f32 0.0, %v2807
    %v2809 = vpop.f32.mrb[0].mxu0
    %v2810 = vadd.f32 0.0, %v2809
    %v2811 = vpop.f32.mrb[0].mxu0
    %v2812 = vpop.f32.mrb[0].mxu0
    %2813 = vdwg.mxu0
    %2814 = vmatprep.subr.bf16.mxu0 %v1892
    %2815 = vmatpush1.bf16.msra.mxu0 %v1891
    %2816 = vmatprep.subr.bf16.mxu0 %v1900
    %2817 = vmatpush1.bf16.msra.mxu0 %v1899
    %2818 = vmatprep.subr.bf16.mxu0 %v1908
    %2819 = vmatpush1.bf16.msra.mxu0 %v1907
    %2820 = vmatprep.subr.bf16.mxu0 %v1916
    %2821 = vmatpush1.bf16.msra.mxu0 %v1915
    %2822 = vmatprep.subr.bf16.mxu0 %v1924
    %2823 = vmatpush1.bf16.msra.mxu0 %v1923
    %2824 = vmatprep.subr.bf16.mxu0 %v1932
    %2825 = vmatpush1.bf16.msra.mxu0 %v1931
    %2826 = vmatprep.subr.bf16.mxu0 %v1940
    %2827 = vmatpush1.bf16.msra.mxu0 %v1939
    %2828 = vmatprep.subr.bf16.mxu0 %v1948
    %2829 = vmatpush1.bf16.msra.mxu0 %v1947
    %2830 = vmatprep.subr.bf16.mxu0 %v1956
    %2831 = vmatpush1.bf16.msra.mxu0 %v1955
    %2832 = vmatprep.subr.bf16.mxu0 %v1964
    %2833 = vmatpush1.bf16.msra.mxu0 %v1963
    %2834 = vmatprep.subr.bf16.mxu0 %v1972
    %2835 = vmatpush1.bf16.msra.mxu0 %v1971
    %2836 = vmatprep.subr.bf16.mxu0 %v1980
    %2837 = vmatpush1.bf16.msra.mxu0 %v1979
    %2838 = vmatprep.subr.bf16.mxu0 %v1988
    %2839 = vmatpush1.bf16.msra.mxu0 %v1987
    %2840 = vmatprep.subr.bf16.mxu0 %v1996
    %2841 = vmatpush1.bf16.msra.mxu0 %v1995
    %2842 = vmatprep.subr.bf16.mxu0 %v2004
    %2843 = vmatpush1.bf16.msra.mxu0 %v2003
    %2844 = vmatprep.subr.bf16.mxu0 %v2012
    %2845 = vmatpush1.bf16.msra.mxu0 %v2011
    %2846 = vmatprep.mubr.bf16.mxu0 %v598
    %2847 = vmatmul.mubr.bf16.gmra.mrb[0].mxu0 %v597
    %v2848 = vpop.f32.mrb[0].mxu0
    %v2849 = vadd.f32 %v2808, %v2848
    %v2850 = vpop.f32.mrb[0].mxu0
    %v2851 = vadd.f32 %v2810, %v2850
    %v2852 = vpop.f32.mrb[0].mxu0
    %v2853 = vpop.f32.mrb[0].mxu0
    %2854 = vdwg.mxu0
    %2855 = vmatprep.subr.bf16.mxu0 %v2020
    %2856 = vmatpush1.bf16.msra.mxu0 %v2019
    %2857 = vmatprep.subr.bf16.mxu0 %v2028
    %2858 = vmatpush1.bf16.msra.mxu0 %v2027
    %2859 = vmatprep.subr.bf16.mxu0 %v2036
    %2860 = vmatpush1.bf16.msra.mxu0 %v2035
    %2861 = vmatprep.subr.bf16.mxu0 %v2044
    %2862 = vmatpush1.bf16.msra.mxu0 %v2043
    %2863 = vmatprep.subr.bf16.mxu0 %v2052
    %2864 = vmatpush1.bf16.msra.mxu0 %v2051
    %2865 = vmatprep.subr.bf16.mxu0 %v2060
    %2866 = vmatpush1.bf16.msra.mxu0 %v2059
    %2867 = vmatprep.subr.bf16.mxu0 %v2068
    %2868 = vmatpush1.bf16.msra.mxu0 %v2067
    %2869 = vmatprep.subr.bf16.mxu0 %v2076
    %2870 = vmatpush1.bf16.msra.mxu0 %v2075
    %2871 = vmatprep.subr.bf16.mxu0 %v2084
    %2872 = vmatpush1.bf16.msra.mxu0 %v2083
    %2873 = vmatprep.subr.bf16.mxu0 %v2092
    %2874 = vmatpush1.bf16.msra.mxu0 %v2091
    %2875 = vmatprep.subr.bf16.mxu0 %v2100
    %2876 = vmatpush1.bf16.msra.mxu0 %v2099
    %2877 = vmatprep.subr.bf16.mxu0 %v2108
    %2878 = vmatpush1.bf16.msra.mxu0 %v2107
    %2879 = vmatprep.subr.bf16.mxu0 %v2116
    %2880 = vmatpush1.bf16.msra.mxu0 %v2115
    %2881 = vmatprep.subr.bf16.mxu0 %v2124
    %2882 = vmatpush1.bf16.msra.mxu0 %v2123
    %2883 = vmatprep.subr.bf16.mxu0 %v2132
    %2884 = vmatpush1.bf16.msra.mxu0 %v2131
    %2885 = vmatprep.subr.bf16.mxu0 %v2140
    %2886 = vmatpush1.bf16.msra.mxu0 %v2139
    %2887 = vmatprep.mubr.bf16.mxu0 %v600
    %2888 = vmatmul.mubr.bf16.gmra.mrb[0].mxu0 %v599
    %v2889 = vpop.f32.mrb[0].mxu0
    %v2890 = vadd.f32 %v2849, %v2889
    %v2891 = vpop.f32.mrb[0].mxu0
    %v2892 = vadd.f32 %v2851, %v2891
    %v2893 = vpop.f32.mrb[0].mxu0
    %v2894 = vpop.f32.mrb[0].mxu0
    %2895 = vdwg.mxu0
    %2896 = vmatprep.subr.bf16.mxu0 %v1766
    %2897 = vmatpush1.bf16.msra.mxu0 %v1765
    %2898 = vmatprep.subr.bf16.mxu0 %v1774
    %2899 = vmatpush1.bf16.msra.mxu0 %v1773
    %2900 = vmatprep.subr.bf16.mxu0 %v1782
    %2901 = vmatpush1.bf16.msra.mxu0 %v1781
    %2902 = vmatprep.subr.bf16.mxu0 %v1790
    %2903 = vmatpush1.bf16.msra.mxu0 %v1789
    %2904 = vmatprep.subr.bf16.mxu0 %v1798
    %2905 = vmatpush1.bf16.msra.mxu0 %v1797
    %2906 = vmatprep.subr.bf16.mxu0 %v1806
    %2907 = vmatpush1.bf16.msra.mxu0 %v1805
    %2908 = vmatprep.subr.bf16.mxu0 %v1814
    %2909 = vmatpush1.bf16.msra.mxu0 %v1813
    %2910 = vmatprep.subr.bf16.mxu0 %v1822
    %2911 = vmatpush1.bf16.msra.mxu0 %v1821
    %2912 = vmatprep.subr.bf16.mxu0 %v1830
    %2913 = vmatpush1.bf16.msra.mxu0 %v1829
    %2914 = vmatprep.subr.bf16.mxu0 %v1838
    %2915 = vmatpush1.bf16.msra.mxu0 %v1837
    %2916 = vmatprep.subr.bf16.mxu0 %v1846
    %2917 = vmatpush1.bf16.msra.mxu0 %v1845
    %2918 = vmatprep.subr.bf16.mxu0 %v1854
    %2919 = vmatpush1.bf16.msra.mxu0 %v1853
    %2920 = vmatprep.subr.bf16.mxu0 %v1862
    %2921 = vmatpush1.bf16.msra.mxu0 %v1861
    %2922 = vmatprep.subr.bf16.mxu0 %v1870
    %2923 = vmatpush1.bf16.msra.mxu0 %v1869
    %2924 = vmatprep.subr.bf16.mxu0 %v1878
    %2925 = vmatpush1.bf16.msra.mxu0 %v1877
    %2926 = vmatprep.subr.bf16.mxu0 %v1886
    %2927 = vmatpush1.bf16.msra.mxu0 %v1885
    %2928 = vmatprep.mubr.bf16.mxu0 %v596
    %2929 = vmatmul.mubr.bf16.gmra.mrb[0].mxu0 %v595
    %v2930 = vpop.f32.mrb[0].mxu0
    %v2931 = vadd.f32 0.0, %v2930
    %v2932 = vpop.f32.mrb[0].mxu0
    %v2933 = vadd.f32 0.0, %v2932
    %v2934 = vpop.f32.mrb[0].mxu0
    %v2935 = vpop.f32.mrb[0].mxu0
    %2936 = vdwg.mxu0
    %2937 = vmatprep.subr.bf16.mxu0 %v1894
    %2938 = vmatpush1.bf16.msra.mxu0 %v1893
    %2939 = vmatprep.subr.bf16.mxu0 %v1902
    %2940 = vmatpush1.bf16.msra.mxu0 %v1901
    %2941 = vmatprep.subr.bf16.mxu0 %v1910
    %2942 = vmatpush1.bf16.msra.mxu0 %v1909
    %2943 = vmatprep.subr.bf16.mxu0 %v1918
    %2944 = vmatpush1.bf16.msra.mxu0 %v1917
    %2945 = vmatprep.subr.bf16.mxu0 %v1926
    %2946 = vmatpush1.bf16.msra.mxu0 %v1925
    %2947 = vmatprep.subr.bf16.mxu0 %v1934
    %2948 = vmatpush1.bf16.msra.mxu0 %v1933
    %2949 = vmatprep.subr.bf16.mxu0 %v1942
    %2950 = vmatpush1.bf16.msra.mxu0 %v1941
    %2951 = vmatprep.subr.bf16.mxu0 %v1950
    %2952 = vmatpush1.bf16.msra.mxu0 %v1949
    %2953 = vmatprep.subr.bf16.mxu0 %v1958
    %2954 = vmatpush1.bf16.msra.mxu0 %v1957
    %2955 = vmatprep.subr.bf16.mxu0 %v1966
    %2956 = vmatpush1.bf16.msra.mxu0 %v1965
    %2957 = vmatprep.subr.bf16.mxu0 %v1974
    %2958 = vmatpush1.bf16.msra.mxu0 %v1973
    %2959 = vmatprep.subr.bf16.mxu0 %v1982
    %2960 = vmatpush1.bf16.msra.mxu0 %v1981
    %2961 = vmatprep.subr.bf16.mxu0 %v1990
    %2962 = vmatpush1.bf16.msra.mxu0 %v1989
    %2963 = vmatprep.subr.bf16.mxu0 %v1998
    %2964 = vmatpush1.bf16.msra.mxu0 %v1997
    %2965 = vmatprep.subr.bf16.mxu0 %v2006
    %2966 = vmatpush1.bf16.msra.mxu0 %v2005
    %2967 = vmatprep.subr.bf16.mxu0 %v2014
    %2968 = vmatpush1.bf16.msra.mxu0 %v2013
    %2969 = vmatprep.mubr.bf16.mxu0 %v598
    %2970 = vmatmul.mubr.bf16.gmra.mrb[0].mxu0 %v597
    %v2971 = vpop.f32.mrb[0].mxu0
    %v2972 = vadd.f32 %v2931, %v2971
    %v2973 = vpop.f32.mrb[0].mxu0
    %v2974 = vadd.f32 %v2933, %v2973
    %v2975 = vpop.f32.mrb[0].mxu0
    %v2976 = vpop.f32.mrb[0].mxu0
    %2977 = vdwg.mxu0
    %2978 = vmatprep.subr.bf16.mxu0 %v2022
    %2979 = vmatpush1.bf16.msra.mxu0 %v2021
    %2980 = vmatprep.subr.bf16.mxu0 %v2030
    %2981 = vmatpush1.bf16.msra.mxu0 %v2029
    %2982 = vmatprep.subr.bf16.mxu0 %v2038
    %2983 = vmatpush1.bf16.msra.mxu0 %v2037
    %2984 = vmatprep.subr.bf16.mxu0 %v2046
    %2985 = vmatpush1.bf16.msra.mxu0 %v2045
    %2986 = vmatprep.subr.bf16.mxu0 %v2054
    %2987 = vmatpush1.bf16.msra.mxu0 %v2053
    %2988 = vmatprep.subr.bf16.mxu0 %v2062
    %2989 = vmatpush1.bf16.msra.mxu0 %v2061
    %2990 = vmatprep.subr.bf16.mxu0 %v2070
    %2991 = vmatpush1.bf16.msra.mxu0 %v2069
    %2992 = vmatprep.subr.bf16.mxu0 %v2078
    %2993 = vmatpush1.bf16.msra.mxu0 %v2077
    %2994 = vmatprep.subr.bf16.mxu0 %v2086
    %2995 = vmatpush1.bf16.msra.mxu0 %v2085
    %2996 = vmatprep.subr.bf16.mxu0 %v2094
    %2997 = vmatpush1.bf16.msra.mxu0 %v2093
    %2998 = vmatprep.subr.bf16.mxu0 %v2102
    %2999 = vmatpush1.bf16.msra.mxu0 %v2101
    %3000 = vmatprep.subr.bf16.mxu0 %v2110
    %3001 = vmatpush1.bf16.msra.mxu0 %v2109
    %3002 = vmatprep.subr.bf16.mxu0 %v2118
    %3003 = vmatpush1.bf16.msra.mxu0 %v2117
    %3004 = vmatprep.subr.bf16.mxu0 %v2126
    %3005 = vmatpush1.bf16.msra.mxu0 %v2125
    %3006 = vmatprep.subr.bf16.mxu0 %v2134
    %3007 = vmatpush1.bf16.msra.mxu0 %v2133
    %3008 = vmatprep.subr.bf16.mxu0 %v2142
    %3009 = vmatpush1.bf16.msra.mxu0 %v2141
    %3010 = vmatprep.mubr.bf16.mxu0 %v600
    %3011 = vmatmul.mubr.bf16.gmra.mrb[0].mxu0 %v599
    %v3012 = vpop.f32.mrb[0].mxu0
    %v3013 = vadd.f32 %v2972, %v3012
    %v3014 = vpop.f32.mrb[0].mxu0
    %v3015 = vadd.f32 %v2974, %v3014
    %v3016 = vpop.f32.mrb[0].mxu0
    %v3017 = vpop.f32.mrb[0].mxu0
    %3018 = vdwg.mxu0
    %v3019 = vadd.f32 %v191, %v2644
    %v3020 = vadd.f32 %v192, %v2646
    %v3021 = vadd.f32 %v193, %v2767
    %v3022 = vadd.f32 %v194, %v2769
    %v3023 = vadd.f32 %v195, %v2890
    %v3024 = vadd.f32 %v196, %v2892
    %v3025 = vadd.f32 %v197, %v3013
    %v3026 = vadd.f32 %v198, %v3015
    %3027 = vst [vmem:[#allocation2] sm:$0xff] %v3019
    %3028 = vst [vmem:[#allocation2 + $0x8] sm:$0xff] %v3020
    %3029 = vst [vmem:[#allocation2 + $0x10] sm:$0xff] %v3021
    %3030 = vst [vmem:[#allocation2 + $0x18] sm:$0xff] %v3022
    %3031 = vst [vmem:[#allocation2 + $0x20] sm:$0xff] %v3023
    %3032 = vst [vmem:[#allocation2 + $0x28] sm:$0xff] %v3024
    %3033 = vst [vmem:[#allocation2 + $0x30] sm:$0xff] %v3025
    %3034 = vst [vmem:[#allocation2 + $0x38] sm:$0xff] %v3026
    // Predicated region
    $region94: #{tpu_custom_call.1} parent=1 // pred_check
      %p3035 = pneg %p179
    $region95: #{tpu_custom_call.1} parent=1 // pred_check_branch
      %3037 = sbr.rel (%p3035) target = $region97
    $region96: #{tpu_custom_call.1} parent=1 // pred_region
      %v3038 = vld [vmem:[#allocation2] sm:$0xff]
      %v3039 = vld [vmem:[#allocation2 + $0x8] sm:$0xff]
      %v3040 = vld [vmem:[#allocation2 + $0x10] sm:$0xff]
      %v3041 = vld [vmem:[#allocation2 + $0x18] sm:$0xff]
      %v3042 = vld [vmem:[#allocation2 + $0x20] sm:$0xff]
      %v3043 = vld [vmem:[#allocation2 + $0x28] sm:$0xff]
      %v3044 = vld [vmem:[#allocation2 + $0x30] sm:$0xff]
      %v3045 = vld [vmem:[#allocation2 + $0x38] sm:$0xff]
      %v3046 = vld [vmem:[#allocation8] sm:$0xff]
      %v3048 = vlaneseq
      %v3049 = vshrl.u32 %v3048, 7
      %v3050 = vsub.s32 0, %v3049
      %v3051 = vrot.slane %v3046, %v3050
      %v3052 = vlaneseq
      %v3053 = vshrl.u32 %v3052, 7
      %v3054 = vsub.s32 1, %v3053
      %v3055 = vrot.slane %v3046, %v3054
      %v3056 = vlaneseq
      %v3057 = vshrl.u32 %v3056, 7
      %v3058 = vsub.s32 2, %v3057
      %v3059 = vrot.slane %v3046, %v3058
      %v3060 = vlaneseq
      %v3061 = vshrl.u32 %v3060, 7
      %v3062 = vsub.s32 3, %v3061
      %v3063 = vrot.slane %v3046, %v3062
      %v3064 = vlaneseq
      %v3065 = vshrl.u32 %v3064, 7
      %v3066 = vsub.s32 4, %v3065
      %v3067 = vrot.slane %v3046, %v3066
      %v3068 = vlaneseq
      %v3069 = vshrl.u32 %v3068, 7
      %v3070 = vsub.s32 5, %v3069
      %v3071 = vrot.slane %v3046, %v3070
      %v3072 = vlaneseq
      %v3073 = vshrl.u32 %v3072, 7
      %v3074 = vsub.s32 6, %v3073
      %v3075 = vrot.slane %v3046, %v3074
      %v3076 = vlaneseq
      %v3077 = vshrl.u32 %v3076, 7
      %v3078 = vsub.s32 7, %v3077
      %v3079 = vrot.slane %v3046, %v3078
      %v3088 = vadd.f32 %v3038, %v3051
      %v3089 = vadd.f32 %v3039, %v3055
      %v3090 = vadd.f32 %v3040, %v3059
      %v3091 = vadd.f32 %v3041, %v3063
      %v3092 = vadd.f32 %v3042, %v3067
      %v3093 = vadd.f32 %v3043, %v3071
      %v3094 = vadd.f32 %v3044, %v3075
      %v3095 = vadd.f32 %v3045, %v3079
      %v3096 = vmax.f32 %v3088, 0.0
      %v3097 = vmax.f32 %v3089, 0.0
      %v3098 = vmax.f32 %v3090, 0.0
      %v3099 = vmax.f32 %v3091, 0.0
      %v3100 = vmax.f32 %v3092, 0.0
      %v3101 = vmax.f32 %v3093, 0.0
      %v3102 = vmax.f32 %v3094, 0.0
      %v3103 = vmax.f32 %v3095, 0.0
      %v3104 = vpack.c.bf16 %v3096, %v3096
      %v3105 = vpack.c.bf16 %v3097, %v3097
      %v3106 = vpack.c.bf16 %v3098, %v3098
      %v3107 = vpack.c.bf16 %v3099, %v3099
      %v3108 = vpack.c.bf16 %v3100, %v3100
      %v3109 = vpack.c.bf16 %v3101, %v3101
      %v3110 = vpack.c.bf16 %v3102, %v3102
      %v3111 = vpack.c.bf16 %v3103, %v3103
      %v3112 = vld [vmem:[#allocation9] sm:$0xff]
      %v3113 = vld [vmem:[#allocation9 + $0x8] sm:$0xff]
      %v3114 = vld [vmem:[#allocation9 + $0x10] sm:$0xff]
      %v3115 = vld [vmem:[#allocation9 + $0x18] sm:$0xff]
      %v3116 = vld [vmem:[#allocation9 + $0x20] sm:$0xff]
      %v3117 = vld [vmem:[#allocation9 + $0x28] sm:$0xff]
      %v3118 = vld [vmem:[#allocation9 + $0x30] sm:$0xff]
      %v3119 = vld [vmem:[#allocation9 + $0x38] sm:$0xff]
      %v3120 = vld [vmem:[#allocation9 + $0x40] sm:$0xff]
      %v3121 = vld [vmem:[#allocation9 + $0x48] sm:$0xff]
      %v3122 = vld [vmem:[#allocation9 + $0x50] sm:$0xff]
      %v3123 = vld [vmem:[#allocation9 + $0x58] sm:$0xff]
      %v3124 = vld [vmem:[#allocation9 + $0x60] sm:$0xff]
      %v3125 = vld [vmem:[#allocation9 + $0x68] sm:$0xff]
      %v3126 = vld [vmem:[#allocation9 + $0x70] sm:$0xff]
      %v3127 = vld [vmem:[#allocation9 + $0x78] sm:$0xff]
      %v3128 = vld [vmem:[#allocation9 + $0x80] sm:$0xff]
      %v3129 = vld [vmem:[#allocation9 + $0x88] sm:$0xff]
      %v3130 = vld [vmem:[#allocation9 + $0x90] sm:$0xff]
      %v3131 = vld [vmem:[#allocation9 + $0x98] sm:$0xff]
      %v3132 = vld [vmem:[#allocation9 + $0xa0] sm:$0xff]
      %v3133 = vld [vmem:[#allocation9 + $0xa8] sm:$0xff]
      %v3134 = vld [vmem:[#allocation9 + $0xb0] sm:$0xff]
      %v3135 = vld [vmem:[#allocation9 + $0xb8] sm:$0xff]
      %v3136 = vld [vmem:[#allocation9 + $0xc0] sm:$0xff]
      %v3137 = vld [vmem:[#allocation9 + $0xc8] sm:$0xff]
      %v3138 = vld [vmem:[#allocation9 + $0xd0] sm:$0xff]
      %v3139 = vld [vmem:[#allocation9 + $0xd8] sm:$0xff]
      %v3140 = vld [vmem:[#allocation9 + $0xe0] sm:$0xff]
      %v3141 = vld [vmem:[#allocation9 + $0xe8] sm:$0xff]
      %v3142 = vld [vmem:[#allocation9 + $0xf0] sm:$0xff]
      %v3143 = vld [vmem:[#allocation9 + $0xf8] sm:$0xff]
      %v3144 = vld [vmem:[#allocation9 + $0x100] sm:$0xff]
      %v3145 = vld [vmem:[#allocation9 + $0x108] sm:$0xff]
      %v3146 = vld [vmem:[#allocation9 + $0x110] sm:$0xff]
      %v3147 = vld [vmem:[#allocation9 + $0x118] sm:$0xff]
      %v3148 = vld [vmem:[#allocation9 + $0x120] sm:$0xff]
      %v3149 = vld [vmem:[#allocation9 + $0x128] sm:$0xff]
      %v3150 = vld [vmem:[#allocation9 + $0x130] sm:$0xff]
      %v3151 = vld [vmem:[#allocation9 + $0x138] sm:$0xff]
      %v3152 = vld [vmem:[#allocation9 + $0x140] sm:$0xff]
      %v3153 = vld [vmem:[#allocation9 + $0x148] sm:$0xff]
      %v3154 = vld [vmem:[#allocation9 + $0x150] sm:$0xff]
      %v3155 = vld [vmem:[#allocation9 + $0x158] sm:$0xff]
      %v3156 = vld [vmem:[#allocation9 + $0x160] sm:$0xff]
      %v3157 = vld [vmem:[#allocation9 + $0x168] sm:$0xff]
      %v3158 = vld [vmem:[#allocation9 + $0x170] sm:$0xff]
      %v3159 = vld [vmem:[#allocation9 + $0x178] sm:$0xff]
      %v3160 = vld [vmem:[#allocation9 + $0x180] sm:$0xff]
      %v3161 = vld [vmem:[#allocation9 + $0x188] sm:$0xff]
      %v3162 = vld [vmem:[#allocation9 + $0x190] sm:$0xff]
      %v3163 = vld [vmem:[#allocation9 + $0x198] sm:$0xff]
      %v3164 = vld [vmem:[#allocation9 + $0x1a0] sm:$0xff]
      %v3165 = vld [vmem:[#allocation9 + $0x1a8] sm:$0xff]
      %v3166 = vld [vmem:[#allocation9 + $0x1b0] sm:$0xff]
      %v3167 = vld [vmem:[#allocation9 + $0x1b8] sm:$0xff]
      %v3168 = vld [vmem:[#allocation9 + $0x1c0] sm:$0xff]
      %v3169 = vld [vmem:[#allocation9 + $0x1c8] sm:$0xff]
      %v3170 = vld [vmem:[#allocation9 + $0x1d0] sm:$0xff]
      %v3171 = vld [vmem:[#allocation9 + $0x1d8] sm:$0xff]
      %v3172 = vld [vmem:[#allocation9 + $0x1e0] sm:$0xff]
      %v3173 = vld [vmem:[#allocation9 + $0x1e8] sm:$0xff]
      %v3174 = vld [vmem:[#allocation9 + $0x1f0] sm:$0xff]
      %v3175 = vld [vmem:[#allocation9 + $0x1f8] sm:$0xff]
      %v3176 = vld [vmem:[#allocation9 + $0x200] sm:$0xff]
      %v3177 = vld [vmem:[#allocation9 + $0x208] sm:$0xff]
      %v3178 = vld [vmem:[#allocation9 + $0x210] sm:$0xff]
      %v3179 = vld [vmem:[#allocation9 + $0x218] sm:$0xff]
      %v3180 = vld [vmem:[#allocation9 + $0x220] sm:$0xff]
      %v3181 = vld [vmem:[#allocation9 + $0x228] sm:$0xff]
      %v3182 = vld [vmem:[#allocation9 + $0x230] sm:$0xff]
      %v3183 = vld [vmem:[#allocation9 + $0x238] sm:$0xff]
      %v3184 = vld [vmem:[#allocation9 + $0x240] sm:$0xff]
      %v3185 = vld [vmem:[#allocation9 + $0x248] sm:$0xff]
      %v3186 = vld [vmem:[#allocation9 + $0x250] sm:$0xff]
      %v3187 = vld [vmem:[#allocation9 + $0x258] sm:$0xff]
      %v3188 = vld [vmem:[#allocation9 + $0x260] sm:$0xff]
      %v3189 = vld [vmem:[#allocation9 + $0x268] sm:$0xff]
      %v3190 = vld [vmem:[#allocation9 + $0x270] sm:$0xff]
      %v3191 = vld [vmem:[#allocation9 + $0x278] sm:$0xff]
      %v3192 = vld [vmem:[#allocation9 + $0x280] sm:$0xff]
      %v3193 = vld [vmem:[#allocation9 + $0x288] sm:$0xff]
      %v3194 = vld [vmem:[#allocation9 + $0x290] sm:$0xff]
      %v3195 = vld [vmem:[#allocation9 + $0x298] sm:$0xff]
      %v3196 = vld [vmem:[#allocation9 + $0x2a0] sm:$0xff]
      %v3197 = vld [vmem:[#allocation9 + $0x2a8] sm:$0xff]
      %v3198 = vld [vmem:[#allocation9 + $0x2b0] sm:$0xff]
      %v3199 = vld [vmem:[#allocation9 + $0x2b8] sm:$0xff]
      %v3200 = vld [vmem:[#allocation9 + $0x2c0] sm:$0xff]
      %v3201 = vld [vmem:[#allocation9 + $0x2c8] sm:$0xff]
      %v3202 = vld [vmem:[#allocation9 + $0x2d0] sm:$0xff]
      %v3203 = vld [vmem:[#allocation9 + $0x2d8] sm:$0xff]
      %v3204 = vld [vmem:[#allocation9 + $0x2e0] sm:$0xff]
      %v3205 = vld [vmem:[#allocation9 + $0x2e8] sm:$0xff]
      %v3206 = vld [vmem:[#allocation9 + $0x2f0] sm:$0xff]
      %v3207 = vld [vmem:[#allocation9 + $0x2f8] sm:$0xff]
      %v3208 = vld [vmem:[#allocation9 + $0x300] sm:$0xff]
      %v3209 = vld [vmem:[#allocation9 + $0x308] sm:$0xff]
      %v3210 = vld [vmem:[#allocation9 + $0x310] sm:$0xff]
      %v3211 = vld [vmem:[#allocation9 + $0x318] sm:$0xff]
      %v3212 = vld [vmem:[#allocation9 + $0x320] sm:$0xff]
      %v3213 = vld [vmem:[#allocation9 + $0x328] sm:$0xff]
      %v3214 = vld [vmem:[#allocation9 + $0x330] sm:$0xff]
      %v3215 = vld [vmem:[#allocation9 + $0x338] sm:$0xff]
      %v3216 = vld [vmem:[#allocation9 + $0x340] sm:$0xff]
      %v3217 = vld [vmem:[#allocation9 + $0x348] sm:$0xff]
      %v3218 = vld [vmem:[#allocation9 + $0x350] sm:$0xff]
      %v3219 = vld [vmem:[#allocation9 + $0x358] sm:$0xff]
      %v3220 = vld [vmem:[#allocation9 + $0x360] sm:$0xff]
      %v3221 = vld [vmem:[#allocation9 + $0x368] sm:$0xff]
      %v3222 = vld [vmem:[#allocation9 + $0x370] sm:$0xff]
      %v3223 = vld [vmem:[#allocation9 + $0x378] sm:$0xff]
      %v3224 = vld [vmem:[#allocation9 + $0x380] sm:$0xff]
      %v3225 = vld [vmem:[#allocation9 + $0x388] sm:$0xff]
      %v3226 = vld [vmem:[#allocation9 + $0x390] sm:$0xff]
      %v3227 = vld [vmem:[#allocation9 + $0x398] sm:$0xff]
      %v3228 = vld [vmem:[#allocation9 + $0x3a0] sm:$0xff]
      %v3229 = vld [vmem:[#allocation9 + $0x3a8] sm:$0xff]
      %v3230 = vld [vmem:[#allocation9 + $0x3b0] sm:$0xff]
      %v3231 = vld [vmem:[#allocation9 + $0x3b8] sm:$0xff]
      %v3232 = vld [vmem:[#allocation9 + $0x3c0] sm:$0xff]
      %v3233 = vld [vmem:[#allocation9 + $0x3c8] sm:$0xff]
      %v3234 = vld [vmem:[#allocation9 + $0x3d0] sm:$0xff]
      %v3235 = vld [vmem:[#allocation9 + $0x3d8] sm:$0xff]
      %v3236 = vld [vmem:[#allocation9 + $0x3e0] sm:$0xff]
      %v3237 = vld [vmem:[#allocation9 + $0x3e8] sm:$0xff]
      %v3238 = vld [vmem:[#allocation9 + $0x3f0] sm:$0xff]
      %v3239 = vld [vmem:[#allocation9 + $0x3f8] sm:$0xff]
      %v3240 = vld [vmem:[#allocation9 + $0x400] sm:$0xff]
      %v3241 = vld [vmem:[#allocation9 + $0x408] sm:$0xff]
      %v3242 = vld [vmem:[#allocation9 + $0x410] sm:$0xff]
      %v3243 = vld [vmem:[#allocation9 + $0x418] sm:$0xff]
      %v3244 = vld [vmem:[#allocation9 + $0x420] sm:$0xff]
      %v3245 = vld [vmem:[#allocation9 + $0x428] sm:$0xff]
      %v3246 = vld [vmem:[#allocation9 + $0x430] sm:$0xff]
      %v3247 = vld [vmem:[#allocation9 + $0x438] sm:$0xff]
      %v3248 = vld [vmem:[#allocation9 + $0x440] sm:$0xff]
      %v3249 = vld [vmem:[#allocation9 + $0x448] sm:$0xff]
      %v3250 = vld [vmem:[#allocation9 + $0x450] sm:$0xff]
      %v3251 = vld [vmem:[#allocation9 + $0x458] sm:$0xff]
      %v3252 = vld [vmem:[#allocation9 + $0x460] sm:$0xff]
      %v3253 = vld [vmem:[#allocation9 + $0x468] sm:$0xff]
      %v3254 = vld [vmem:[#allocation9 + $0x470] sm:$0xff]
      %v3255 = vld [vmem:[#allocation9 + $0x478] sm:$0xff]
      %v3256 = vld [vmem:[#allocation9 + $0x480] sm:$0xff]
      %v3257 = vld [vmem:[#allocation9 + $0x488] sm:$0xff]
      %v3258 = vld [vmem:[#allocation9 + $0x490] sm:$0xff]
      %v3259 = vld [vmem:[#allocation9 + $0x498] sm:$0xff]
      %v3260 = vld [vmem:[#allocation9 + $0x4a0] sm:$0xff]
      %v3261 = vld [vmem:[#allocation9 + $0x4a8] sm:$0xff]
      %v3262 = vld [vmem:[#allocation9 + $0x4b0] sm:$0xff]
      %v3263 = vld [vmem:[#allocation9 + $0x4b8] sm:$0xff]
      %v3264 = vld [vmem:[#allocation9 + $0x4c0] sm:$0xff]
      %v3265 = vld [vmem:[#allocation9 + $0x4c8] sm:$0xff]
      %v3266 = vld [vmem:[#allocation9 + $0x4d0] sm:$0xff]
      %v3267 = vld [vmem:[#allocation9 + $0x4d8] sm:$0xff]
      %v3268 = vld [vmem:[#allocation9 + $0x4e0] sm:$0xff]
      %v3269 = vld [vmem:[#allocation9 + $0x4e8] sm:$0xff]
      %v3270 = vld [vmem:[#allocation9 + $0x4f0] sm:$0xff]
      %v3271 = vld [vmem:[#allocation9 + $0x4f8] sm:$0xff]
      %v3272 = vld [vmem:[#allocation9 + $0x500] sm:$0xff]
      %v3273 = vld [vmem:[#allocation9 + $0x508] sm:$0xff]
      %v3274 = vld [vmem:[#allocation9 + $0x510] sm:$0xff]
      %v3275 = vld [vmem:[#allocation9 + $0x518] sm:$0xff]
      %v3276 = vld [vmem:[#allocation9 + $0x520] sm:$0xff]
      %v3277 = vld [vmem:[#allocation9 + $0x528] sm:$0xff]
      %v3278 = vld [vmem:[#allocation9 + $0x530] sm:$0xff]
      %v3279 = vld [vmem:[#allocation9 + $0x538] sm:$0xff]
      %v3280 = vld [vmem:[#allocation9 + $0x540] sm:$0xff]
      %v3281 = vld [vmem:[#allocation9 + $0x548] sm:$0xff]
      %v3282 = vld [vmem:[#allocation9 + $0x550] sm:$0xff]
      %v3283 = vld [vmem:[#allocation9 + $0x558] sm:$0xff]
      %v3284 = vld [vmem:[#allocation9 + $0x560] sm:$0xff]
      %v3285 = vld [vmem:[#allocation9 + $0x568] sm:$0xff]
      %v3286 = vld [vmem:[#allocation9 + $0x570] sm:$0xff]
      %v3287 = vld [vmem:[#allocation9 + $0x578] sm:$0xff]
      %v3288 = vld [vmem:[#allocation9 + $0x580] sm:$0xff]
      %v3289 = vld [vmem:[#allocation9 + $0x588] sm:$0xff]
      %v3290 = vld [vmem:[#allocation9 + $0x590] sm:$0xff]
      %v3291 = vld [vmem:[#allocation9 + $0x598] sm:$0xff]
      %v3292 = vld [vmem:[#allocation9 + $0x5a0] sm:$0xff]
      %v3293 = vld [vmem:[#allocation9 + $0x5a8] sm:$0xff]
      %v3294 = vld [vmem:[#allocation9 + $0x5b0] sm:$0xff]
      %v3295 = vld [vmem:[#allocation9 + $0x5b8] sm:$0xff]
      %v3296 = vld [vmem:[#allocation9 + $0x5c0] sm:$0xff]
      %v3297 = vld [vmem:[#allocation9 + $0x5c8] sm:$0xff]
      %v3298 = vld [vmem:[#allocation9 + $0x5d0] sm:$0xff]
      %v3299 = vld [vmem:[#allocation9 + $0x5d8] sm:$0xff]
      %v3300 = vld [vmem:[#allocation9 + $0x5e0] sm:$0xff]
      %v3301 = vld [vmem:[#allocation9 + $0x5e8] sm:$0xff]
      %v3302 = vld [vmem:[#allocation9 + $0x5f0] sm:$0xff]
      %v3303 = vld [vmem:[#allocation9 + $0x5f8] sm:$0xff]
      %v3304 = vld [vmem:[#allocation9 + $0x600] sm:$0xff]
      %v3305 = vld [vmem:[#allocation9 + $0x608] sm:$0xff]
      %v3306 = vld [vmem:[#allocation9 + $0x610] sm:$0xff]
      %v3307 = vld [vmem:[#allocation9 + $0x618] sm:$0xff]
      %v3308 = vld [vmem:[#allocation9 + $0x620] sm:$0xff]
      %v3309 = vld [vmem:[#allocation9 + $0x628] sm:$0xff]
      %v3310 = vld [vmem:[#allocation9 + $0x630] sm:$0xff]
      %v3311 = vld [vmem:[#allocation9 + $0x638] sm:$0xff]
      %v3312 = vld [vmem:[#allocation9 + $0x640] sm:$0xff]
      %v3313 = vld [vmem:[#allocation9 + $0x648] sm:$0xff]
      %v3314 = vld [vmem:[#allocation9 + $0x650] sm:$0xff]
      %v3315 = vld [vmem:[#allocation9 + $0x658] sm:$0xff]
      %v3316 = vld [vmem:[#allocation9 + $0x660] sm:$0xff]
      %v3317 = vld [vmem:[#allocation9 + $0x668] sm:$0xff]
      %v3318 = vld [vmem:[#allocation9 + $0x670] sm:$0xff]
      %v3319 = vld [vmem:[#allocation9 + $0x678] sm:$0xff]
      %v3320 = vld [vmem:[#allocation9 + $0x680] sm:$0xff]
      %v3321 = vld [vmem:[#allocation9 + $0x688] sm:$0xff]
      %v3322 = vld [vmem:[#allocation9 + $0x690] sm:$0xff]
      %v3323 = vld [vmem:[#allocation9 + $0x698] sm:$0xff]
      %v3324 = vld [vmem:[#allocation9 + $0x6a0] sm:$0xff]
      %v3325 = vld [vmem:[#allocation9 + $0x6a8] sm:$0xff]
      %v3326 = vld [vmem:[#allocation9 + $0x6b0] sm:$0xff]
      %v3327 = vld [vmem:[#allocation9 + $0x6b8] sm:$0xff]
      %v3328 = vld [vmem:[#allocation9 + $0x6c0] sm:$0xff]
      %v3329 = vld [vmem:[#allocation9 + $0x6c8] sm:$0xff]
      %v3330 = vld [vmem:[#allocation9 + $0x6d0] sm:$0xff]
      %v3331 = vld [vmem:[#allocation9 + $0x6d8] sm:$0xff]
      %v3332 = vld [vmem:[#allocation9 + $0x6e0] sm:$0xff]
      %v3333 = vld [vmem:[#allocation9 + $0x6e8] sm:$0xff]
      %v3334 = vld [vmem:[#allocation9 + $0x6f0] sm:$0xff]
      %v3335 = vld [vmem:[#allocation9 + $0x6f8] sm:$0xff]
      %v3336 = vld [vmem:[#allocation9 + $0x700] sm:$0xff]
      %v3337 = vld [vmem:[#allocation9 + $0x708] sm:$0xff]
      %v3338 = vld [vmem:[#allocation9 + $0x710] sm:$0xff]
      %v3339 = vld [vmem:[#allocation9 + $0x718] sm:$0xff]
      %v3340 = vld [vmem:[#allocation9 + $0x720] sm:$0xff]
      %v3341 = vld [vmem:[#allocation9 + $0x728] sm:$0xff]
      %v3342 = vld [vmem:[#allocation9 + $0x730] sm:$0xff]
      %v3343 = vld [vmem:[#allocation9 + $0x738] sm:$0xff]
      %v3344 = vld [vmem:[#allocation9 + $0x740] sm:$0xff]
      %v3345 = vld [vmem:[#allocation9 + $0x748] sm:$0xff]
      %v3346 = vld [vmem:[#allocation9 + $0x750] sm:$0xff]
      %v3347 = vld [vmem:[#allocation9 + $0x758] sm:$0xff]
      %v3348 = vld [vmem:[#allocation9 + $0x760] sm:$0xff]
      %v3349 = vld [vmem:[#allocation9 + $0x768] sm:$0xff]
      %v3350 = vld [vmem:[#allocation9 + $0x770] sm:$0xff]
      %v3351 = vld [vmem:[#allocation9 + $0x778] sm:$0xff]
      %v3352 = vld [vmem:[#allocation9 + $0x780] sm:$0xff]
      %v3353 = vld [vmem:[#allocation9 + $0x788] sm:$0xff]
      %v3354 = vld [vmem:[#allocation9 + $0x790] sm:$0xff]
      %v3355 = vld [vmem:[#allocation9 + $0x798] sm:$0xff]
      %v3356 = vld [vmem:[#allocation9 + $0x7a0] sm:$0xff]
      %v3357 = vld [vmem:[#allocation9 + $0x7a8] sm:$0xff]
      %v3358 = vld [vmem:[#allocation9 + $0x7b0] sm:$0xff]
      %v3359 = vld [vmem:[#allocation9 + $0x7b8] sm:$0xff]
      %v3360 = vld [vmem:[#allocation9 + $0x7c0] sm:$0xff]
      %v3361 = vld [vmem:[#allocation9 + $0x7c8] sm:$0xff]
      %v3362 = vld [vmem:[#allocation9 + $0x7d0] sm:$0xff]
      %v3363 = vld [vmem:[#allocation9 + $0x7d8] sm:$0xff]
      %v3364 = vld [vmem:[#allocation9 + $0x7e0] sm:$0xff]
      %v3365 = vld [vmem:[#allocation9 + $0x7e8] sm:$0xff]
      %v3366 = vld [vmem:[#allocation9 + $0x7f0] sm:$0xff]
      %v3367 = vld [vmem:[#allocation9 + $0x7f8] sm:$0xff]
      %v3368 = vld [vmem:[#allocation11] sm:$0xf]
      %v3370 = vlaneseq
      %v3371 = vshrl.u32 %v3370, 7
      %v3372 = vsub.s32 0, %v3371
      %v3373 = vrot.slane %v3368, %v3372
      %v3374 = vlaneseq
      %v3375 = vshrl.u32 %v3374, 7
      %v3376 = vsub.s32 1, %v3375
      %v3377 = vrot.slane %v3368, %v3376
      %v3378 = vlaneseq
      %v3379 = vshrl.u32 %v3378, 7
      %v3380 = vsub.s32 2, %v3379
      %v3381 = vrot.slane %v3368, %v3380
      %v3382 = vlaneseq
      %v3383 = vshrl.u32 %v3382, 7
      %v3384 = vsub.s32 3, %v3383
      %v3385 = vrot.slane %v3368, %v3384
      %v3646 = vunpack.c.l.b16 %v3112
      %v3647 = vunpack.c.h.b16 %v3112
      %v3648 = vunpack.c.l.b16 %v3113
      %v3649 = vunpack.c.h.b16 %v3113
      %v3650 = vunpack.c.l.b16 %v3114
      %v3651 = vunpack.c.h.b16 %v3114
      %v3652 = vunpack.c.l.b16 %v3115
      %v3653 = vunpack.c.h.b16 %v3115
      %v3654 = vunpack.c.l.b16 %v3116
      %v3655 = vunpack.c.h.b16 %v3116
      %v3656 = vunpack.c.l.b16 %v3117
      %v3657 = vunpack.c.h.b16 %v3117
      %v3658 = vunpack.c.l.b16 %v3118
      %v3659 = vunpack.c.h.b16 %v3118
      %v3660 = vunpack.c.l.b16 %v3119
      %v3661 = vunpack.c.h.b16 %v3119
      %v3662 = vunpack.c.l.b16 %v3120
      %v3663 = vunpack.c.h.b16 %v3120
      %v3664 = vunpack.c.l.b16 %v3121
      %v3665 = vunpack.c.h.b16 %v3121
      %v3666 = vunpack.c.l.b16 %v3122
      %v3667 = vunpack.c.h.b16 %v3122
      %v3668 = vunpack.c.l.b16 %v3123
      %v3669 = vunpack.c.h.b16 %v3123
      %v3670 = vunpack.c.l.b16 %v3124
      %v3671 = vunpack.c.h.b16 %v3124
      %v3672 = vunpack.c.l.b16 %v3125
      %v3673 = vunpack.c.h.b16 %v3125
      %v3674 = vunpack.c.l.b16 %v3126
      %v3675 = vunpack.c.h.b16 %v3126
      %v3676 = vunpack.c.l.b16 %v3127
      %v3677 = vunpack.c.h.b16 %v3127
      %v3678 = vunpack.c.l.b16 %v3128
      %v3679 = vunpack.c.h.b16 %v3128
      %v3680 = vunpack.c.l.b16 %v3129
      %v3681 = vunpack.c.h.b16 %v3129
      %v3682 = vunpack.c.l.b16 %v3130
      %v3683 = vunpack.c.h.b16 %v3130
      %v3684 = vunpack.c.l.b16 %v3131
      %v3685 = vunpack.c.h.b16 %v3131
      %v3686 = vunpack.c.l.b16 %v3132
      %v3687 = vunpack.c.h.b16 %v3132
      %v3688 = vunpack.c.l.b16 %v3133
      %v3689 = vunpack.c.h.b16 %v3133
      %v3690 = vunpack.c.l.b16 %v3134
      %v3691 = vunpack.c.h.b16 %v3134
      %v3692 = vunpack.c.l.b16 %v3135
      %v3693 = vunpack.c.h.b16 %v3135
      %v3694 = vunpack.c.l.b16 %v3136
      %v3695 = vunpack.c.h.b16 %v3136
      %v3696 = vunpack.c.l.b16 %v3137
      %v3697 = vunpack.c.h.b16 %v3137
      %v3698 = vunpack.c.l.b16 %v3138
      %v3699 = vunpack.c.h.b16 %v3138
      %v3700 = vunpack.c.l.b16 %v3139
      %v3701 = vunpack.c.h.b16 %v3139
      %v3702 = vunpack.c.l.b16 %v3140
      %v3703 = vunpack.c.h.b16 %v3140
      %v3704 = vunpack.c.l.b16 %v3141
      %v3705 = vunpack.c.h.b16 %v3141
      %v3706 = vunpack.c.l.b16 %v3142
      %v3707 = vunpack.c.h.b16 %v3142
      %v3708 = vunpack.c.l.b16 %v3143
      %v3709 = vunpack.c.h.b16 %v3143
      %v3710 = vunpack.c.l.b16 %v3144
      %v3711 = vunpack.c.h.b16 %v3144
      %v3712 = vunpack.c.l.b16 %v3145
      %v3713 = vunpack.c.h.b16 %v3145
      %v3714 = vunpack.c.l.b16 %v3146
      %v3715 = vunpack.c.h.b16 %v3146
      %v3716 = vunpack.c.l.b16 %v3147
      %v3717 = vunpack.c.h.b16 %v3147
      %v3718 = vunpack.c.l.b16 %v3148
      %v3719 = vunpack.c.h.b16 %v3148
      %v3720 = vunpack.c.l.b16 %v3149
      %v3721 = vunpack.c.h.b16 %v3149
      %v3722 = vunpack.c.l.b16 %v3150
      %v3723 = vunpack.c.h.b16 %v3150
      %v3724 = vunpack.c.l.b16 %v3151
      %v3725 = vunpack.c.h.b16 %v3151
      %v3726 = vunpack.c.l.b16 %v3152
      %v3727 = vunpack.c.h.b16 %v3152
      %v3728 = vunpack.c.l.b16 %v3153
      %v3729 = vunpack.c.h.b16 %v3153
      %v3730 = vunpack.c.l.b16 %v3154
      %v3731 = vunpack.c.h.b16 %v3154
      %v3732 = vunpack.c.l.b16 %v3155
      %v3733 = vunpack.c.h.b16 %v3155
      %v3734 = vunpack.c.l.b16 %v3156
      %v3735 = vunpack.c.h.b16 %v3156
      %v3736 = vunpack.c.l.b16 %v3157
      %v3737 = vunpack.c.h.b16 %v3157
      %v3738 = vunpack.c.l.b16 %v3158
      %v3739 = vunpack.c.h.b16 %v3158
      %v3740 = vunpack.c.l.b16 %v3159
      %v3741 = vunpack.c.h.b16 %v3159
      %v3742 = vunpack.c.l.b16 %v3160
      %v3743 = vunpack.c.h.b16 %v3160
      %v3744 = vunpack.c.l.b16 %v3161
      %v3745 = vunpack.c.h.b16 %v3161
      %v3746 = vunpack.c.l.b16 %v3162
      %v3747 = vunpack.c.h.b16 %v3162
      %v3748 = vunpack.c.l.b16 %v3163
      %v3749 = vunpack.c.h.b16 %v3163
      %v3750 = vunpack.c.l.b16 %v3164
      %v3751 = vunpack.c.h.b16 %v3164
      %v3752 = vunpack.c.l.b16 %v3165
      %v3753 = vunpack.c.h.b16 %v3165
      %v3754 = vunpack.c.l.b16 %v3166
      %v3755 = vunpack.c.h.b16 %v3166
      %v3756 = vunpack.c.l.b16 %v3167
      %v3757 = vunpack.c.h.b16 %v3167
      %v3758 = vunpack.c.l.b16 %v3168
      %v3759 = vunpack.c.h.b16 %v3168
      %v3760 = vunpack.c.l.b16 %v3169
      %v3761 = vunpack.c.h.b16 %v3169
      %v3762 = vunpack.c.l.b16 %v3170
      %v3763 = vunpack.c.h.b16 %v3170
      %v3764 = vunpack.c.l.b16 %v3171
      %v3765 = vunpack.c.h.b16 %v3171
      %v3766 = vunpack.c.l.b16 %v3172
      %v3767 = vunpack.c.h.b16 %v3172
      %v3768 = vunpack.c.l.b16 %v3173
      %v3769 = vunpack.c.h.b16 %v3173
      %v3770 = vunpack.c.l.b16 %v3174
      %v3771 = vunpack.c.h.b16 %v3174
      %v3772 = vunpack.c.l.b16 %v3175
      %v3773 = vunpack.c.h.b16 %v3175
      %v3774 = vunpack.c.l.b16 %v3176
      %v3775 = vunpack.c.h.b16 %v3176
      %v3776 = vunpack.c.l.b16 %v3177
      %v3777 = vunpack.c.h.b16 %v3177
      %v3778 = vunpack.c.l.b16 %v3178
      %v3779 = vunpack.c.h.b16 %v3178
      %v3780 = vunpack.c.l.b16 %v3179
      %v3781 = vunpack.c.h.b16 %v3179
      %v3782 = vunpack.c.l.b16 %v3180
      %v3783 = vunpack.c.h.b16 %v3180
      %v3784 = vunpack.c.l.b16 %v3181
      %v3785 = vunpack.c.h.b16 %v3181
      %v3786 = vunpack.c.l.b16 %v3182
      %v3787 = vunpack.c.h.b16 %v3182
      %v3788 = vunpack.c.l.b16 %v3183
      %v3789 = vunpack.c.h.b16 %v3183
      %v3790 = vunpack.c.l.b16 %v3184
      %v3791 = vunpack.c.h.b16 %v3184
      %v3792 = vunpack.c.l.b16 %v3185
      %v3793 = vunpack.c.h.b16 %v3185
      %v3794 = vunpack.c.l.b16 %v3186
      %v3795 = vunpack.c.h.b16 %v3186
      %v3796 = vunpack.c.l.b16 %v3187
      %v3797 = vunpack.c.h.b16 %v3187
      %v3798 = vunpack.c.l.b16 %v3188
      %v3799 = vunpack.c.h.b16 %v3188
      %v3800 = vunpack.c.l.b16 %v3189
      %v3801 = vunpack.c.h.b16 %v3189
      %v3802 = vunpack.c.l.b16 %v3190
      %v3803 = vunpack.c.h.b16 %v3190
      %v3804 = vunpack.c.l.b16 %v3191
      %v3805 = vunpack.c.h.b16 %v3191
      %v3806 = vunpack.c.l.b16 %v3192
      %v3807 = vunpack.c.h.b16 %v3192
      %v3808 = vunpack.c.l.b16 %v3193
      %v3809 = vunpack.c.h.b16 %v3193
      %v3810 = vunpack.c.l.b16 %v3194
      %v3811 = vunpack.c.h.b16 %v3194
      %v3812 = vunpack.c.l.b16 %v3195
      %v3813 = vunpack.c.h.b16 %v3195
      %v3814 = vunpack.c.l.b16 %v3196
      %v3815 = vunpack.c.h.b16 %v3196
      %v3816 = vunpack.c.l.b16 %v3197
      %v3817 = vunpack.c.h.b16 %v3197
      %v3818 = vunpack.c.l.b16 %v3198
      %v3819 = vunpack.c.h.b16 %v3198
      %v3820 = vunpack.c.l.b16 %v3199
      %v3821 = vunpack.c.h.b16 %v3199
      %v3822 = vunpack.c.l.b16 %v3200
      %v3823 = vunpack.c.h.b16 %v3200
      %v3824 = vunpack.c.l.b16 %v3201
      %v3825 = vunpack.c.h.b16 %v3201
      %v3826 = vunpack.c.l.b16 %v3202
      %v3827 = vunpack.c.h.b16 %v3202
      %v3828 = vunpack.c.l.b16 %v3203
      %v3829 = vunpack.c.h.b16 %v3203
      %v3830 = vunpack.c.l.b16 %v3204
      %v3831 = vunpack.c.h.b16 %v3204
      %v3832 = vunpack.c.l.b16 %v3205
      %v3833 = vunpack.c.h.b16 %v3205
      %v3834 = vunpack.c.l.b16 %v3206
      %v3835 = vunpack.c.h.b16 %v3206
      %v3836 = vunpack.c.l.b16 %v3207
      %v3837 = vunpack.c.h.b16 %v3207
      %v3838 = vunpack.c.l.b16 %v3208
      %v3839 = vunpack.c.h.b16 %v3208
      %v3840 = vunpack.c.l.b16 %v3209
      %v3841 = vunpack.c.h.b16 %v3209
      %v3842 = vunpack.c.l.b16 %v3210
      %v3843 = vunpack.c.h.b16 %v3210
      %v3844 = vunpack.c.l.b16 %v3211
      %v3845 = vunpack.c.h.b16 %v3211
      %v3846 = vunpack.c.l.b16 %v3212
      %v3847 = vunpack.c.h.b16 %v3212
      %v3848 = vunpack.c.l.b16 %v3213
      %v3849 = vunpack.c.h.b16 %v3213
      %v3850 = vunpack.c.l.b16 %v3214
      %v3851 = vunpack.c.h.b16 %v3214
      %v3852 = vunpack.c.l.b16 %v3215
      %v3853 = vunpack.c.h.b16 %v3215
      %v3854 = vunpack.c.l.b16 %v3216
      %v3855 = vunpack.c.h.b16 %v3216
      %v3856 = vunpack.c.l.b16 %v3217
      %v3857 = vunpack.c.h.b16 %v3217
      %v3858 = vunpack.c.l.b16 %v3218
      %v3859 = vunpack.c.h.b16 %v3218
      %v3860 = vunpack.c.l.b16 %v3219
      %v3861 = vunpack.c.h.b16 %v3219
      %v3862 = vunpack.c.l.b16 %v3220
      %v3863 = vunpack.c.h.b16 %v3220
      %v3864 = vunpack.c.l.b16 %v3221
      %v3865 = vunpack.c.h.b16 %v3221
      %v3866 = vunpack.c.l.b16 %v3222
      %v3867 = vunpack.c.h.b16 %v3222
      %v3868 = vunpack.c.l.b16 %v3223
      %v3869 = vunpack.c.h.b16 %v3223
      %v3870 = vunpack.c.l.b16 %v3224
      %v3871 = vunpack.c.h.b16 %v3224
      %v3872 = vunpack.c.l.b16 %v3225
      %v3873 = vunpack.c.h.b16 %v3225
      %v3874 = vunpack.c.l.b16 %v3226
      %v3875 = vunpack.c.h.b16 %v3226
      %v3876 = vunpack.c.l.b16 %v3227
      %v3877 = vunpack.c.h.b16 %v3227
      %v3878 = vunpack.c.l.b16 %v3228
      %v3879 = vunpack.c.h.b16 %v3228
      %v3880 = vunpack.c.l.b16 %v3229
      %v3881 = vunpack.c.h.b16 %v3229
      %v3882 = vunpack.c.l.b16 %v3230
      %v3883 = vunpack.c.h.b16 %v3230
      %v3884 = vunpack.c.l.b16 %v3231
      %v3885 = vunpack.c.h.b16 %v3231
      %v3886 = vunpack.c.l.b16 %v3232
      %v3887 = vunpack.c.h.b16 %v3232
      %v3888 = vunpack.c.l.b16 %v3233
      %v3889 = vunpack.c.h.b16 %v3233
      %v3890 = vunpack.c.l.b16 %v3234
      %v3891 = vunpack.c.h.b16 %v3234
      %v3892 = vunpack.c.l.b16 %v3235
      %v3893 = vunpack.c.h.b16 %v3235
      %v3894 = vunpack.c.l.b16 %v3236
      %v3895 = vunpack.c.h.b16 %v3236
      %v3896 = vunpack.c.l.b16 %v3237
      %v3897 = vunpack.c.h.b16 %v3237
      %v3898 = vunpack.c.l.b16 %v3238
      %v3899 = vunpack.c.h.b16 %v3238
      %v3900 = vunpack.c.l.b16 %v3239
      %v3901 = vunpack.c.h.b16 %v3239
      %v3902 = vunpack.c.l.b16 %v3240
      %v3903 = vunpack.c.h.b16 %v3240
      %v3904 = vunpack.c.l.b16 %v3241
      %v3905 = vunpack.c.h.b16 %v3241
      %v3906 = vunpack.c.l.b16 %v3242
      %v3907 = vunpack.c.h.b16 %v3242
      %v3908 = vunpack.c.l.b16 %v3243
      %v3909 = vunpack.c.h.b16 %v3243
      %v3910 = vunpack.c.l.b16 %v3244
      %v3911 = vunpack.c.h.b16 %v3244
      %v3912 = vunpack.c.l.b16 %v3245
      %v3913 = vunpack.c.h.b16 %v3245
      %v3914 = vunpack.c.l.b16 %v3246
      %v3915 = vunpack.c.h.b16 %v3246
      %v3916 = vunpack.c.l.b16 %v3247
      %v3917 = vunpack.c.h.b16 %v3247
      %v3918 = vunpack.c.l.b16 %v3248
      %v3919 = vunpack.c.h.b16 %v3248
      %v3920 = vunpack.c.l.b16 %v3249
      %v3921 = vunpack.c.h.b16 %v3249
      %v3922 = vunpack.c.l.b16 %v3250
      %v3923 = vunpack.c.h.b16 %v3250
      %v3924 = vunpack.c.l.b16 %v3251
      %v3925 = vunpack.c.h.b16 %v3251
      %v3926 = vunpack.c.l.b16 %v3252
      %v3927 = vunpack.c.h.b16 %v3252
      %v3928 = vunpack.c.l.b16 %v3253
      %v3929 = vunpack.c.h.b16 %v3253
      %v3930 = vunpack.c.l.b16 %v3254
      %v3931 = vunpack.c.h.b16 %v3254
      %v3932 = vunpack.c.l.b16 %v3255
      %v3933 = vunpack.c.h.b16 %v3255
      %v3934 = vunpack.c.l.b16 %v3256
      %v3935 = vunpack.c.h.b16 %v3256
      %v3936 = vunpack.c.l.b16 %v3257
      %v3937 = vunpack.c.h.b16 %v3257
      %v3938 = vunpack.c.l.b16 %v3258
      %v3939 = vunpack.c.h.b16 %v3258
      %v3940 = vunpack.c.l.b16 %v3259
      %v3941 = vunpack.c.h.b16 %v3259
      %v3942 = vunpack.c.l.b16 %v3260
      %v3943 = vunpack.c.h.b16 %v3260
      %v3944 = vunpack.c.l.b16 %v3261
      %v3945 = vunpack.c.h.b16 %v3261
      %v3946 = vunpack.c.l.b16 %v3262
      %v3947 = vunpack.c.h.b16 %v3262
      %v3948 = vunpack.c.l.b16 %v3263
      %v3949 = vunpack.c.h.b16 %v3263
      %v3950 = vunpack.c.l.b16 %v3264
      %v3951 = vunpack.c.h.b16 %v3264
      %v3952 = vunpack.c.l.b16 %v3265
      %v3953 = vunpack.c.h.b16 %v3265
      %v3954 = vunpack.c.l.b16 %v3266
      %v3955 = vunpack.c.h.b16 %v3266
      %v3956 = vunpack.c.l.b16 %v3267
      %v3957 = vunpack.c.h.b16 %v3267
      %v3958 = vunpack.c.l.b16 %v3268
      %v3959 = vunpack.c.h.b16 %v3268
      %v3960 = vunpack.c.l.b16 %v3269
      %v3961 = vunpack.c.h.b16 %v3269
      %v3962 = vunpack.c.l.b16 %v3270
      %v3963 = vunpack.c.h.b16 %v3270
      %v3964 = vunpack.c.l.b16 %v3271
      %v3965 = vunpack.c.h.b16 %v3271
      %v3966 = vunpack.c.l.b16 %v3272
      %v3967 = vunpack.c.h.b16 %v3272
      %v3968 = vunpack.c.l.b16 %v3273
      %v3969 = vunpack.c.h.b16 %v3273
      %v3970 = vunpack.c.l.b16 %v3274
      %v3971 = vunpack.c.h.b16 %v3274
      %v3972 = vunpack.c.l.b16 %v3275
      %v3973 = vunpack.c.h.b16 %v3275
      %v3974 = vunpack.c.l.b16 %v3276
      %v3975 = vunpack.c.h.b16 %v3276
      %v3976 = vunpack.c.l.b16 %v3277
      %v3977 = vunpack.c.h.b16 %v3277
      %v3978 = vunpack.c.l.b16 %v3278
      %v3979 = vunpack.c.h.b16 %v3278
      %v3980 = vunpack.c.l.b16 %v3279
      %v3981 = vunpack.c.h.b16 %v3279
      %v3982 = vunpack.c.l.b16 %v3280
      %v3983 = vunpack.c.h.b16 %v3280
      %v3984 = vunpack.c.l.b16 %v3281
      %v3985 = vunpack.c.h.b16 %v3281
      %v3986 = vunpack.c.l.b16 %v3282
      %v3987 = vunpack.c.h.b16 %v3282
      %v3988 = vunpack.c.l.b16 %v3283
      %v3989 = vunpack.c.h.b16 %v3283
      %v3990 = vunpack.c.l.b16 %v3284
      %v3991 = vunpack.c.h.b16 %v3284
      %v3992 = vunpack.c.l.b16 %v3285
      %v3993 = vunpack.c.h.b16 %v3285
      %v3994 = vunpack.c.l.b16 %v3286
      %v3995 = vunpack.c.h.b16 %v3286
      %v3996 = vunpack.c.l.b16 %v3287
      %v3997 = vunpack.c.h.b16 %v3287
      %v3998 = vunpack.c.l.b16 %v3288
      %v3999 = vunpack.c.h.b16 %v3288
      %v4000 = vunpack.c.l.b16 %v3289
      %v4001 = vunpack.c.h.b16 %v3289
      %v4002 = vunpack.c.l.b16 %v3290
      %v4003 = vunpack.c.h.b16 %v3290
      %v4004 = vunpack.c.l.b16 %v3291
      %v4005 = vunpack.c.h.b16 %v3291
      %v4006 = vunpack.c.l.b16 %v3292
      %v4007 = vunpack.c.h.b16 %v3292
      %v4008 = vunpack.c.l.b16 %v3293
      %v4009 = vunpack.c.h.b16 %v3293
      %v4010 = vunpack.c.l.b16 %v3294
      %v4011 = vunpack.c.h.b16 %v3294
      %v4012 = vunpack.c.l.b16 %v3295
      %v4013 = vunpack.c.h.b16 %v3295
      %v4014 = vunpack.c.l.b16 %v3296
      %v4015 = vunpack.c.h.b16 %v3296
      %v4016 = vunpack.c.l.b16 %v3297
      %v4017 = vunpack.c.h.b16 %v3297
      %v4018 = vunpack.c.l.b16 %v3298
      %v4019 = vunpack.c.h.b16 %v3298
      %v4020 = vunpack.c.l.b16 %v3299
      %v4021 = vunpack.c.h.b16 %v3299
      %v4022 = vunpack.c.l.b16 %v3300
      %v4023 = vunpack.c.h.b16 %v3300
      %v4024 = vunpack.c.l.b16 %v3301
      %v4025 = vunpack.c.h.b16 %v3301
      %v4026 = vunpack.c.l.b16 %v3302
      %v4027 = vunpack.c.h.b16 %v3302
      %v4028 = vunpack.c.l.b16 %v3303
      %v4029 = vunpack.c.h.b16 %v3303
      %v4030 = vunpack.c.l.b16 %v3304
      %v4031 = vunpack.c.h.b16 %v3304
      %v4032 = vunpack.c.l.b16 %v3305
      %v4033 = vunpack.c.h.b16 %v3305
      %v4034 = vunpack.c.l.b16 %v3306
      %v4035 = vunpack.c.h.b16 %v3306
      %v4036 = vunpack.c.l.b16 %v3307
      %v4037 = vunpack.c.h.b16 %v3307
      %v4038 = vunpack.c.l.b16 %v3308
      %v4039 = vunpack.c.h.b16 %v3308
      %v4040 = vunpack.c.l.b16 %v3309
      %v4041 = vunpack.c.h.b16 %v3309
      %v4042 = vunpack.c.l.b16 %v3310
      %v4043 = vunpack.c.h.b16 %v3310
      %v4044 = vunpack.c.l.b16 %v3311
      %v4045 = vunpack.c.h.b16 %v3311
      %v4046 = vunpack.c.l.b16 %v3312
      %v4047 = vunpack.c.h.b16 %v3312
      %v4048 = vunpack.c.l.b16 %v3313
      %v4049 = vunpack.c.h.b16 %v3313
      %v4050 = vunpack.c.l.b16 %v3314
      %v4051 = vunpack.c.h.b16 %v3314
      %v4052 = vunpack.c.l.b16 %v3315
      %v4053 = vunpack.c.h.b16 %v3315
      %v4054 = vunpack.c.l.b16 %v3316
      %v4055 = vunpack.c.h.b16 %v3316
      %v4056 = vunpack.c.l.b16 %v3317
      %v4057 = vunpack.c.h.b16 %v3317
      %v4058 = vunpack.c.l.b16 %v3318
      %v4059 = vunpack.c.h.b16 %v3318
      %v4060 = vunpack.c.l.b16 %v3319
      %v4061 = vunpack.c.h.b16 %v3319
      %v4062 = vunpack.c.l.b16 %v3320
      %v4063 = vunpack.c.h.b16 %v3320
      %v4064 = vunpack.c.l.b16 %v3321
      %v4065 = vunpack.c.h.b16 %v3321
      %v4066 = vunpack.c.l.b16 %v3322
      %v4067 = vunpack.c.h.b16 %v3322
      %v4068 = vunpack.c.l.b16 %v3323
      %v4069 = vunpack.c.h.b16 %v3323
      %v4070 = vunpack.c.l.b16 %v3324
      %v4071 = vunpack.c.h.b16 %v3324
      %v4072 = vunpack.c.l.b16 %v3325
      %v4073 = vunpack.c.h.b16 %v3325
      %v4074 = vunpack.c.l.b16 %v3326
      %v4075 = vunpack.c.h.b16 %v3326
      %v4076 = vunpack.c.l.b16 %v3327
      %v4077 = vunpack.c.h.b16 %v3327
      %v4078 = vunpack.c.l.b16 %v3328
      %v4079 = vunpack.c.h.b16 %v3328
      %v4080 = vunpack.c.l.b16 %v3329
      %v4081 = vunpack.c.h.b16 %v3329
      %v4082 = vunpack.c.l.b16 %v3330
      %v4083 = vunpack.c.h.b16 %v3330
      %v4084 = vunpack.c.l.b16 %v3331
      %v4085 = vunpack.c.h.b16 %v3331
      %v4086 = vunpack.c.l.b16 %v3332
      %v4087 = vunpack.c.h.b16 %v3332
      %v4088 = vunpack.c.l.b16 %v3333
      %v4089 = vunpack.c.h.b16 %v3333
      %v4090 = vunpack.c.l.b16 %v3334
      %v4091 = vunpack.c.h.b16 %v3334
      %v4092 = vunpack.c.l.b16 %v3335
      %v4093 = vunpack.c.h.b16 %v3335
      %v4094 = vunpack.c.l.b16 %v3336
      %v4095 = vunpack.c.h.b16 %v3336
      %v4096 = vunpack.c.l.b16 %v3337
      %v4097 = vunpack.c.h.b16 %v3337
      %v4098 = vunpack.c.l.b16 %v3338
      %v4099 = vunpack.c.h.b16 %v3338
      %v4100 = vunpack.c.l.b16 %v3339
      %v4101 = vunpack.c.h.b16 %v3339
      %v4102 = vunpack.c.l.b16 %v3340
      %v4103 = vunpack.c.h.b16 %v3340
      %v4104 = vunpack.c.l.b16 %v3341
      %v4105 = vunpack.c.h.b16 %v3341
      %v4106 = vunpack.c.l.b16 %v3342
      %v4107 = vunpack.c.h.b16 %v3342
      %v4108 = vunpack.c.l.b16 %v3343
      %v4109 = vunpack.c.h.b16 %v3343
      %v4110 = vunpack.c.l.b16 %v3344
      %v4111 = vunpack.c.h.b16 %v3344
      %v4112 = vunpack.c.l.b16 %v3345
      %v4113 = vunpack.c.h.b16 %v3345
      %v4114 = vunpack.c.l.b16 %v3346
      %v4115 = vunpack.c.h.b16 %v3346
      %v4116 = vunpack.c.l.b16 %v3347
      %v4117 = vunpack.c.h.b16 %v3347
      %v4118 = vunpack.c.l.b16 %v3348
      %v4119 = vunpack.c.h.b16 %v3348
      %v4120 = vunpack.c.l.b16 %v3349
      %v4121 = vunpack.c.h.b16 %v3349
      %v4122 = vunpack.c.l.b16 %v3350
      %v4123 = vunpack.c.h.b16 %v3350
      %v4124 = vunpack.c.l.b16 %v3351
      %v4125 = vunpack.c.h.b16 %v3351
      %v4126 = vunpack.c.l.b16 %v3352
      %v4127 = vunpack.c.h.b16 %v3352
      %v4128 = vunpack.c.l.b16 %v3353
      %v4129 = vunpack.c.h.b16 %v3353
      %v4130 = vunpack.c.l.b16 %v3354
      %v4131 = vunpack.c.h.b16 %v3354
      %v4132 = vunpack.c.l.b16 %v3355
      %v4133 = vunpack.c.h.b16 %v3355
      %v4134 = vunpack.c.l.b16 %v3356
      %v4135 = vunpack.c.h.b16 %v3356
      %v4136 = vunpack.c.l.b16 %v3357
      %v4137 = vunpack.c.h.b16 %v3357
      %v4138 = vunpack.c.l.b16 %v3358
      %v4139 = vunpack.c.h.b16 %v3358
      %v4140 = vunpack.c.l.b16 %v3359
      %v4141 = vunpack.c.h.b16 %v3359
      %v4142 = vunpack.c.l.b16 %v3360
      %v4143 = vunpack.c.h.b16 %v3360
      %v4144 = vunpack.c.l.b16 %v3361
      %v4145 = vunpack.c.h.b16 %v3361
      %v4146 = vunpack.c.l.b16 %v3362
      %v4147 = vunpack.c.h.b16 %v3362
      %v4148 = vunpack.c.l.b16 %v3363
      %v4149 = vunpack.c.h.b16 %v3363
      %v4150 = vunpack.c.l.b16 %v3364
      %v4151 = vunpack.c.h.b16 %v3364
      %v4152 = vunpack.c.l.b16 %v3365
      %v4153 = vunpack.c.h.b16 %v3365
      %v4154 = vunpack.c.l.b16 %v3366
      %v4155 = vunpack.c.h.b16 %v3366
      %v4156 = vunpack.c.l.b16 %v3367
      %v4157 = vunpack.c.h.b16 %v3367
      %v4158 = vpack.c.b16 %v3650, %v3646
      %v4159 = vpack.c.b16 %v3651, %v3647
      %v4160 = vpack.c.b16 %v3652, %v3648
      %v4161 = vpack.c.b16 %v3653, %v3649
      %v4162 = vpack.c.b16 %v3658, %v3654
      %v4163 = vpack.c.b16 %v3659, %v3655
      %v4164 = vpack.c.b16 %v3660, %v3656
      %v4165 = vpack.c.b16 %v3661, %v3657
      %v4166 = vpack.c.b16 %v3666, %v3662
      %v4167 = vpack.c.b16 %v3667, %v3663
      %v4168 = vpack.c.b16 %v3668, %v3664
      %v4169 = vpack.c.b16 %v3669, %v3665
      %v4170 = vpack.c.b16 %v3674, %v3670
      %v4171 = vpack.c.b16 %v3675, %v3671
      %v4172 = vpack.c.b16 %v3676, %v3672
      %v4173 = vpack.c.b16 %v3677, %v3673
      %v4174 = vpack.c.b16 %v3682, %v3678
      %v4175 = vpack.c.b16 %v3683, %v3679
      %v4176 = vpack.c.b16 %v3684, %v3680
      %v4177 = vpack.c.b16 %v3685, %v3681
      %v4178 = vpack.c.b16 %v3690, %v3686
      %v4179 = vpack.c.b16 %v3691, %v3687
      %v4180 = vpack.c.b16 %v3692, %v3688
      %v4181 = vpack.c.b16 %v3693, %v3689
      %v4182 = vpack.c.b16 %v3698, %v3694
      %v4183 = vpack.c.b16 %v3699, %v3695
      %v4184 = vpack.c.b16 %v3700, %v3696
      %v4185 = vpack.c.b16 %v3701, %v3697
      %v4186 = vpack.c.b16 %v3706, %v3702
      %v4187 = vpack.c.b16 %v3707, %v3703
      %v4188 = vpack.c.b16 %v3708, %v3704
      %v4189 = vpack.c.b16 %v3709, %v3705
      %v4190 = vpack.c.b16 %v3714, %v3710
      %v4191 = vpack.c.b16 %v3715, %v3711
      %v4192 = vpack.c.b16 %v3716, %v3712
      %v4193 = vpack.c.b16 %v3717, %v3713
      %v4194 = vpack.c.b16 %v3722, %v3718
      %v4195 = vpack.c.b16 %v3723, %v3719
      %v4196 = vpack.c.b16 %v3724, %v3720
      %v4197 = vpack.c.b16 %v3725, %v3721
      %v4198 = vpack.c.b16 %v3730, %v3726
      %v4199 = vpack.c.b16 %v3731, %v3727
      %v4200 = vpack.c.b16 %v3732, %v3728
      %v4201 = vpack.c.b16 %v3733, %v3729
      %v4202 = vpack.c.b16 %v3738, %v3734
      %v4203 = vpack.c.b16 %v3739, %v3735
      %v4204 = vpack.c.b16 %v3740, %v3736
      %v4205 = vpack.c.b16 %v3741, %v3737
      %v4206 = vpack.c.b16 %v3746, %v3742
      %v4207 = vpack.c.b16 %v3747, %v3743
      %v4208 = vpack.c.b16 %v3748, %v3744
      %v4209 = vpack.c.b16 %v3749, %v3745
      %v4210 = vpack.c.b16 %v3754, %v3750
      %v4211 = vpack.c.b16 %v3755, %v3751
      %v4212 = vpack.c.b16 %v3756, %v3752
      %v4213 = vpack.c.b16 %v3757, %v3753
      %v4214 = vpack.c.b16 %v3762, %v3758
      %v4215 = vpack.c.b16 %v3763, %v3759
      %v4216 = vpack.c.b16 %v3764, %v3760
      %v4217 = vpack.c.b16 %v3765, %v3761
      %v4218 = vpack.c.b16 %v3770, %v3766
      %v4219 = vpack.c.b16 %v3771, %v3767
      %v4220 = vpack.c.b16 %v3772, %v3768
      %v4221 = vpack.c.b16 %v3773, %v3769
      %v4222 = vpack.c.b16 %v3778, %v3774
      %v4223 = vpack.c.b16 %v3779, %v3775
      %v4224 = vpack.c.b16 %v3780, %v3776
      %v4225 = vpack.c.b16 %v3781, %v3777
      %v4226 = vpack.c.b16 %v3786, %v3782
      %v4227 = vpack.c.b16 %v3787, %v3783
      %v4228 = vpack.c.b16 %v3788, %v3784
      %v4229 = vpack.c.b16 %v3789, %v3785
      %v4230 = vpack.c.b16 %v3794, %v3790
      %v4231 = vpack.c.b16 %v3795, %v3791
      %v4232 = vpack.c.b16 %v3796, %v3792
      %v4233 = vpack.c.b16 %v3797, %v3793
      %v4234 = vpack.c.b16 %v3802, %v3798
      %v4235 = vpack.c.b16 %v3803, %v3799
      %v4236 = vpack.c.b16 %v3804, %v3800
      %v4237 = vpack.c.b16 %v3805, %v3801
      %v4238 = vpack.c.b16 %v3810, %v3806
      %v4239 = vpack.c.b16 %v3811, %v3807
      %v4240 = vpack.c.b16 %v3812, %v3808
      %v4241 = vpack.c.b16 %v3813, %v3809
      %v4242 = vpack.c.b16 %v3818, %v3814
      %v4243 = vpack.c.b16 %v3819, %v3815
      %v4244 = vpack.c.b16 %v3820, %v3816
      %v4245 = vpack.c.b16 %v3821, %v3817
      %v4246 = vpack.c.b16 %v3826, %v3822
      %v4247 = vpack.c.b16 %v3827, %v3823
      %v4248 = vpack.c.b16 %v3828, %v3824
      %v4249 = vpack.c.b16 %v3829, %v3825
      %v4250 = vpack.c.b16 %v3834, %v3830
      %v4251 = vpack.c.b16 %v3835, %v3831
      %v4252 = vpack.c.b16 %v3836, %v3832
      %v4253 = vpack.c.b16 %v3837, %v3833
      %v4254 = vpack.c.b16 %v3842, %v3838
      %v4255 = vpack.c.b16 %v3843, %v3839
      %v4256 = vpack.c.b16 %v3844, %v3840
      %v4257 = vpack.c.b16 %v3845, %v3841
      %v4258 = vpack.c.b16 %v3850, %v3846
      %v4259 = vpack.c.b16 %v3851, %v3847
      %v4260 = vpack.c.b16 %v3852, %v3848
      %v4261 = vpack.c.b16 %v3853, %v3849
      %v4262 = vpack.c.b16 %v3858, %v3854
      %v4263 = vpack.c.b16 %v3859, %v3855
      %v4264 = vpack.c.b16 %v3860, %v3856
      %v4265 = vpack.c.b16 %v3861, %v3857
      %v4266 = vpack.c.b16 %v3866, %v3862
      %v4267 = vpack.c.b16 %v3867, %v3863
      %v4268 = vpack.c.b16 %v3868, %v3864
      %v4269 = vpack.c.b16 %v3869, %v3865
      %v4270 = vpack.c.b16 %v3874, %v3870
      %v4271 = vpack.c.b16 %v3875, %v3871
      %v4272 = vpack.c.b16 %v3876, %v3872
      %v4273 = vpack.c.b16 %v3877, %v3873
      %v4274 = vpack.c.b16 %v3882, %v3878
      %v4275 = vpack.c.b16 %v3883, %v3879
      %v4276 = vpack.c.b16 %v3884, %v3880
      %v4277 = vpack.c.b16 %v3885, %v3881
      %v4278 = vpack.c.b16 %v3890, %v3886
      %v4279 = vpack.c.b16 %v3891, %v3887
      %v4280 = vpack.c.b16 %v3892, %v3888
      %v4281 = vpack.c.b16 %v3893, %v3889
      %v4282 = vpack.c.b16 %v3898, %v3894
      %v4283 = vpack.c.b16 %v3899, %v3895
      %v4284 = vpack.c.b16 %v3900, %v3896
      %v4285 = vpack.c.b16 %v3901, %v3897
      %v4286 = vpack.c.b16 %v3906, %v3902
      %v4287 = vpack.c.b16 %v3907, %v3903
      %v4288 = vpack.c.b16 %v3908, %v3904
      %v4289 = vpack.c.b16 %v3909, %v3905
      %v4290 = vpack.c.b16 %v3914, %v3910
      %v4291 = vpack.c.b16 %v3915, %v3911
      %v4292 = vpack.c.b16 %v3916, %v3912
      %v4293 = vpack.c.b16 %v3917, %v3913
      %v4294 = vpack.c.b16 %v3922, %v3918
      %v4295 = vpack.c.b16 %v3923, %v3919
      %v4296 = vpack.c.b16 %v3924, %v3920
      %v4297 = vpack.c.b16 %v3925, %v3921
      %v4298 = vpack.c.b16 %v3930, %v3926
      %v4299 = vpack.c.b16 %v3931, %v3927
      %v4300 = vpack.c.b16 %v3932, %v3928
      %v4301 = vpack.c.b16 %v3933, %v3929
      %v4302 = vpack.c.b16 %v3938, %v3934
      %v4303 = vpack.c.b16 %v3939, %v3935
      %v4304 = vpack.c.b16 %v3940, %v3936
      %v4305 = vpack.c.b16 %v3941, %v3937
      %v4306 = vpack.c.b16 %v3946, %v3942
      %v4307 = vpack.c.b16 %v3947, %v3943
      %v4308 = vpack.c.b16 %v3948, %v3944
      %v4309 = vpack.c.b16 %v3949, %v3945
      %v4310 = vpack.c.b16 %v3954, %v3950
      %v4311 = vpack.c.b16 %v3955, %v3951
      %v4312 = vpack.c.b16 %v3956, %v3952
      %v4313 = vpack.c.b16 %v3957, %v3953
      %v4314 = vpack.c.b16 %v3962, %v3958
      %v4315 = vpack.c.b16 %v3963, %v3959
      %v4316 = vpack.c.b16 %v3964, %v3960
      %v4317 = vpack.c.b16 %v3965, %v3961
      %v4318 = vpack.c.b16 %v3970, %v3966
      %v4319 = vpack.c.b16 %v3971, %v3967
      %v4320 = vpack.c.b16 %v3972, %v3968
      %v4321 = vpack.c.b16 %v3973, %v3969
      %v4322 = vpack.c.b16 %v3978, %v3974
      %v4323 = vpack.c.b16 %v3979, %v3975
      %v4324 = vpack.c.b16 %v3980, %v3976
      %v4325 = vpack.c.b16 %v3981, %v3977
      %v4326 = vpack.c.b16 %v3986, %v3982
      %v4327 = vpack.c.b16 %v3987, %v3983
      %v4328 = vpack.c.b16 %v3988, %v3984
      %v4329 = vpack.c.b16 %v3989, %v3985
      %v4330 = vpack.c.b16 %v3994, %v3990
      %v4331 = vpack.c.b16 %v3995, %v3991
      %v4332 = vpack.c.b16 %v3996, %v3992
      %v4333 = vpack.c.b16 %v3997, %v3993
      %v4334 = vpack.c.b16 %v4002, %v3998
      %v4335 = vpack.c.b16 %v4003, %v3999
      %v4336 = vpack.c.b16 %v4004, %v4000
      %v4337 = vpack.c.b16 %v4005, %v4001
      %v4338 = vpack.c.b16 %v4010, %v4006
      %v4339 = vpack.c.b16 %v4011, %v4007
      %v4340 = vpack.c.b16 %v4012, %v4008
      %v4341 = vpack.c.b16 %v4013, %v4009
      %v4342 = vpack.c.b16 %v4018, %v4014
      %v4343 = vpack.c.b16 %v4019, %v4015
      %v4344 = vpack.c.b16 %v4020, %v4016
      %v4345 = vpack.c.b16 %v4021, %v4017
      %v4346 = vpack.c.b16 %v4026, %v4022
      %v4347 = vpack.c.b16 %v4027, %v4023
      %v4348 = vpack.c.b16 %v4028, %v4024
      %v4349 = vpack.c.b16 %v4029, %v4025
      %v4350 = vpack.c.b16 %v4034, %v4030
      %v4351 = vpack.c.b16 %v4035, %v4031
      %v4352 = vpack.c.b16 %v4036, %v4032
      %v4353 = vpack.c.b16 %v4037, %v4033
      %v4354 = vpack.c.b16 %v4042, %v4038
      %v4355 = vpack.c.b16 %v4043, %v4039
      %v4356 = vpack.c.b16 %v4044, %v4040
      %v4357 = vpack.c.b16 %v4045, %v4041
      %v4358 = vpack.c.b16 %v4050, %v4046
      %v4359 = vpack.c.b16 %v4051, %v4047
      %v4360 = vpack.c.b16 %v4052, %v4048
      %v4361 = vpack.c.b16 %v4053, %v4049
      %v4362 = vpack.c.b16 %v4058, %v4054
      %v4363 = vpack.c.b16 %v4059, %v4055
      %v4364 = vpack.c.b16 %v4060, %v4056
      %v4365 = vpack.c.b16 %v4061, %v4057
      %v4366 = vpack.c.b16 %v4066, %v4062
      %v4367 = vpack.c.b16 %v4067, %v4063
      %v4368 = vpack.c.b16 %v4068, %v4064
      %v4369 = vpack.c.b16 %v4069, %v4065
      %v4370 = vpack.c.b16 %v4074, %v4070
      %v4371 = vpack.c.b16 %v4075, %v4071
      %v4372 = vpack.c.b16 %v4076, %v4072
      %v4373 = vpack.c.b16 %v4077, %v4073
      %v4374 = vpack.c.b16 %v4082, %v4078
      %v4375 = vpack.c.b16 %v4083, %v4079
      %v4376 = vpack.c.b16 %v4084, %v4080
      %v4377 = vpack.c.b16 %v4085, %v4081
      %v4378 = vpack.c.b16 %v4090, %v4086
      %v4379 = vpack.c.b16 %v4091, %v4087
      %v4380 = vpack.c.b16 %v4092, %v4088
      %v4381 = vpack.c.b16 %v4093, %v4089
      %v4382 = vpack.c.b16 %v4098, %v4094
      %v4383 = vpack.c.b16 %v4099, %v4095
      %v4384 = vpack.c.b16 %v4100, %v4096
      %v4385 = vpack.c.b16 %v4101, %v4097
      %v4386 = vpack.c.b16 %v4106, %v4102
      %v4387 = vpack.c.b16 %v4107, %v4103
      %v4388 = vpack.c.b16 %v4108, %v4104
      %v4389 = vpack.c.b16 %v4109, %v4105
      %v4390 = vpack.c.b16 %v4114, %v4110
      %v4391 = vpack.c.b16 %v4115, %v4111
      %v4392 = vpack.c.b16 %v4116, %v4112
      %v4393 = vpack.c.b16 %v4117, %v4113
      %v4394 = vpack.c.b16 %v4122, %v4118
      %v4395 = vpack.c.b16 %v4123, %v4119
      %v4396 = vpack.c.b16 %v4124, %v4120
      %v4397 = vpack.c.b16 %v4125, %v4121
      %v4398 = vpack.c.b16 %v4130, %v4126
      %v4399 = vpack.c.b16 %v4131, %v4127
      %v4400 = vpack.c.b16 %v4132, %v4128
      %v4401 = vpack.c.b16 %v4133, %v4129
      %v4402 = vpack.c.b16 %v4138, %v4134
      %v4403 = vpack.c.b16 %v4139, %v4135
      %v4404 = vpack.c.b16 %v4140, %v4136
      %v4405 = vpack.c.b16 %v4141, %v4137
      %v4406 = vpack.c.b16 %v4146, %v4142
      %v4407 = vpack.c.b16 %v4147, %v4143
      %v4408 = vpack.c.b16 %v4148, %v4144
      %v4409 = vpack.c.b16 %v4149, %v4145
      %v4410 = vpack.c.b16 %v4154, %v4150
      %v4411 = vpack.c.b16 %v4155, %v4151
      %v4412 = vpack.c.b16 %v4156, %v4152
      %v4413 = vpack.c.b16 %v4157, %v4153
      %4670 = vmatprep.subr.bf16.mxu0 %v4159
      %4671 = vmatpush1.bf16.msra.mxu0 %v4158
      %4672 = vmatprep.subr.bf16.mxu0 %v4163
      %4673 = vmatpush1.bf16.msra.mxu0 %v4162
      %4674 = vmatprep.subr.bf16.mxu0 %v4167
      %4675 = vmatpush1.bf16.msra.mxu0 %v4166
      %4676 = vmatprep.subr.bf16.mxu0 %v4171
      %4677 = vmatpush1.bf16.msra.mxu0 %v4170
      %4678 = vmatprep.subr.bf16.mxu0 %v4175
      %4679 = vmatpush1.bf16.msra.mxu0 %v4174
      %4680 = vmatprep.subr.bf16.mxu0 %v4179
      %4681 = vmatpush1.bf16.msra.mxu0 %v4178
      %4682 = vmatprep.subr.bf16.mxu0 %v4183
      %4683 = vmatpush1.bf16.msra.mxu0 %v4182
      %4684 = vmatprep.subr.bf16.mxu0 %v4187
      %4685 = vmatpush1.bf16.msra.mxu0 %v4186
      %4686 = vmatprep.subr.bf16.mxu0 %v4191
      %4687 = vmatpush1.bf16.msra.mxu0 %v4190
      %4688 = vmatprep.subr.bf16.mxu0 %v4195
      %4689 = vmatpush1.bf16.msra.mxu0 %v4194
      %4690 = vmatprep.subr.bf16.mxu0 %v4199
      %4691 = vmatpush1.bf16.msra.mxu0 %v4198
      %4692 = vmatprep.subr.bf16.mxu0 %v4203
      %4693 = vmatpush1.bf16.msra.mxu0 %v4202
      %4694 = vmatprep.subr.bf16.mxu0 %v4207
      %4695 = vmatpush1.bf16.msra.mxu0 %v4206
      %4696 = vmatprep.subr.bf16.mxu0 %v4211
      %4697 = vmatpush1.bf16.msra.mxu0 %v4210
      %4698 = vmatprep.subr.bf16.mxu0 %v4215
      %4699 = vmatpush1.bf16.msra.mxu0 %v4214
      %4700 = vmatprep.subr.bf16.mxu0 %v4219
      %4701 = vmatpush1.bf16.msra.mxu0 %v4218
      %4702 = vmatprep.mubr.bf16.mxu0 %v3105
      %4703 = vmatmul.mubr.bf16.gmra.mrb[0].mxu0 %v3104
      %v4704 = vpop.f32.mrb[0].mxu0
      %v4705 = vadd.f32 %v3373, %v4704
      %v4706 = vpop.f32.mrb[0].mxu0
      %v4707 = vadd.f32 %v3377, %v4706
      %v4708 = vpop.f32.mrb[0].mxu0
      %v4709 = vpop.f32.mrb[0].mxu0
      %4710 = vdwg.mxu0
      %4711 = vmatprep.subr.bf16.mxu0 %v4223
      %4712 = vmatpush1.bf16.msra.mxu0 %v4222
      %4713 = vmatprep.subr.bf16.mxu0 %v4227
      %4714 = vmatpush1.bf16.msra.mxu0 %v4226
      %4715 = vmatprep.subr.bf16.mxu0 %v4231
      %4716 = vmatpush1.bf16.msra.mxu0 %v4230
      %4717 = vmatprep.subr.bf16.mxu0 %v4235
      %4718 = vmatpush1.bf16.msra.mxu0 %v4234
      %4719 = vmatprep.subr.bf16.mxu0 %v4239
      %4720 = vmatpush1.bf16.msra.mxu0 %v4238
      %4721 = vmatprep.subr.bf16.mxu0 %v4243
      %4722 = vmatpush1.bf16.msra.mxu0 %v4242
      %4723 = vmatprep.subr.bf16.mxu0 %v4247
      %4724 = vmatpush1.bf16.msra.mxu0 %v4246
      %4725 = vmatprep.subr.bf16.mxu0 %v4251
      %4726 = vmatpush1.bf16.msra.mxu0 %v4250
      %4727 = vmatprep.subr.bf16.mxu0 %v4255
      %4728 = vmatpush1.bf16.msra.mxu0 %v4254
      %4729 = vmatprep.subr.bf16.mxu0 %v4259
      %4730 = vmatpush1.bf16.msra.mxu0 %v4258
      %4731 = vmatprep.subr.bf16.mxu0 %v4263
      %4732 = vmatpush1.bf16.msra.mxu0 %v4262
      %4733 = vmatprep.subr.bf16.mxu0 %v4267
      %4734 = vmatpush1.bf16.msra.mxu0 %v4266
      %4735 = vmatprep.subr.bf16.mxu0 %v4271
      %4736 = vmatpush1.bf16.msra.mxu0 %v4270
      %4737 = vmatprep.subr.bf16.mxu0 %v4275
      %4738 = vmatpush1.bf16.msra.mxu0 %v4274
      %4739 = vmatprep.subr.bf16.mxu0 %v4279
      %4740 = vmatpush1.bf16.msra.mxu0 %v4278
      %4741 = vmatprep.subr.bf16.mxu0 %v4283
      %4742 = vmatpush1.bf16.msra.mxu0 %v4282
      %4743 = vmatprep.mubr.bf16.mxu0 %v3107
      %4744 = vmatmul.mubr.bf16.gmra.mrb[0].mxu0 %v3106
      %v4745 = vpop.f32.mrb[0].mxu0
      %v4746 = vadd.f32 %v4705, %v4745
      %v4747 = vpop.f32.mrb[0].mxu0
      %v4748 = vadd.f32 %v4707, %v4747
      %v4749 = vpop.f32.mrb[0].mxu0
      %v4750 = vpop.f32.mrb[0].mxu0
      %4751 = vdwg.mxu0
      %4752 = vmatprep.subr.bf16.mxu0 %v4287
      %4753 = vmatpush1.bf16.msra.mxu0 %v4286
      %4754 = vmatprep.subr.bf16.mxu0 %v4291
      %4755 = vmatpush1.bf16.msra.mxu0 %v4290
      %4756 = vmatprep.subr.bf16.mxu0 %v4295
      %4757 = vmatpush1.bf16.msra.mxu0 %v4294
      %4758 = vmatprep.subr.bf16.mxu0 %v4299
      %4759 = vmatpush1.bf16.msra.mxu0 %v4298
      %4760 = vmatprep.subr.bf16.mxu0 %v4303
      %4761 = vmatpush1.bf16.msra.mxu0 %v4302
      %4762 = vmatprep.subr.bf16.mxu0 %v4307
      %4763 = vmatpush1.bf16.msra.mxu0 %v4306
      %4764 = vmatprep.subr.bf16.mxu0 %v4311
      %4765 = vmatpush1.bf16.msra.mxu0 %v4310
      %4766 = vmatprep.subr.bf16.mxu0 %v4315
      %4767 = vmatpush1.bf16.msra.mxu0 %v4314
      %4768 = vmatprep.subr.bf16.mxu0 %v4319
      %4769 = vmatpush1.bf16.msra.mxu0 %v4318
      %4770 = vmatprep.subr.bf16.mxu0 %v4323
      %4771 = vmatpush1.bf16.msra.mxu0 %v4322
      %4772 = vmatprep.subr.bf16.mxu0 %v4327
      %4773 = vmatpush1.bf16.msra.mxu0 %v4326
      %4774 = vmatprep.subr.bf16.mxu0 %v4331
      %4775 = vmatpush1.bf16.msra.mxu0 %v4330
      %4776 = vmatprep.subr.bf16.mxu0 %v4335
      %4777 = vmatpush1.bf16.msra.mxu0 %v4334
      %4778 = vmatprep.subr.bf16.mxu0 %v4339
      %4779 = vmatpush1.bf16.msra.mxu0 %v4338
      %4780 = vmatprep.subr.bf16.mxu0 %v4343
      %4781 = vmatpush1.bf16.msra.mxu0 %v4342
      %4782 = vmatprep.subr.bf16.mxu0 %v4347
      %4783 = vmatpush1.bf16.msra.mxu0 %v4346
      %4784 = vmatprep.mubr.bf16.mxu0 %v3109
      %4785 = vmatmul.mubr.bf16.gmra.mrb[0].mxu0 %v3108
      %v4786 = vpop.f32.mrb[0].mxu0
      %v4787 = vadd.f32 %v4746, %v4786
      %v4788 = vpop.f32.mrb[0].mxu0
      %v4789 = vadd.f32 %v4748, %v4788
      %v4790 = vpop.f32.mrb[0].mxu0
      %v4791 = vpop.f32.mrb[0].mxu0
      %4792 = vdwg.mxu0
      %4793 = vmatprep.subr.bf16.mxu0 %v4351
      %4794 = vmatpush1.bf16.msra.mxu0 %v4350
      %4795 = vmatprep.subr.bf16.mxu0 %v4355
      %4796 = vmatpush1.bf16.msra.mxu0 %v4354
      %4797 = vmatprep.subr.bf16.mxu0 %v4359
      %4798 = vmatpush1.bf16.msra.mxu0 %v4358
      %4799 = vmatprep.subr.bf16.mxu0 %v4363
      %4800 = vmatpush1.bf16.msra.mxu0 %v4362
      %4801 = vmatprep.subr.bf16.mxu0 %v4367
      %4802 = vmatpush1.bf16.msra.mxu0 %v4366
      %4803 = vmatprep.subr.bf16.mxu0 %v4371
      %4804 = vmatpush1.bf16.msra.mxu0 %v4370
      %4805 = vmatprep.subr.bf16.mxu0 %v4375
      %4806 = vmatpush1.bf16.msra.mxu0 %v4374
      %4807 = vmatprep.subr.bf16.mxu0 %v4379
      %4808 = vmatpush1.bf16.msra.mxu0 %v4378
      %4809 = vmatprep.subr.bf16.mxu0 %v4383
      %4810 = vmatpush1.bf16.msra.mxu0 %v4382
      %4811 = vmatprep.subr.bf16.mxu0 %v4387
      %4812 = vmatpush1.bf16.msra.mxu0 %v4386
      %4813 = vmatprep.subr.bf16.mxu0 %v4391
      %4814 = vmatpush1.bf16.msra.mxu0 %v4390
      %4815 = vmatprep.subr.bf16.mxu0 %v4395
      %4816 = vmatpush1.bf16.msra.mxu0 %v4394
      %4817 = vmatprep.subr.bf16.mxu0 %v4399
      %4818 = vmatpush1.bf16.msra.mxu0 %v4398
      %4819 = vmatprep.subr.bf16.mxu0 %v4403
      %4820 = vmatpush1.bf16.msra.mxu0 %v4402
      %4821 = vmatprep.subr.bf16.mxu0 %v4407
      %4822 = vmatpush1.bf16.msra.mxu0 %v4406
      %4823 = vmatprep.subr.bf16.mxu0 %v4411
      %4824 = vmatpush1.bf16.msra.mxu0 %v4410
      %4825 = vmatprep.mubr.bf16.mxu0 %v3111
      %4826 = vmatmul.mubr.bf16.gmra.mrb[0].mxu0 %v3110
      %v4827 = vpop.f32.mrb[0].mxu0
      %v4828 = vadd.f32 %v4787, %v4827
      %v4829 = vpop.f32.mrb[0].mxu0
      %v4830 = vadd.f32 %v4789, %v4829
      %v4831 = vpop.f32.mrb[0].mxu0
      %v4832 = vpop.f32.mrb[0].mxu0
      %4833 = vdwg.mxu0
      %4834 = vmatprep.subr.bf16.mxu0 %v4161
      %4835 = vmatpush1.bf16.msra.mxu0 %v4160
      %4836 = vmatprep.subr.bf16.mxu0 %v4165
      %4837 = vmatpush1.bf16.msra.mxu0 %v4164
      %4838 = vmatprep.subr.bf16.mxu0 %v4169
      %4839 = vmatpush1.bf16.msra.mxu0 %v4168
      %4840 = vmatprep.subr.bf16.mxu0 %v4173
      %4841 = vmatpush1.bf16.msra.mxu0 %v4172
      %4842 = vmatprep.subr.bf16.mxu0 %v4177
      %4843 = vmatpush1.bf16.msra.mxu0 %v4176
      %4844 = vmatprep.subr.bf16.mxu0 %v4181
      %4845 = vmatpush1.bf16.msra.mxu0 %v4180
      %4846 = vmatprep.subr.bf16.mxu0 %v4185
      %4847 = vmatpush1.bf16.msra.mxu0 %v4184
      %4848 = vmatprep.subr.bf16.mxu0 %v4189
      %4849 = vmatpush1.bf16.msra.mxu0 %v4188
      %4850 = vmatprep.subr.bf16.mxu0 %v4193
      %4851 = vmatpush1.bf16.msra.mxu0 %v4192
      %4852 = vmatprep.subr.bf16.mxu0 %v4197
      %4853 = vmatpush1.bf16.msra.mxu0 %v4196
      %4854 = vmatprep.subr.bf16.mxu0 %v4201
      %4855 = vmatpush1.bf16.msra.mxu0 %v4200
      %4856 = vmatprep.subr.bf16.mxu0 %v4205
      %4857 = vmatpush1.bf16.msra.mxu0 %v4204
      %4858 = vmatprep.subr.bf16.mxu0 %v4209
      %4859 = vmatpush1.bf16.msra.mxu0 %v4208
      %4860 = vmatprep.subr.bf16.mxu0 %v4213
      %4861 = vmatpush1.bf16.msra.mxu0 %v4212
      %4862 = vmatprep.subr.bf16.mxu0 %v4217
      %4863 = vmatpush1.bf16.msra.mxu0 %v4216
      %4864 = vmatprep.subr.bf16.mxu0 %v4221
      %4865 = vmatpush1.bf16.msra.mxu0 %v4220
      %4866 = vmatprep.mubr.bf16.mxu0 %v3105
      %4867 = vmatmul.mubr.bf16.gmra.mrb[0].mxu0 %v3104
      %v4868 = vpop.f32.mrb[0].mxu0
      %v4869 = vadd.f32 %v3381, %v4868
      %v4870 = vpop.f32.mrb[0].mxu0
      %v4871 = vadd.f32 %v3385, %v4870
      %v4872 = vpop.f32.mrb[0].mxu0
      %v4873 = vpop.f32.mrb[0].mxu0
      %4874 = vdwg.mxu0
      %4875 = vmatprep.subr.bf16.mxu0 %v4225
      %4876 = vmatpush1.bf16.msra.mxu0 %v4224
      %4877 = vmatprep.subr.bf16.mxu0 %v4229
      %4878 = vmatpush1.bf16.msra.mxu0 %v4228
      %4879 = vmatprep.subr.bf16.mxu0 %v4233
      %4880 = vmatpush1.bf16.msra.mxu0 %v4232
      %4881 = vmatprep.subr.bf16.mxu0 %v4237
      %4882 = vmatpush1.bf16.msra.mxu0 %v4236
      %4883 = vmatprep.subr.bf16.mxu0 %v4241
      %4884 = vmatpush1.bf16.msra.mxu0 %v4240
      %4885 = vmatprep.subr.bf16.mxu0 %v4245
      %4886 = vmatpush1.bf16.msra.mxu0 %v4244
      %4887 = vmatprep.subr.bf16.mxu0 %v4249
      %4888 = vmatpush1.bf16.msra.mxu0 %v4248
      %4889 = vmatprep.subr.bf16.mxu0 %v4253
      %4890 = vmatpush1.bf16.msra.mxu0 %v4252
      %4891 = vmatprep.subr.bf16.mxu0 %v4257
      %4892 = vmatpush1.bf16.msra.mxu0 %v4256
      %4893 = vmatprep.subr.bf16.mxu0 %v4261
      %4894 = vmatpush1.bf16.msra.mxu0 %v4260
      %4895 = vmatprep.subr.bf16.mxu0 %v4265
      %4896 = vmatpush1.bf16.msra.mxu0 %v4264
      %4897 = vmatprep.subr.bf16.mxu0 %v4269
      %4898 = vmatpush1.bf16.msra.mxu0 %v4268
      %4899 = vmatprep.subr.bf16.mxu0 %v4273
      %4900 = vmatpush1.bf16.msra.mxu0 %v4272
      %4901 = vmatprep.subr.bf16.mxu0 %v4277
      %4902 = vmatpush1.bf16.msra.mxu0 %v4276
      %4903 = vmatprep.subr.bf16.mxu0 %v4281
      %4904 = vmatpush1.bf16.msra.mxu0 %v4280
      %4905 = vmatprep.subr.bf16.mxu0 %v4285
      %4906 = vmatpush1.bf16.msra.mxu0 %v4284
      %4907 = vmatprep.mubr.bf16.mxu0 %v3107
      %4908 = vmatmul.mubr.bf16.gmra.mrb[0].mxu0 %v3106
      %v4909 = vpop.f32.mrb[0].mxu0
      %v4910 = vadd.f32 %v4869, %v4909
      %v4911 = vpop.f32.mrb[0].mxu0
      %v4912 = vadd.f32 %v4871, %v4911
      %v4913 = vpop.f32.mrb[0].mxu0
      %v4914 = vpop.f32.mrb[0].mxu0
      %4915 = vdwg.mxu0
      %4916 = vmatprep.subr.bf16.mxu0 %v4289
      %4917 = vmatpush1.bf16.msra.mxu0 %v4288
      %4918 = vmatprep.subr.bf16.mxu0 %v4293
      %4919 = vmatpush1.bf16.msra.mxu0 %v4292
      %4920 = vmatprep.subr.bf16.mxu0 %v4297
      %4921 = vmatpush1.bf16.msra.mxu0 %v4296
      %4922 = vmatprep.subr.bf16.mxu0 %v4301
      %4923 = vmatpush1.bf16.msra.mxu0 %v4300
      %4924 = vmatprep.subr.bf16.mxu0 %v4305
      %4925 = vmatpush1.bf16.msra.mxu0 %v4304
      %4926 = vmatprep.subr.bf16.mxu0 %v4309
      %4927 = vmatpush1.bf16.msra.mxu0 %v4308
      %4928 = vmatprep.subr.bf16.mxu0 %v4313
      %4929 = vmatpush1.bf16.msra.mxu0 %v4312
      %4930 = vmatprep.subr.bf16.mxu0 %v4317
      %4931 = vmatpush1.bf16.msra.mxu0 %v4316
      %4932 = vmatprep.subr.bf16.mxu0 %v4321
      %4933 = vmatpush1.bf16.msra.mxu0 %v4320
      %4934 = vmatprep.subr.bf16.mxu0 %v4325
      %4935 = vmatpush1.bf16.msra.mxu0 %v4324
      %4936 = vmatprep.subr.bf16.mxu0 %v4329
      %4937 = vmatpush1.bf16.msra.mxu0 %v4328
      %4938 = vmatprep.subr.bf16.mxu0 %v4333
      %4939 = vmatpush1.bf16.msra.mxu0 %v4332
      %4940 = vmatprep.subr.bf16.mxu0 %v4337
      %4941 = vmatpush1.bf16.msra.mxu0 %v4336
      %4942 = vmatprep.subr.bf16.mxu0 %v4341
      %4943 = vmatpush1.bf16.msra.mxu0 %v4340
      %4944 = vmatprep.subr.bf16.mxu0 %v4345
      %4945 = vmatpush1.bf16.msra.mxu0 %v4344
      %4946 = vmatprep.subr.bf16.mxu0 %v4349
      %4947 = vmatpush1.bf16.msra.mxu0 %v4348
      %4948 = vmatprep.mubr.bf16.mxu0 %v3109
      %4949 = vmatmul.mubr.bf16.gmra.mrb[0].mxu0 %v3108
      %v4950 = vpop.f32.mrb[0].mxu0
      %v4951 = vadd.f32 %v4910, %v4950
      %v4952 = vpop.f32.mrb[0].mxu0
      %v4953 = vadd.f32 %v4912, %v4952
      %v4954 = vpop.f32.mrb[0].mxu0
      %v4955 = vpop.f32.mrb[0].mxu0
      %4956 = vdwg.mxu0
      %4957 = vmatprep.subr.bf16.mxu0 %v4353
      %4958 = vmatpush1.bf16.msra.mxu0 %v4352
      %4959 = vmatprep.subr.bf16.mxu0 %v4357
      %4960 = vmatpush1.bf16.msra.mxu0 %v4356
      %4961 = vmatprep.subr.bf16.mxu0 %v4361
      %4962 = vmatpush1.bf16.msra.mxu0 %v4360
      %4963 = vmatprep.subr.bf16.mxu0 %v4365
      %4964 = vmatpush1.bf16.msra.mxu0 %v4364
      %4965 = vmatprep.subr.bf16.mxu0 %v4369
      %4966 = vmatpush1.bf16.msra.mxu0 %v4368
      %4967 = vmatprep.subr.bf16.mxu0 %v4373
      %4968 = vmatpush1.bf16.msra.mxu0 %v4372
      %4969 = vmatprep.subr.bf16.mxu0 %v4377
      %4970 = vmatpush1.bf16.msra.mxu0 %v4376
      %4971 = vmatprep.subr.bf16.mxu0 %v4381
      %4972 = vmatpush1.bf16.msra.mxu0 %v4380
      %4973 = vmatprep.subr.bf16.mxu0 %v4385
      %4974 = vmatpush1.bf16.msra.mxu0 %v4384
      %4975 = vmatprep.subr.bf16.mxu0 %v4389
      %4976 = vmatpush1.bf16.msra.mxu0 %v4388
      %4977 = vmatprep.subr.bf16.mxu0 %v4393
      %4978 = vmatpush1.bf16.msra.mxu0 %v4392
      %4979 = vmatprep.subr.bf16.mxu0 %v4397
      %4980 = vmatpush1.bf16.msra.mxu0 %v4396
      %4981 = vmatprep.subr.bf16.mxu0 %v4401
      %4982 = vmatpush1.bf16.msra.mxu0 %v4400
      %4983 = vmatprep.subr.bf16.mxu0 %v4405
      %4984 = vmatpush1.bf16.msra.mxu0 %v4404
      %4985 = vmatprep.subr.bf16.mxu0 %v4409
      %4986 = vmatpush1.bf16.msra.mxu0 %v4408
      %4987 = vmatprep.subr.bf16.mxu0 %v4413
      %4988 = vmatpush1.bf16.msra.mxu0 %v4412
      %4989 = vmatprep.mubr.bf16.mxu0 %v3111
      %4990 = vmatmul.mubr.bf16.gmra.mrb[0].mxu0 %v3110
      %v4991 = vpop.f32.mrb[0].mxu0
      %v4992 = vadd.f32 %v4951, %v4991
      %v4993 = vpop.f32.mrb[0].mxu0
      %v4994 = vadd.f32 %v4953, %v4993
      %v4995 = vpop.f32.mrb[0].mxu0
      %v4996 = vpop.f32.mrb[0].mxu0
      %4997 = vdwg.mxu0
      %v4998 = vmax.f32 %v4828, 0.0
      %v4999 = vmax.f32 %v4830, 0.0
      %v5000 = vmax.f32 %v4992, 0.0
      %v5001 = vmax.f32 %v4994, 0.0
      %v5002 = vpack.c.bf16 %v4998, %v4998
      %v5003 = vpack.c.bf16 %v4999, %v4999
      %v5004 = vpack.c.bf16 %v5000, %v5000
      %v5005 = vpack.c.bf16 %v5001, %v5001
      %v5006 = vld [vmem:[#allocation12] sm:$0xff]
      %v5007 = vld [vmem:[#allocation12 + $0x8] sm:$0xff]
      %v5008 = vld [vmem:[#allocation12 + $0x10] sm:$0xff]
      %v5009 = vld [vmem:[#allocation12 + $0x18] sm:$0xff]
      %v5010 = vld [vmem:[#allocation12 + $0x20] sm:$0xff]
      %v5011 = vld [vmem:[#allocation12 + $0x28] sm:$0xff]
      %v5012 = vld [vmem:[#allocation12 + $0x30] sm:$0xff]
      %v5013 = vld [vmem:[#allocation12 + $0x38] sm:$0xff]
      %v5014 = vld [vmem:[#allocation12 + $0x40] sm:$0xff]
      %v5015 = vld [vmem:[#allocation12 + $0x48] sm:$0xff]
      %v5016 = vld [vmem:[#allocation12 + $0x50] sm:$0xff]
      %v5017 = vld [vmem:[#allocation12 + $0x58] sm:$0xff]
      %v5018 = vld [vmem:[#allocation12 + $0x60] sm:$0xff]
      %v5019 = vld [vmem:[#allocation12 + $0x68] sm:$0xff]
      %v5020 = vld [vmem:[#allocation12 + $0x70] sm:$0xff]
      %v5021 = vld [vmem:[#allocation12 + $0x78] sm:$0xff]
      %v5022 = vld [vmem:[#allocation12 + $0x80] sm:$0xff]
      %v5023 = vld [vmem:[#allocation12 + $0x88] sm:$0xff]
      %v5024 = vld [vmem:[#allocation12 + $0x90] sm:$0xff]
      %v5025 = vld [vmem:[#allocation12 + $0x98] sm:$0xff]
      %v5026 = vld [vmem:[#allocation12 + $0xa0] sm:$0xff]
      %v5027 = vld [vmem:[#allocation12 + $0xa8] sm:$0xff]
      %v5028 = vld [vmem:[#allocation12 + $0xb0] sm:$0xff]
      %v5029 = vld [vmem:[#allocation12 + $0xb8] sm:$0xff]
      %v5030 = vld [vmem:[#allocation12 + $0xc0] sm:$0xff]
      %v5031 = vld [vmem:[#allocation12 + $0xc8] sm:$0xff]
      %v5032 = vld [vmem:[#allocation12 + $0xd0] sm:$0xff]
      %v5033 = vld [vmem:[#allocation12 + $0xd8] sm:$0xff]
      %v5034 = vld [vmem:[#allocation12 + $0xe0] sm:$0xff]
      %v5035 = vld [vmem:[#allocation12 + $0xe8] sm:$0xff]
      %v5036 = vld [vmem:[#allocation12 + $0xf0] sm:$0xff]
      %v5037 = vld [vmem:[#allocation12 + $0xf8] sm:$0xff]
      %v5038 = vld [vmem:[#allocation12 + $0x100] sm:$0xff]
      %v5039 = vld [vmem:[#allocation12 + $0x108] sm:$0xff]
      %v5040 = vld [vmem:[#allocation12 + $0x110] sm:$0xff]
      %v5041 = vld [vmem:[#allocation12 + $0x118] sm:$0xff]
      %v5042 = vld [vmem:[#allocation12 + $0x120] sm:$0xff]
      %v5043 = vld [vmem:[#allocation12 + $0x128] sm:$0xff]
      %v5044 = vld [vmem:[#allocation12 + $0x130] sm:$0xff]
      %v5045 = vld [vmem:[#allocation12 + $0x138] sm:$0xff]
      %v5046 = vld [vmem:[#allocation12 + $0x140] sm:$0xff]
      %v5047 = vld [vmem:[#allocation12 + $0x148] sm:$0xff]
      %v5048 = vld [vmem:[#allocation12 + $0x150] sm:$0xff]
      %v5049 = vld [vmem:[#allocation12 + $0x158] sm:$0xff]
      %v5050 = vld [vmem:[#allocation12 + $0x160] sm:$0xff]
      %v5051 = vld [vmem:[#allocation12 + $0x168] sm:$0xff]
      %v5052 = vld [vmem:[#allocation12 + $0x170] sm:$0xff]
      %v5053 = vld [vmem:[#allocation12 + $0x178] sm:$0xff]
      %v5054 = vld [vmem:[#allocation12 + $0x180] sm:$0xff]
      %v5055 = vld [vmem:[#allocation12 + $0x188] sm:$0xff]
      %v5056 = vld [vmem:[#allocation12 + $0x190] sm:$0xff]
      %v5057 = vld [vmem:[#allocation12 + $0x198] sm:$0xff]
      %v5058 = vld [vmem:[#allocation12 + $0x1a0] sm:$0xff]
      %v5059 = vld [vmem:[#allocation12 + $0x1a8] sm:$0xff]
      %v5060 = vld [vmem:[#allocation12 + $0x1b0] sm:$0xff]
      %v5061 = vld [vmem:[#allocation12 + $0x1b8] sm:$0xff]
      %v5062 = vld [vmem:[#allocation12 + $0x1c0] sm:$0xff]
      %v5063 = vld [vmem:[#allocation12 + $0x1c8] sm:$0xff]
      %v5064 = vld [vmem:[#allocation12 + $0x1d0] sm:$0xff]
      %v5065 = vld [vmem:[#allocation12 + $0x1d8] sm:$0xff]
      %v5066 = vld [vmem:[#allocation12 + $0x1e0] sm:$0xff]
      %v5067 = vld [vmem:[#allocation12 + $0x1e8] sm:$0xff]
      %v5068 = vld [vmem:[#allocation12 + $0x1f0] sm:$0xff]
      %v5069 = vld [vmem:[#allocation12 + $0x1f8] sm:$0xff]
      %v5070 = vld [vmem:[#allocation14] sm:$0x3]
      %v5072 = vlaneseq
      %v5073 = vshrl.u32 %v5072, 7
      %v5074 = vsub.s32 0, %v5073
      %v5075 = vrot.slane %v5070, %v5074
      %v5076 = vlaneseq
      %v5077 = vshrl.u32 %v5076, 7
      %v5078 = vsub.s32 1, %v5077
      %v5079 = vrot.slane %v5070, %v5078
      %v5146 = vunpack.c.l.b16 %v5006
      %v5147 = vunpack.c.h.b16 %v5006
      %v5148 = vunpack.c.l.b16 %v5007
      %v5149 = vunpack.c.h.b16 %v5007
      %v5150 = vunpack.c.l.b16 %v5008
      %v5151 = vunpack.c.h.b16 %v5008
      %v5152 = vunpack.c.l.b16 %v5009
      %v5153 = vunpack.c.h.b16 %v5009
      %v5154 = vunpack.c.l.b16 %v5010
      %v5155 = vunpack.c.h.b16 %v5010
      %v5156 = vunpack.c.l.b16 %v5011
      %v5157 = vunpack.c.h.b16 %v5011
      %v5158 = vunpack.c.l.b16 %v5012
      %v5159 = vunpack.c.h.b16 %v5012
      %v5160 = vunpack.c.l.b16 %v5013
      %v5161 = vunpack.c.h.b16 %v5013
      %v5162 = vunpack.c.l.b16 %v5014
      %v5163 = vunpack.c.h.b16 %v5014
      %v5164 = vunpack.c.l.b16 %v5015
      %v5165 = vunpack.c.h.b16 %v5015
      %v5166 = vunpack.c.l.b16 %v5016
      %v5167 = vunpack.c.h.b16 %v5016
      %v5168 = vunpack.c.l.b16 %v5017
      %v5169 = vunpack.c.h.b16 %v5017
      %v5170 = vunpack.c.l.b16 %v5018
      %v5171 = vunpack.c.h.b16 %v5018
      %v5172 = vunpack.c.l.b16 %v5019
      %v5173 = vunpack.c.h.b16 %v5019
      %v5174 = vunpack.c.l.b16 %v5020
      %v5175 = vunpack.c.h.b16 %v5020
      %v5176 = vunpack.c.l.b16 %v5021
      %v5177 = vunpack.c.h.b16 %v5021
      %v5178 = vunpack.c.l.b16 %v5022
      %v5179 = vunpack.c.h.b16 %v5022
      %v5180 = vunpack.c.l.b16 %v5023
      %v5181 = vunpack.c.h.b16 %v5023
      %v5182 = vunpack.c.l.b16 %v5024
      %v5183 = vunpack.c.h.b16 %v5024
      %v5184 = vunpack.c.l.b16 %v5025
      %v5185 = vunpack.c.h.b16 %v5025
      %v5186 = vunpack.c.l.b16 %v5026
      %v5187 = vunpack.c.h.b16 %v5026
      %v5188 = vunpack.c.l.b16 %v5027
      %v5189 = vunpack.c.h.b16 %v5027
      %v5190 = vunpack.c.l.b16 %v5028
      %v5191 = vunpack.c.h.b16 %v5028
      %v5192 = vunpack.c.l.b16 %v5029
      %v5193 = vunpack.c.h.b16 %v5029
      %v5194 = vunpack.c.l.b16 %v5030
      %v5195 = vunpack.c.h.b16 %v5030
      %v5196 = vunpack.c.l.b16 %v5031
      %v5197 = vunpack.c.h.b16 %v5031
      %v5198 = vunpack.c.l.b16 %v5032
      %v5199 = vunpack.c.h.b16 %v5032
      %v5200 = vunpack.c.l.b16 %v5033
      %v5201 = vunpack.c.h.b16 %v5033
      %v5202 = vunpack.c.l.b16 %v5034
      %v5203 = vunpack.c.h.b16 %v5034
      %v5204 = vunpack.c.l.b16 %v5035
      %v5205 = vunpack.c.h.b16 %v5035
      %v5206 = vunpack.c.l.b16 %v5036
      %v5207 = vunpack.c.h.b16 %v5036
      %v5208 = vunpack.c.l.b16 %v5037
      %v5209 = vunpack.c.h.b16 %v5037
      %v5210 = vunpack.c.l.b16 %v5038
      %v5211 = vunpack.c.h.b16 %v5038
      %v5212 = vunpack.c.l.b16 %v5039
      %v5213 = vunpack.c.h.b16 %v5039
      %v5214 = vunpack.c.l.b16 %v5040
      %v5215 = vunpack.c.h.b16 %v5040
      %v5216 = vunpack.c.l.b16 %v5041
      %v5217 = vunpack.c.h.b16 %v5041
      %v5218 = vunpack.c.l.b16 %v5042
      %v5219 = vunpack.c.h.b16 %v5042
      %v5220 = vunpack.c.l.b16 %v5043
      %v5221 = vunpack.c.h.b16 %v5043
      %v5222 = vunpack.c.l.b16 %v5044
      %v5223 = vunpack.c.h.b16 %v5044
      %v5224 = vunpack.c.l.b16 %v5045
      %v5225 = vunpack.c.h.b16 %v5045
      %v5226 = vunpack.c.l.b16 %v5046
      %v5227 = vunpack.c.h.b16 %v5046
      %v5228 = vunpack.c.l.b16 %v5047
      %v5229 = vunpack.c.h.b16 %v5047
      %v5230 = vunpack.c.l.b16 %v5048
      %v5231 = vunpack.c.h.b16 %v5048
      %v5232 = vunpack.c.l.b16 %v5049
      %v5233 = vunpack.c.h.b16 %v5049
      %v5234 = vunpack.c.l.b16 %v5050
      %v5235 = vunpack.c.h.b16 %v5050
      %v5236 = vunpack.c.l.b16 %v5051
      %v5237 = vunpack.c.h.b16 %v5051
      %v5238 = vunpack.c.l.b16 %v5052
      %v5239 = vunpack.c.h.b16 %v5052
      %v5240 = vunpack.c.l.b16 %v5053
      %v5241 = vunpack.c.h.b16 %v5053
      %v5242 = vunpack.c.l.b16 %v5054
      %v5243 = vunpack.c.h.b16 %v5054
      %v5244 = vunpack.c.l.b16 %v5055
      %v5245 = vunpack.c.h.b16 %v5055
      %v5246 = vunpack.c.l.b16 %v5056
      %v5247 = vunpack.c.h.b16 %v5056
      %v5248 = vunpack.c.l.b16 %v5057
      %v5249 = vunpack.c.h.b16 %v5057
      %v5250 = vunpack.c.l.b16 %v5058
      %v5251 = vunpack.c.h.b16 %v5058
      %v5252 = vunpack.c.l.b16 %v5059
      %v5253 = vunpack.c.h.b16 %v5059
      %v5254 = vunpack.c.l.b16 %v5060
      %v5255 = vunpack.c.h.b16 %v5060
      %v5256 = vunpack.c.l.b16 %v5061
      %v5257 = vunpack.c.h.b16 %v5061
      %v5258 = vunpack.c.l.b16 %v5062
      %v5259 = vunpack.c.h.b16 %v5062
      %v5260 = vunpack.c.l.b16 %v5063
      %v5261 = vunpack.c.h.b16 %v5063
      %v5262 = vunpack.c.l.b16 %v5064
      %v5263 = vunpack.c.h.b16 %v5064
      %v5264 = vunpack.c.l.b16 %v5065
      %v5265 = vunpack.c.h.b16 %v5065
      %v5266 = vunpack.c.l.b16 %v5066
      %v5267 = vunpack.c.h.b16 %v5066
      %v5268 = vunpack.c.l.b16 %v5067
      %v5269 = vunpack.c.h.b16 %v5067
      %v5270 = vunpack.c.l.b16 %v5068
      %v5271 = vunpack.c.h.b16 %v5068
      %v5272 = vunpack.c.l.b16 %v5069
      %v5273 = vunpack.c.h.b16 %v5069
      %v5274 = vpack.c.b16 %v5148, %v5146
      %v5275 = vpack.c.b16 %v5149, %v5147
      %v5276 = vpack.c.b16 %v5152, %v5150
      %v5277 = vpack.c.b16 %v5153, %v5151
      %v5278 = vpack.c.b16 %v5156, %v5154
      %v5279 = vpack.c.b16 %v5157, %v5155
      %v5280 = vpack.c.b16 %v5160, %v5158
      %v5281 = vpack.c.b16 %v5161, %v5159
      %v5282 = vpack.c.b16 %v5164, %v5162
      %v5283 = vpack.c.b16 %v5165, %v5163
      %v5284 = vpack.c.b16 %v5168, %v5166
      %v5285 = vpack.c.b16 %v5169, %v5167
      %v5286 = vpack.c.b16 %v5172, %v5170
      %v5287 = vpack.c.b16 %v5173, %v5171
      %v5288 = vpack.c.b16 %v5176, %v5174
      %v5289 = vpack.c.b16 %v5177, %v5175
      %v5290 = vpack.c.b16 %v5180, %v5178
      %v5291 = vpack.c.b16 %v5181, %v5179
      %v5292 = vpack.c.b16 %v5184, %v5182
      %v5293 = vpack.c.b16 %v5185, %v5183
      %v5294 = vpack.c.b16 %v5188, %v5186
      %v5295 = vpack.c.b16 %v5189, %v5187
      %v5296 = vpack.c.b16 %v5192, %v5190
      %v5297 = vpack.c.b16 %v5193, %v5191
      %v5298 = vpack.c.b16 %v5196, %v5194
      %v5299 = vpack.c.b16 %v5197, %v5195
      %v5300 = vpack.c.b16 %v5200, %v5198
      %v5301 = vpack.c.b16 %v5201, %v5199
      %v5302 = vpack.c.b16 %v5204, %v5202
      %v5303 = vpack.c.b16 %v5205, %v5203
      %v5304 = vpack.c.b16 %v5208, %v5206
      %v5305 = vpack.c.b16 %v5209, %v5207
      %v5306 = vpack.c.b16 %v5212, %v5210
      %v5307 = vpack.c.b16 %v5213, %v5211
      %v5308 = vpack.c.b16 %v5216, %v5214
      %v5309 = vpack.c.b16 %v5217, %v5215
      %v5310 = vpack.c.b16 %v5220, %v5218
      %v5311 = vpack.c.b16 %v5221, %v5219
      %v5312 = vpack.c.b16 %v5224, %v5222
      %v5313 = vpack.c.b16 %v5225, %v5223
      %v5314 = vpack.c.b16 %v5228, %v5226
      %v5315 = vpack.c.b16 %v5229, %v5227
      %v5316 = vpack.c.b16 %v5232, %v5230
      %v5317 = vpack.c.b16 %v5233, %v5231
      %v5318 = vpack.c.b16 %v5236, %v5234
      %v5319 = vpack.c.b16 %v5237, %v5235
      %v5320 = vpack.c.b16 %v5240, %v5238
      %v5321 = vpack.c.b16 %v5241, %v5239
      %v5322 = vpack.c.b16 %v5244, %v5242
      %v5323 = vpack.c.b16 %v5245, %v5243
      %v5324 = vpack.c.b16 %v5248, %v5246
      %v5325 = vpack.c.b16 %v5249, %v5247
      %v5326 = vpack.c.b16 %v5252, %v5250
      %v5327 = vpack.c.b16 %v5253, %v5251
      %v5328 = vpack.c.b16 %v5256, %v5254
      %v5329 = vpack.c.b16 %v5257, %v5255
      %v5330 = vpack.c.b16 %v5260, %v5258
      %v5331 = vpack.c.b16 %v5261, %v5259
      %v5332 = vpack.c.b16 %v5264, %v5262
      %v5333 = vpack.c.b16 %v5265, %v5263
      %v5334 = vpack.c.b16 %v5268, %v5266
      %v5335 = vpack.c.b16 %v5269, %v5267
      %v5336 = vpack.c.b16 %v5272, %v5270
      %v5337 = vpack.c.b16 %v5273, %v5271
      %5402 = vmatprep.subr.bf16.mxu0 %v5275
      %5403 = vmatpush1.bf16.msra.mxu0 %v5274
      %5404 = vmatprep.subr.bf16.mxu0 %v5277
      %5405 = vmatpush1.bf16.msra.mxu0 %v5276
      %5406 = vmatprep.subr.bf16.mxu0 %v5279
      %5407 = vmatpush1.bf16.msra.mxu0 %v5278
      %5408 = vmatprep.subr.bf16.mxu0 %v5281
      %5409 = vmatpush1.bf16.msra.mxu0 %v5280
      %5410 = vmatprep.subr.bf16.mxu0 %v5283
      %5411 = vmatpush1.bf16.msra.mxu0 %v5282
      %5412 = vmatprep.subr.bf16.mxu0 %v5285
      %5413 = vmatpush1.bf16.msra.mxu0 %v5284
      %5414 = vmatprep.subr.bf16.mxu0 %v5287
      %5415 = vmatpush1.bf16.msra.mxu0 %v5286
      %5416 = vmatprep.subr.bf16.mxu0 %v5289
      %5417 = vmatpush1.bf16.msra.mxu0 %v5288
      %5418 = vmatprep.subr.bf16.mxu0 %v5291
      %5419 = vmatpush1.bf16.msra.mxu0 %v5290
      %5420 = vmatprep.subr.bf16.mxu0 %v5293
      %5421 = vmatpush1.bf16.msra.mxu0 %v5292
      %5422 = vmatprep.subr.bf16.mxu0 %v5295
      %5423 = vmatpush1.bf16.msra.mxu0 %v5294
      %5424 = vmatprep.subr.bf16.mxu0 %v5297
      %5425 = vmatpush1.bf16.msra.mxu0 %v5296
      %5426 = vmatprep.subr.bf16.mxu0 %v5299
      %5427 = vmatpush1.bf16.msra.mxu0 %v5298
      %5428 = vmatprep.subr.bf16.mxu0 %v5301
      %5429 = vmatpush1.bf16.msra.mxu0 %v5300
      %5430 = vmatprep.subr.bf16.mxu0 %v5303
      %5431 = vmatpush1.bf16.msra.mxu0 %v5302
      %5432 = vmatprep.subr.bf16.mxu0 %v5305
      %5433 = vmatpush1.bf16.msra.mxu0 %v5304
      %5434 = vmatprep.mubr.bf16.mxu0 %v5003
      %5435 = vmatmul.mubr.bf16.gmra.mrb[0].mxu0 %v5002
      %v5436 = vpop.f32.mrb[0].mxu0
      %v5437 = vadd.f32 %v5075, %v5436
      %v5438 = vpop.f32.mrb[0].mxu0
      %v5439 = vadd.f32 %v5079, %v5438
      %v5440 = vpop.f32.mrb[0].mxu0
      %v5441 = vpop.f32.mrb[0].mxu0
      %5442 = vdwg.mxu0
      %5443 = vmatprep.subr.bf16.mxu0 %v5307
      %5444 = vmatpush1.bf16.msra.mxu0 %v5306
      %5445 = vmatprep.subr.bf16.mxu0 %v5309
      %5446 = vmatpush1.bf16.msra.mxu0 %v5308
      %5447 = vmatprep.subr.bf16.mxu0 %v5311
      %5448 = vmatpush1.bf16.msra.mxu0 %v5310
      %5449 = vmatprep.subr.bf16.mxu0 %v5313
      %5450 = vmatpush1.bf16.msra.mxu0 %v5312
      %5451 = vmatprep.subr.bf16.mxu0 %v5315
      %5452 = vmatpush1.bf16.msra.mxu0 %v5314
      %5453 = vmatprep.subr.bf16.mxu0 %v5317
      %5454 = vmatpush1.bf16.msra.mxu0 %v5316
      %5455 = vmatprep.subr.bf16.mxu0 %v5319
      %5456 = vmatpush1.bf16.msra.mxu0 %v5318
      %5457 = vmatprep.subr.bf16.mxu0 %v5321
      %5458 = vmatpush1.bf16.msra.mxu0 %v5320
      %5459 = vmatprep.subr.bf16.mxu0 %v5323
      %5460 = vmatpush1.bf16.msra.mxu0 %v5322
      %5461 = vmatprep.subr.bf16.mxu0 %v5325
      %5462 = vmatpush1.bf16.msra.mxu0 %v5324
      %5463 = vmatprep.subr.bf16.mxu0 %v5327
      %5464 = vmatpush1.bf16.msra.mxu0 %v5326
      %5465 = vmatprep.subr.bf16.mxu0 %v5329
      %5466 = vmatpush1.bf16.msra.mxu0 %v5328
      %5467 = vmatprep.subr.bf16.mxu0 %v5331
      %5468 = vmatpush1.bf16.msra.mxu0 %v5330
      %5469 = vmatprep.subr.bf16.mxu0 %v5333
      %5470 = vmatpush1.bf16.msra.mxu0 %v5332
      %5471 = vmatprep.subr.bf16.mxu0 %v5335
      %5472 = vmatpush1.bf16.msra.mxu0 %v5334
      %5473 = vmatprep.subr.bf16.mxu0 %v5337
      %5474 = vmatpush1.bf16.msra.mxu0 %v5336
      %5475 = vmatprep.mubr.bf16.mxu0 %v5005
      %5476 = vmatmul.mubr.bf16.gmra.mrb[0].mxu0 %v5004
      %v5477 = vpop.f32.mrb[0].mxu0
      %v5478 = vadd.f32 %v5437, %v5477
      %v5479 = vpop.f32.mrb[0].mxu0
      %v5480 = vadd.f32 %v5439, %v5479
      %v5481 = vpop.f32.mrb[0].mxu0
      %v5482 = vpop.f32.mrb[0].mxu0
      %5483 = vdwg.mxu0
      %v5484 = vmax.f32 %v5478, 0.0
      %v5485 = vmax.f32 %v5480, 0.0
      %v5486 = vpack.c.bf16 %v5484, %v5484
      %v5487 = vpack.c.bf16 %v5485, %v5485
      %v5488 = vld [vmem:[#allocation15] sm:$0xf]
      %v5489 = vld [vmem:[#allocation15 + $0x4] sm:$0xf]
      %v5490 = vld [vmem:[#allocation15 + $0x8] sm:$0xf]
      %v5491 = vld [vmem:[#allocation15 + $0xc] sm:$0xf]
      %v5492 = vld [vmem:[#allocation15 + $0x10] sm:$0xf]
      %v5493 = vld [vmem:[#allocation15 + $0x14] sm:$0xf]
      %v5494 = vld [vmem:[#allocation15 + $0x18] sm:$0xf]
      %v5495 = vld [vmem:[#allocation15 + $0x1c] sm:$0xf]
      %v5496 = vld [vmem:[#allocation15 + $0x20] sm:$0xf]
      %v5497 = vld [vmem:[#allocation15 + $0x24] sm:$0xf]
      %v5498 = vld [vmem:[#allocation15 + $0x28] sm:$0xf]
      %v5499 = vld [vmem:[#allocation15 + $0x2c] sm:$0xf]
      %v5500 = vld [vmem:[#allocation15 + $0x30] sm:$0xf]
      %v5501 = vld [vmem:[#allocation15 + $0x34] sm:$0xf]
      %v5502 = vld [vmem:[#allocation15 + $0x38] sm:$0xf]
      %v5503 = vld [vmem:[#allocation15 + $0x3c] sm:$0xf]
      %v5504 = vld [vmem:[#allocation15 + $0x40] sm:$0xf]
      %v5505 = vld [vmem:[#allocation15 + $0x44] sm:$0xf]
      %v5506 = vld [vmem:[#allocation15 + $0x48] sm:$0xf]
      %v5507 = vld [vmem:[#allocation15 + $0x4c] sm:$0xf]
      %v5508 = vld [vmem:[#allocation15 + $0x50] sm:$0xf]
      %v5509 = vld [vmem:[#allocation15 + $0x54] sm:$0xf]
      %v5510 = vld [vmem:[#allocation15 + $0x58] sm:$0xf]
      %v5511 = vld [vmem:[#allocation15 + $0x5c] sm:$0xf]
      %v5512 = vld [vmem:[#allocation15 + $0x60] sm:$0xf]
      %v5513 = vld [vmem:[#allocation15 + $0x64] sm:$0xf]
      %v5514 = vld [vmem:[#allocation15 + $0x68] sm:$0xf]
      %v5515 = vld [vmem:[#allocation15 + $0x6c] sm:$0xf]
      %v5516 = vld [vmem:[#allocation15 + $0x70] sm:$0xf]
      %v5517 = vld [vmem:[#allocation15 + $0x74] sm:$0xf]
      %v5518 = vld [vmem:[#allocation15 + $0x78] sm:$0xf]
      %v5519 = vld [vmem:[#allocation15 + $0x7c] sm:$0xf]
      %v5520 = vld [vmem:[#allocation17] sm:$0x1]
      %v5522 = vlaneseq
      %v5523 = vshrl.u32 %v5522, 7
      %v5524 = vsub.s32 0, %v5523
      %v5525 = vrot.slane %v5520, %v5524
      %v5559 = vunpack.c.l.b16 %v5488
      %v5560 = vunpack.c.l.b16 %v5489
      %v5561 = vunpack.c.l.b16 %v5490
      %v5562 = vunpack.c.l.b16 %v5491
      %v5563 = vunpack.c.l.b16 %v5492
      %v5564 = vunpack.c.l.b16 %v5493
      %v5565 = vunpack.c.l.b16 %v5494
      %v5566 = vunpack.c.l.b16 %v5495
      %v5567 = vunpack.c.l.b16 %v5496
      %v5568 = vunpack.c.l.b16 %v5497
      %v5569 = vunpack.c.l.b16 %v5498
      %v5570 = vunpack.c.l.b16 %v5499
      %v5571 = vunpack.c.l.b16 %v5500
      %v5572 = vunpack.c.l.b16 %v5501
      %v5573 = vunpack.c.l.b16 %v5502
      %v5574 = vunpack.c.l.b16 %v5503
      %v5575 = vunpack.c.l.b16 %v5504
      %v5576 = vunpack.c.l.b16 %v5505
      %v5577 = vunpack.c.l.b16 %v5506
      %v5578 = vunpack.c.l.b16 %v5507
      %v5579 = vunpack.c.l.b16 %v5508
      %v5580 = vunpack.c.l.b16 %v5509
      %v5581 = vunpack.c.l.b16 %v5510
      %v5582 = vunpack.c.l.b16 %v5511
      %v5583 = vunpack.c.l.b16 %v5512
      %v5584 = vunpack.c.l.b16 %v5513
      %v5585 = vunpack.c.l.b16 %v5514
      %v5586 = vunpack.c.l.b16 %v5515
      %v5587 = vunpack.c.l.b16 %v5516
      %v5588 = vunpack.c.l.b16 %v5517
      %v5589 = vunpack.c.l.b16 %v5518
      %v5590 = vunpack.c.l.b16 %v5519
      %v5591 = vpack.c.b16 %v5560, %v5559
      %v5592 = vpack.c.b16 %v5562, %v5561
      %v5593 = vpack.c.b16 %v5564, %v5563
      %v5594 = vpack.c.b16 %v5566, %v5565
      %v5595 = vpack.c.b16 %v5568, %v5567
      %v5596 = vpack.c.b16 %v5570, %v5569
      %v5597 = vpack.c.b16 %v5572, %v5571
      %v5598 = vpack.c.b16 %v5574, %v5573
      %v5599 = vpack.c.b16 %v5576, %v5575
      %v5600 = vpack.c.b16 %v5578, %v5577
      %v5601 = vpack.c.b16 %v5580, %v5579
      %v5602 = vpack.c.b16 %v5582, %v5581
      %v5603 = vpack.c.b16 %v5584, %v5583
      %v5604 = vpack.c.b16 %v5586, %v5585
      %v5605 = vpack.c.b16 %v5588, %v5587
      %v5606 = vpack.c.b16 %v5590, %v5589
      %5623 = vmatprep.subr.bf16.mxu0 0
      %5624 = vmatpush1.bf16.msra.mxu0 %v5591
      %5625 = vmatprep.subr.bf16.mxu0 0
      %5626 = vmatpush1.bf16.msra.mxu0 %v5592
      %5627 = vmatprep.subr.bf16.mxu0 0
      %5628 = vmatpush1.bf16.msra.mxu0 %v5593
      %5629 = vmatprep.subr.bf16.mxu0 0
      %5630 = vmatpush1.bf16.msra.mxu0 %v5594
      %5631 = vmatprep.subr.bf16.mxu0 0
      %5632 = vmatpush1.bf16.msra.mxu0 %v5595
      %5633 = vmatprep.subr.bf16.mxu0 0
      %5634 = vmatpush1.bf16.msra.mxu0 %v5596
      %5635 = vmatprep.subr.bf16.mxu0 0
      %5636 = vmatpush1.bf16.msra.mxu0 %v5597
      %5637 = vmatprep.subr.bf16.mxu0 0
      %5638 = vmatpush1.bf16.msra.mxu0 %v5598
      %5639 = vmatprep.subr.bf16.mxu0 0
      %5640 = vmatpush1.bf16.msra.mxu0 %v5599
      %5641 = vmatprep.subr.bf16.mxu0 0
      %5642 = vmatpush1.bf16.msra.mxu0 %v5600
      %5643 = vmatprep.subr.bf16.mxu0 0
      %5644 = vmatpush1.bf16.msra.mxu0 %v5601
      %5645 = vmatprep.subr.bf16.mxu0 0
      %5646 = vmatpush1.bf16.msra.mxu0 %v5602
      %5647 = vmatprep.subr.bf16.mxu0 0
      %5648 = vmatpush1.bf16.msra.mxu0 %v5603
      %5649 = vmatprep.subr.bf16.mxu0 0
      %5650 = vmatpush1.bf16.msra.mxu0 %v5604
      %5651 = vmatprep.subr.bf16.mxu0 0
      %5652 = vmatpush1.bf16.msra.mxu0 %v5605
      %5653 = vmatprep.subr.bf16.mxu0 0
      %5654 = vmatpush1.bf16.msra.mxu0 %v5606
      %5655 = vmatprep.mubr.bf16.mxu0 %v5487
      %5656 = vmatmul.mubr.bf16.gmra.mrb[0].mxu0 %v5486
      %v5657 = vpop.f32.mrb[0].mxu0
      %v5658 = vadd.f32 %v5525, %v5657
      %v5659 = vpop.f32.mrb[0].mxu0
      %v5660 = vpop.f32.mrb[0].mxu0
      %v5661 = vpop.f32.mrb[0].mxu0
      %5662 = vdwg.mxu0
      %v5663 = vmax.f32 %v5658, 0.0
      %v5664 = vpack.c.bf16 %v5663, %v5663
      %v5665 = vld [vmem:[#allocation18] sm:$0xf]
      %v5666 = vld [vmem:[#allocation18 + $0x4] sm:$0xf]
      %v5667 = vld [vmem:[#allocation18 + $0x8] sm:$0xf]
      %v5668 = vld [vmem:[#allocation18 + $0xc] sm:$0xf]
      %v5669 = vld [vmem:[#allocation18 + $0x10] sm:$0xf]
      %v5670 = vld [vmem:[#allocation18 + $0x14] sm:$0xf]
      %v5671 = vld [vmem:[#allocation18 + $0x18] sm:$0xf]
      %v5672 = vld [vmem:[#allocation18 + $0x1c] sm:$0xf]
      %v5673 = vld [vmem:[#allocation18 + $0x20] sm:$0xf]
      %v5674 = vld [vmem:[#allocation18 + $0x24] sm:$0xf]
      %v5675 = vld [vmem:[#allocation18 + $0x28] sm:$0xf]
      %v5676 = vld [vmem:[#allocation18 + $0x2c] sm:$0xf]
      %v5677 = vld [vmem:[#allocation18 + $0x30] sm:$0xf]
      %v5678 = vld [vmem:[#allocation18 + $0x34] sm:$0xf]
      %v5679 = vld [vmem:[#allocation18 + $0x38] sm:$0xf]
      %v5680 = vld [vmem:[#allocation18 + $0x3c] sm:$0xf]
      %v5681 = vld [vmem:[#allocation20] sm:$0x1]
      %v5683 = vlaneseq
      %v5684 = vshrl.u32 %v5683, 7
      %v5685 = vsub.s32 0, %v5684
      %v5686 = vrot.slane %v5681, %v5685
      %v5704 = vunpack.c.l.b16 %v5665
      %v5705 = vunpack.c.l.b16 %v5666
      %v5706 = vunpack.c.l.b16 %v5667
      %v5707 = vunpack.c.l.b16 %v5668
      %v5708 = vunpack.c.l.b16 %v5669
      %v5709 = vunpack.c.l.b16 %v5670
      %v5710 = vunpack.c.l.b16 %v5671
      %v5711 = vunpack.c.l.b16 %v5672
      %v5712 = vunpack.c.l.b16 %v5673
      %v5713 = vunpack.c.l.b16 %v5674
      %v5714 = vunpack.c.l.b16 %v5675
      %v5715 = vunpack.c.l.b16 %v5676
      %v5716 = vunpack.c.l.b16 %v5677
      %v5717 = vunpack.c.l.b16 %v5678
      %v5718 = vunpack.c.l.b16 %v5679
      %v5719 = vunpack.c.l.b16 %v5680
      %v5720 = vpack.c.b16 %v5705, %v5704
      %v5721 = vpack.c.b16 %v5707, %v5706
      %v5722 = vpack.c.b16 %v5709, %v5708
      %v5723 = vpack.c.b16 %v5711, %v5710
      %v5724 = vpack.c.b16 %v5713, %v5712
      %v5725 = vpack.c.b16 %v5715, %v5714
      %v5726 = vpack.c.b16 %v5717, %v5716
      %v5727 = vpack.c.b16 %v5719, %v5718
      %5736 = vmatprep.subr.bf16.mxu0 0
      %5737 = vmatpush1.bf16.msra.mxu0 %v5720
      %5738 = vmatprep.subr.bf16.mxu0 0
      %5739 = vmatpush1.bf16.msra.mxu0 %v5721
      %5740 = vmatprep.subr.bf16.mxu0 0
      %5741 = vmatpush1.bf16.msra.mxu0 %v5722
      %5742 = vmatprep.subr.bf16.mxu0 0
      %5743 = vmatpush1.bf16.msra.mxu0 %v5723
      %5744 = vmatprep.subr.bf16.mxu0 0
      %5745 = vmatpush1.bf16.msra.mxu0 %v5724
      %5746 = vmatprep.subr.bf16.mxu0 0
      %5747 = vmatpush1.bf16.msra.mxu0 %v5725
      %5748 = vmatprep.subr.bf16.mxu0 0
      %5749 = vmatpush1.bf16.msra.mxu0 %v5726
      %5750 = vmatprep.subr.bf16.mxu0 0
      %5751 = vmatpush1.bf16.msra.mxu0 %v5727
      %5752 = vmatprep.subr.bf16.mxu0 0
      %5753 = vmatpush1.bf16.msra.mxu0 0
      %5754 = vmatprep.subr.bf16.mxu0 0
      %5755 = vmatpush1.bf16.msra.mxu0 0
      %5756 = vmatprep.subr.bf16.mxu0 0
      %5757 = vmatpush1.bf16.msra.mxu0 0
      %5758 = vmatprep.subr.bf16.mxu0 0
      %5759 = vmatpush1.bf16.msra.mxu0 0
      %5760 = vmatprep.subr.bf16.mxu0 0
      %5761 = vmatpush1.bf16.msra.mxu0 0
      %5762 = vmatprep.subr.bf16.mxu0 0
      %5763 = vmatpush1.bf16.msra.mxu0 0
      %5764 = vmatprep.subr.bf16.mxu0 0
      %5765 = vmatpush1.bf16.msra.mxu0 0
      %5766 = vmatprep.subr.bf16.mxu0 0
      %5767 = vmatpush1.bf16.msra.mxu0 0
      %5768 = vmatprep.mubr.bf16.mxu0 0
      %5769 = vmatmul.mubr.bf16.gmra.mrb[0].mxu0 %v5664
      %v5770 = vpop.f32.mrb[0].mxu0
      %v5771 = vadd.f32 %v5686, %v5770
      %v5772 = vpop.f32.mrb[0].mxu0
      %v5773 = vpop.f32.mrb[0].mxu0
      %v5774 = vpop.f32.mrb[0].mxu0
      %5775 = vdwg.mxu0
      %v5776 = vmax.f32 %v5771, 0.0
      %v5777 = vpack.c.bf16 %v5776, %v5776
      %s5778 = scalar_lea.vmem [#allocation18], 64
      %v5779 = vld [vmem:[%s5778] sm:$0xf]
      %v5780 = vld [vmem:[%s5778 + $0x4] sm:$0xf]
      %v5781 = vld [vmem:[%s5778 + $0x8] sm:$0xf]
      %v5782 = vld [vmem:[%s5778 + $0xc] sm:$0xf]
      %v5783 = vld [vmem:[%s5778 + $0x10] sm:$0xf]
      %v5784 = vld [vmem:[%s5778 + $0x14] sm:$0xf]
      %v5785 = vld [vmem:[%s5778 + $0x18] sm:$0xf]
      %v5786 = vld [vmem:[%s5778 + $0x1c] sm:$0xf]
      %v5787 = vld [vmem:[%s5778 + $0x20] sm:$0xf]
      %v5788 = vld [vmem:[%s5778 + $0x24] sm:$0xf]
      %v5789 = vld [vmem:[%s5778 + $0x28] sm:$0xf]
      %v5790 = vld [vmem:[%s5778 + $0x2c] sm:$0xf]
      %v5791 = vld [vmem:[%s5778 + $0x30] sm:$0xf]
      %v5792 = vld [vmem:[%s5778 + $0x34] sm:$0xf]
      %v5793 = vld [vmem:[%s5778 + $0x38] sm:$0xf]
      %v5794 = vld [vmem:[%s5778 + $0x3c] sm:$0xf]
      %s5795 = scalar_lea.vmem [#allocation20], 1
      %v5796 = vld [vmem:[%s5795] sm:$0x1]
      %v5798 = vlaneseq
      %v5799 = vshrl.u32 %v5798, 7
      %v5800 = vsub.s32 0, %v5799
      %v5801 = vrot.slane %v5796, %v5800
      %v5819 = vunpack.c.l.b16 %v5779
      %v5820 = vunpack.c.l.b16 %v5780
      %v5821 = vunpack.c.l.b16 %v5781
      %v5822 = vunpack.c.l.b16 %v5782
      %v5823 = vunpack.c.l.b16 %v5783
      %v5824 = vunpack.c.l.b16 %v5784
      %v5825 = vunpack.c.l.b16 %v5785
      %v5826 = vunpack.c.l.b16 %v5786
      %v5827 = vunpack.c.l.b16 %v5787
      %v5828 = vunpack.c.l.b16 %v5788
      %v5829 = vunpack.c.l.b16 %v5789
      %v5830 = vunpack.c.l.b16 %v5790
      %v5831 = vunpack.c.l.b16 %v5791
      %v5832 = vunpack.c.l.b16 %v5792
      %v5833 = vunpack.c.l.b16 %v5793
      %v5834 = vunpack.c.l.b16 %v5794
      %v5835 = vpack.c.b16 %v5820, %v5819
      %v5836 = vpack.c.b16 %v5822, %v5821
      %v5837 = vpack.c.b16 %v5824, %v5823
      %v5838 = vpack.c.b16 %v5826, %v5825
      %v5839 = vpack.c.b16 %v5828, %v5827
      %v5840 = vpack.c.b16 %v5830, %v5829
      %v5841 = vpack.c.b16 %v5832, %v5831
      %v5842 = vpack.c.b16 %v5834, %v5833
      %5851 = vmatprep.subr.bf16.mxu0 0
      %5852 = vmatpush1.bf16.msra.mxu0 %v5835
      %5853 = vmatprep.subr.bf16.mxu0 0
      %5854 = vmatpush1.bf16.msra.mxu0 %v5836
      %5855 = vmatprep.subr.bf16.mxu0 0
      %5856 = vmatpush1.bf16.msra.mxu0 %v5837
      %5857 = vmatprep.subr.bf16.mxu0 0
      %5858 = vmatpush1.bf16.msra.mxu0 %v5838
      %5859 = vmatprep.subr.bf16.mxu0 0
      %5860 = vmatpush1.bf16.msra.mxu0 %v5839
      %5861 = vmatprep.subr.bf16.mxu0 0
      %5862 = vmatpush1.bf16.msra.mxu0 %v5840
      %5863 = vmatprep.subr.bf16.mxu0 0
      %5864 = vmatpush1.bf16.msra.mxu0 %v5841
      %5865 = vmatprep.subr.bf16.mxu0 0
      %5866 = vmatpush1.bf16.msra.mxu0 %v5842
      %5867 = vmatprep.subr.bf16.mxu0 0
      %5868 = vmatpush1.bf16.msra.mxu0 0
      %5869 = vmatprep.subr.bf16.mxu0 0
      %5870 = vmatpush1.bf16.msra.mxu0 0
      %5871 = vmatprep.subr.bf16.mxu0 0
      %5872 = vmatpush1.bf16.msra.mxu0 0
      %5873 = vmatprep.subr.bf16.mxu0 0
      %5874 = vmatpush1.bf16.msra.mxu0 0
      %5875 = vmatprep.subr.bf16.mxu0 0
      %5876 = vmatpush1.bf16.msra.mxu0 0
      %5877 = vmatprep.subr.bf16.mxu0 0
      %5878 = vmatpush1.bf16.msra.mxu0 0
      %5879 = vmatprep.subr.bf16.mxu0 0
      %5880 = vmatpush1.bf16.msra.mxu0 0
      %5881 = vmatprep.subr.bf16.mxu0 0
      %5882 = vmatpush1.bf16.msra.mxu0 0
      %5883 = vmatprep.mubr.bf16.mxu0 0
      %5884 = vmatmul.mubr.bf16.gmra.mrb[0].mxu0 %v5777
      %v5885 = vpop.f32.mrb[0].mxu0
      %v5886 = vadd.f32 %v5801, %v5885
      %v5887 = vpop.f32.mrb[0].mxu0
      %v5888 = vpop.f32.mrb[0].mxu0
      %v5889 = vpop.f32.mrb[0].mxu0
      %5890 = vdwg.mxu0
      %v5891 = vmax.f32 %v5886, 0.0
      %v5892 = vpack.c.bf16 %v5891, %v5891
      %s5893 = scalar_lea.vmem [#allocation18], 128
      %v5894 = vld [vmem:[%s5893] sm:$0xf]
      %v5895 = vld [vmem:[%s5893 + $0x4] sm:$0xf]
      %v5896 = vld [vmem:[%s5893 + $0x8] sm:$0xf]
      %v5897 = vld [vmem:[%s5893 + $0xc] sm:$0xf]
      %v5898 = vld [vmem:[%s5893 + $0x10] sm:$0xf]
      %v5899 = vld [vmem:[%s5893 + $0x14] sm:$0xf]
      %v5900 = vld [vmem:[%s5893 + $0x18] sm:$0xf]
      %v5901 = vld [vmem:[%s5893 + $0x1c] sm:$0xf]
      %v5902 = vld [vmem:[%s5893 + $0x20] sm:$0xf]
      %v5903 = vld [vmem:[%s5893 + $0x24] sm:$0xf]
      %v5904 = vld [vmem:[%s5893 + $0x28] sm:$0xf]
      %v5905 = vld [vmem:[%s5893 + $0x2c] sm:$0xf]
      %v5906 = vld [vmem:[%s5893 + $0x30] sm:$0xf]
      %v5907 = vld [vmem:[%s5893 + $0x34] sm:$0xf]
      %v5908 = vld [vmem:[%s5893 + $0x38] sm:$0xf]
      %v5909 = vld [vmem:[%s5893 + $0x3c] sm:$0xf]
      %s5910 = scalar_lea.vmem [#allocation20], 2
      %v5911 = vld [vmem:[%s5910] sm:$0x1]
      %v5913 = vlaneseq
      %v5914 = vshrl.u32 %v5913, 7
      %v5915 = vsub.s32 0, %v5914
      %v5916 = vrot.slane %v5911, %v5915
      %v5934 = vunpack.c.l.b16 %v5894
      %v5935 = vunpack.c.l.b16 %v5895
      %v5936 = vunpack.c.l.b16 %v5896
      %v5937 = vunpack.c.l.b16 %v5897
      %v5938 = vunpack.c.l.b16 %v5898
      %v5939 = vunpack.c.l.b16 %v5899
      %v5940 = vunpack.c.l.b16 %v5900
      %v5941 = vunpack.c.l.b16 %v5901
      %v5942 = vunpack.c.l.b16 %v5902
      %v5943 = vunpack.c.l.b16 %v5903
      %v5944 = vunpack.c.l.b16 %v5904
      %v5945 = vunpack.c.l.b16 %v5905
      %v5946 = vunpack.c.l.b16 %v5906
      %v5947 = vunpack.c.l.b16 %v5907
      %v5948 = vunpack.c.l.b16 %v5908
      %v5949 = vunpack.c.l.b16 %v5909
      %v5950 = vpack.c.b16 %v5935, %v5934
      %v5951 = vpack.c.b16 %v5937, %v5936
      %v5952 = vpack.c.b16 %v5939, %v5938
      %v5953 = vpack.c.b16 %v5941, %v5940
      %v5954 = vpack.c.b16 %v5943, %v5942
      %v5955 = vpack.c.b16 %v5945, %v5944
      %v5956 = vpack.c.b16 %v5947, %v5946
      %v5957 = vpack.c.b16 %v5949, %v5948
      %5966 = vmatprep.subr.bf16.mxu0 0
      %5967 = vmatpush1.bf16.msra.mxu0 %v5950
      %5968 = vmatprep.subr.bf16.mxu0 0
      %5969 = vmatpush1.bf16.msra.mxu0 %v5951
      %5970 = vmatprep.subr.bf16.mxu0 0
      %5971 = vmatpush1.bf16.msra.mxu0 %v5952
      %5972 = vmatprep.subr.bf16.mxu0 0
      %5973 = vmatpush1.bf16.msra.mxu0 %v5953
      %5974 = vmatprep.subr.bf16.mxu0 0
      %5975 = vmatpush1.bf16.msra.mxu0 %v5954
      %5976 = vmatprep.subr.bf16.mxu0 0
      %5977 = vmatpush1.bf16.msra.mxu0 %v5955
      %5978 = vmatprep.subr.bf16.mxu0 0
      %5979 = vmatpush1.bf16.msra.mxu0 %v5956
      %5980 = vmatprep.subr.bf16.mxu0 0
      %5981 = vmatpush1.bf16.msra.mxu0 %v5957
      %5982 = vmatprep.subr.bf16.mxu0 0
      %5983 = vmatpush1.bf16.msra.mxu0 0
      %5984 = vmatprep.subr.bf16.mxu0 0
      %5985 = vmatpush1.bf16.msra.mxu0 0
      %5986 = vmatprep.subr.bf16.mxu0 0
      %5987 = vmatpush1.bf16.msra.mxu0 0
      %5988 = vmatprep.subr.bf16.mxu0 0
      %5989 = vmatpush1.bf16.msra.mxu0 0
      %5990 = vmatprep.subr.bf16.mxu0 0
      %5991 = vmatpush1.bf16.msra.mxu0 0
      %5992 = vmatprep.subr.bf16.mxu0 0
      %5993 = vmatpush1.bf16.msra.mxu0 0
      %5994 = vmatprep.subr.bf16.mxu0 0
      %5995 = vmatpush1.bf16.msra.mxu0 0
      %5996 = vmatprep.subr.bf16.mxu0 0
      %5997 = vmatpush1.bf16.msra.mxu0 0
      %5998 = vmatprep.mubr.bf16.mxu0 0
      %5999 = vmatmul.mubr.bf16.gmra.mrb[0].mxu0 %v5892
      %v6000 = vpop.f32.mrb[0].mxu0
      %v6001 = vadd.f32 %v5916, %v6000
      %v6002 = vpop.f32.mrb[0].mxu0
      %v6003 = vpop.f32.mrb[0].mxu0
      %v6004 = vpop.f32.mrb[0].mxu0
      %6005 = vdwg.mxu0
      %v6006 = vmax.f32 %v6001, 0.0
      %v6007 = vpack.c.bf16 %v6006, %v6006
      %s6008 = scalar_lea.vmem [#allocation18], 192
      %v6009 = vld [vmem:[%s6008] sm:$0xf]
      %v6010 = vld [vmem:[%s6008 + $0x4] sm:$0xf]
      %v6011 = vld [vmem:[%s6008 + $0x8] sm:$0xf]
      %v6012 = vld [vmem:[%s6008 + $0xc] sm:$0xf]
      %v6013 = vld [vmem:[%s6008 + $0x10] sm:$0xf]
      %v6014 = vld [vmem:[%s6008 + $0x14] sm:$0xf]
      %v6015 = vld [vmem:[%s6008 + $0x18] sm:$0xf]
      %v6016 = vld [vmem:[%s6008 + $0x1c] sm:$0xf]
      %v6017 = vld [vmem:[%s6008 + $0x20] sm:$0xf]
      %v6018 = vld [vmem:[%s6008 + $0x24] sm:$0xf]
      %v6019 = vld [vmem:[%s6008 + $0x28] sm:$0xf]
      %v6020 = vld [vmem:[%s6008 + $0x2c] sm:$0xf]
      %v6021 = vld [vmem:[%s6008 + $0x30] sm:$0xf]
      %v6022 = vld [vmem:[%s6008 + $0x34] sm:$0xf]
      %v6023 = vld [vmem:[%s6008 + $0x38] sm:$0xf]
      %v6024 = vld [vmem:[%s6008 + $0x3c] sm:$0xf]
      %s6025 = scalar_lea.vmem [#allocation20], 3
      %v6026 = vld [vmem:[%s6025] sm:$0x1]
      %v6028 = vlaneseq
      %v6029 = vshrl.u32 %v6028, 7
      %v6030 = vsub.s32 0, %v6029
      %v6031 = vrot.slane %v6026, %v6030
      %v6049 = vunpack.c.l.b16 %v6009
      %v6050 = vunpack.c.l.b16 %v6010
      %v6051 = vunpack.c.l.b16 %v6011
      %v6052 = vunpack.c.l.b16 %v6012
      %v6053 = vunpack.c.l.b16 %v6013
      %v6054 = vunpack.c.l.b16 %v6014
      %v6055 = vunpack.c.l.b16 %v6015
      %v6056 = vunpack.c.l.b16 %v6016
      %v6057 = vunpack.c.l.b16 %v6017
      %v6058 = vunpack.c.l.b16 %v6018
      %v6059 = vunpack.c.l.b16 %v6019
      %v6060 = vunpack.c.l.b16 %v6020
      %v6061 = vunpack.c.l.b16 %v6021
      %v6062 = vunpack.c.l.b16 %v6022
      %v6063 = vunpack.c.l.b16 %v6023
      %v6064 = vunpack.c.l.b16 %v6024
      %v6065 = vpack.c.b16 %v6050, %v6049
      %v6066 = vpack.c.b16 %v6052, %v6051
      %v6067 = vpack.c.b16 %v6054, %v6053
      %v6068 = vpack.c.b16 %v6056, %v6055
      %v6069 = vpack.c.b16 %v6058, %v6057
      %v6070 = vpack.c.b16 %v6060, %v6059
      %v6071 = vpack.c.b16 %v6062, %v6061
      %v6072 = vpack.c.b16 %v6064, %v6063
      %6081 = vmatprep.subr.bf16.mxu0 0
      %6082 = vmatpush1.bf16.msra.mxu0 %v6065
      %6083 = vmatprep.subr.bf16.mxu0 0
      %6084 = vmatpush1.bf16.msra.mxu0 %v6066
      %6085 = vmatprep.subr.bf16.mxu0 0
      %6086 = vmatpush1.bf16.msra.mxu0 %v6067
      %6087 = vmatprep.subr.bf16.mxu0 0
      %6088 = vmatpush1.bf16.msra.mxu0 %v6068
      %6089 = vmatprep.subr.bf16.mxu0 0
      %6090 = vmatpush1.bf16.msra.mxu0 %v6069
      %6091 = vmatprep.subr.bf16.mxu0 0
      %6092 = vmatpush1.bf16.msra.mxu0 %v6070
      %6093 = vmatprep.subr.bf16.mxu0 0
      %6094 = vmatpush1.bf16.msra.mxu0 %v6071
      %6095 = vmatprep.subr.bf16.mxu0 0
      %6096 = vmatpush1.bf16.msra.mxu0 %v6072
      %6097 = vmatprep.subr.bf16.mxu0 0
      %6098 = vmatpush1.bf16.msra.mxu0 0
      %6099 = vmatprep.subr.bf16.mxu0 0
      %6100 = vmatpush1.bf16.msra.mxu0 0
      %6101 = vmatprep.subr.bf16.mxu0 0
      %6102 = vmatpush1.bf16.msra.mxu0 0
      %6103 = vmatprep.subr.bf16.mxu0 0
      %6104 = vmatpush1.bf16.msra.mxu0 0
      %6105 = vmatprep.subr.bf16.mxu0 0
      %6106 = vmatpush1.bf16.msra.mxu0 0
      %6107 = vmatprep.subr.bf16.mxu0 0
      %6108 = vmatpush1.bf16.msra.mxu0 0
      %6109 = vmatprep.subr.bf16.mxu0 0
      %6110 = vmatpush1.bf16.msra.mxu0 0
      %6111 = vmatprep.subr.bf16.mxu0 0
      %6112 = vmatpush1.bf16.msra.mxu0 0
      %6113 = vmatprep.mubr.bf16.mxu0 0
      %6114 = vmatmul.mubr.bf16.gmra.mrb[0].mxu0 %v6007
      %v6115 = vpop.f32.mrb[0].mxu0
      %v6116 = vadd.f32 %v6031, %v6115
      %v6117 = vpop.f32.mrb[0].mxu0
      %v6118 = vpop.f32.mrb[0].mxu0
      %v6119 = vpop.f32.mrb[0].mxu0
      %6120 = vdwg.mxu0
      %v6121 = vmax.f32 %v6116, 0.0
      %v6122 = vpack.c.bf16 %v6121, %v6121
      %s6123 = scalar_lea.vmem [#allocation18], 256
      %v6124 = vld [vmem:[%s6123] sm:$0xf]
      %v6125 = vld [vmem:[%s6123 + $0x4] sm:$0xf]
      %v6126 = vld [vmem:[%s6123 + $0x8] sm:$0xf]
      %v6127 = vld [vmem:[%s6123 + $0xc] sm:$0xf]
      %v6128 = vld [vmem:[%s6123 + $0x10] sm:$0xf]
      %v6129 = vld [vmem:[%s6123 + $0x14] sm:$0xf]
      %v6130 = vld [vmem:[%s6123 + $0x18] sm:$0xf]
      %v6131 = vld [vmem:[%s6123 + $0x1c] sm:$0xf]
      %v6132 = vld [vmem:[%s6123 + $0x20] sm:$0xf]
      %v6133 = vld [vmem:[%s6123 + $0x24] sm:$0xf]
      %v6134 = vld [vmem:[%s6123 + $0x28] sm:$0xf]
      %v6135 = vld [vmem:[%s6123 + $0x2c] sm:$0xf]
      %v6136 = vld [vmem:[%s6123 + $0x30] sm:$0xf]
      %v6137 = vld [vmem:[%s6123 + $0x34] sm:$0xf]
      %v6138 = vld [vmem:[%s6123 + $0x38] sm:$0xf]
      %v6139 = vld [vmem:[%s6123 + $0x3c] sm:$0xf]
      %s6140 = scalar_lea.vmem [#allocation20], 4
      %v6141 = vld [vmem:[%s6140] sm:$0x1]
      %v6143 = vlaneseq
      %v6144 = vshrl.u32 %v6143, 7
      %v6145 = vsub.s32 0, %v6144
      %v6146 = vrot.slane %v6141, %v6145
      %v6164 = vunpack.c.l.b16 %v6124
      %v6165 = vunpack.c.l.b16 %v6125
      %v6166 = vunpack.c.l.b16 %v6126
      %v6167 = vunpack.c.l.b16 %v6127
      %v6168 = vunpack.c.l.b16 %v6128
      %v6169 = vunpack.c.l.b16 %v6129
      %v6170 = vunpack.c.l.b16 %v6130
      %v6171 = vunpack.c.l.b16 %v6131
      %v6172 = vunpack.c.l.b16 %v6132
      %v6173 = vunpack.c.l.b16 %v6133
      %v6174 = vunpack.c.l.b16 %v6134
      %v6175 = vunpack.c.l.b16 %v6135
      %v6176 = vunpack.c.l.b16 %v6136
      %v6177 = vunpack.c.l.b16 %v6137
      %v6178 = vunpack.c.l.b16 %v6138
      %v6179 = vunpack.c.l.b16 %v6139
      %v6180 = vpack.c.b16 %v6165, %v6164
      %v6181 = vpack.c.b16 %v6167, %v6166
      %v6182 = vpack.c.b16 %v6169, %v6168
      %v6183 = vpack.c.b16 %v6171, %v6170
      %v6184 = vpack.c.b16 %v6173, %v6172
      %v6185 = vpack.c.b16 %v6175, %v6174
      %v6186 = vpack.c.b16 %v6177, %v6176
      %v6187 = vpack.c.b16 %v6179, %v6178
      %6196 = vmatprep.subr.bf16.mxu0 0
      %6197 = vmatpush1.bf16.msra.mxu0 %v6180
      %6198 = vmatprep.subr.bf16.mxu0 0
      %6199 = vmatpush1.bf16.msra.mxu0 %v6181
      %6200 = vmatprep.subr.bf16.mxu0 0
      %6201 = vmatpush1.bf16.msra.mxu0 %v6182
      %6202 = vmatprep.subr.bf16.mxu0 0
      %6203 = vmatpush1.bf16.msra.mxu0 %v6183
      %6204 = vmatprep.subr.bf16.mxu0 0
      %6205 = vmatpush1.bf16.msra.mxu0 %v6184
      %6206 = vmatprep.subr.bf16.mxu0 0
      %6207 = vmatpush1.bf16.msra.mxu0 %v6185
      %6208 = vmatprep.subr.bf16.mxu0 0
      %6209 = vmatpush1.bf16.msra.mxu0 %v6186
      %6210 = vmatprep.subr.bf16.mxu0 0
      %6211 = vmatpush1.bf16.msra.mxu0 %v6187
      %6212 = vmatprep.subr.bf16.mxu0 0
      %6213 = vmatpush1.bf16.msra.mxu0 0
      %6214 = vmatprep.subr.bf16.mxu0 0
      %6215 = vmatpush1.bf16.msra.mxu0 0
      %6216 = vmatprep.subr.bf16.mxu0 0
      %6217 = vmatpush1.bf16.msra.mxu0 0
      %6218 = vmatprep.subr.bf16.mxu0 0
      %6219 = vmatpush1.bf16.msra.mxu0 0
      %6220 = vmatprep.subr.bf16.mxu0 0
      %6221 = vmatpush1.bf16.msra.mxu0 0
      %6222 = vmatprep.subr.bf16.mxu0 0
      %6223 = vmatpush1.bf16.msra.mxu0 0
      %6224 = vmatprep.subr.bf16.mxu0 0
      %6225 = vmatpush1.bf16.msra.mxu0 0
      %6226 = vmatprep.subr.bf16.mxu0 0
      %6227 = vmatpush1.bf16.msra.mxu0 0
      %6228 = vmatprep.mubr.bf16.mxu0 0
      %6229 = vmatmul.mubr.bf16.gmra.mrb[0].mxu0 %v6122
      %v6230 = vpop.f32.mrb[0].mxu0
      %v6231 = vadd.f32 %v6146, %v6230
      %v6232 = vpop.f32.mrb[0].mxu0
      %v6233 = vpop.f32.mrb[0].mxu0
      %v6234 = vpop.f32.mrb[0].mxu0
      %6235 = vdwg.mxu0
      %6236 = vst [vmem:[#allocation21] sm:$0xff] %v6231
    $region97: #{tpu_custom_call.1} parent=1 // pred_fallthru
      _
    // Predicated region
    $region98: #{tpu_custom_call.1} parent=1 // pred_check
      _
    $region99: #{tpu_custom_call.1} parent=1 // pred_check_branch
      %6238 = sbr.rel (0) target = $region101
    $region100: #{tpu_custom_call.1} parent=1 // pred_region
      %s6240 = ssub.s32 128, 128
      %6241 = vsyncadd [#allocation5], %s6240
      %s6243 = sshll.u32 [#allocation21], 4
      %s6244 = int_to_ptr.vmem [resolvable:$true] %s6243
      %6246 = dma.vmem_to_hbm [thread:$0]  %s6244, 128, %s11, [#allocation5]
    $region101: #{tpu_custom_call.1} parent=1 // pred_fallthru
      _
    // Predicated region
    $region102: #{tpu_custom_call.1} parent=1 // pred_check
      _
    $region103: #{tpu_custom_call.1} parent=1 // pred_check_branch
      %6248 = sbr.rel (0) target = $region105
    $region104: #{tpu_custom_call.1} parent=1 // pred_region
      %6249 = dma.done [#allocation5], 128
    $region105: #{tpu_custom_call.1} parent=1 // pred_fallthru
      _
    %6250 = vsyncpa [#allocation4], 1
    %6251 = vsyncpa [#allocation7], 1
    %6252 = vsyncpa [#allocation10], 1
    %6253 = vsyncpa [#allocation13], 1
    %6254 = vsyncpa [#allocation16], 1
    %6255 = vsyncpa [#allocation19], 1
    %6256 = vsyncpa [#allocation5], 1

</llo_original>
